<compile_context>
chip_gen: v5e
topology: v5e:2x2
jax: 0.10.0
libtpu: 0.0.40
codegen_flags: <defaults>
</compile_context>

<pallas_src>
import functools

import jax
import jax.numpy as jnp
import numpy as np
from jax.experimental import pallas as pl
from jax.experimental.pallas import tpu as pltpu


# ----------------------------------------------------------------------------
# Fused Pallas kernel: whole RecurrentResidualBlock, transposed layout.
#   x_ref    : (Cin, F)   zero-padded image(s), flattened, batch folded in lanes
#   mask_ref : (1,  F)    1.0 on interior pixels, 0.0 on padding border / tail
#   weights  : BN-folded; 3x3 conv passed as 9 per-tap (C, C) matrices
#   o_ref    : (C,  F)    block output (still in padded-flat form; wrapper crops)
# ----------------------------------------------------------------------------
def _r2_block_kernel(x_ref, mask_ref, w1x1_ref, b1x1_ref,
                     w1_ref, b1_ref, w2_ref, b2_ref, o_ref, *, Wp, t):
  C, F = o_ref.shape
  mask = jnp.broadcast_to(mask_ref[...], (C, F))        # hoisted, reused by all

  # --- conv1x1 + folded BN + ReLU (input projection -> residual / first skip)
  res = jnp.dot(w1x1_ref[...], x_ref[...], preferred_element_type=jnp.float32)
  res = jnp.maximum(res + b1x1_ref[...], 0.0) * mask    # borders forced to 0

  # Flat-index offsets of the 9 taps inside the padded (Hp, Wp) image.
  shifts = tuple((dy - 1) * Wp + (dx - 1) for dy in range(3) for dx in range(3))

  def conv3x3(w_taps, b, xs):
    # xs: (C, F) activation with zero padding borders (mask invariant).
    acc = None
    for tap, d in enumerate(shifts):
      xr = xs if d == 0 else pltpu.roll(xs, (-d) % F, axis=1)   # XLU lane roll
      y = jnp.dot(w_taps[tap], xr, preferred_element_type=jnp.float32)
      acc = y if acc is None else acc + y
    # +bias, ReLU, then re-zero borders/tail so the next conv sees "same" pad.
    return jnp.maximum(acc + b, 0.0) * mask

  def recurrence(w_ref, b_ref, skip):
    w_taps = w_ref[...]                                  # (9, C, C) hoisted
    b = jnp.broadcast_to(b_ref[...], (C, F))             # hoisted broadcast
    out = conv3x3(w_taps, b, skip)                       # peeled iteration 0
    for _ in range(t):                                   # t is small & static
      out = conv3x3(w_taps, b, out + skip)
    return out

  out1 = recurrence(w1_ref, b1_ref, res)                 # recurrence #1
  out2 = recurrence(w2_ref, b2_ref, out1)                # recurrence #2
  o_ref[...] = out2 + res                                # residual fused in store


# ----------------------------------------------------------------------------
# pallas_call wrapper (NCHW in / NCHW out, like PyTorch)
# ----------------------------------------------------------------------------
def recurrent_residual_block(x_nchw, params, t=2, b_tile=1):
  N, Cin, H, W = x_nchw.shape
  C = params["w1x1"].shape[0]
  Hp, Wp = H + 2, W + 2
  L = Hp * Wp
  Lp = ((L + 127) // 128) * 128            # lane-dense flat length per image
  assert N % b_tile == 0
  F = b_tile * Lp

  # Zero "same" padding + flatten + lane-tail pad, batch folded into lanes.
  xp = jnp.pad(x_nchw.astype(jnp.float32), ((0, 0), (0, 0), (1, 1), (1, 1)))
  xp = jnp.pad(xp.reshape(N, Cin, L), ((0, 0), (0, 0), (0, Lp - L)))
  xk = jnp.transpose(xp, (1, 0, 2)).reshape(Cin, N * Lp)        # (Cin, N*Lp)

  # Interior mask for one grid tile: 1 inside the image, 0 on border / tail.
  m = jnp.zeros((Hp, Wp), jnp.float32).at[1:H + 1, 1:W + 1].set(1.0)
  m = jnp.pad(m.reshape(1, L), ((0, 0), (0, Lp - L)))
  mask = jnp.tile(m, (1, b_tile))                               # (1, F)

  kern = functools.partial(_r2_block_kernel, Wp=Wp, t=t)
  out = pl.pallas_call(
      kern,
      out_shape=jax.ShapeDtypeStruct((C, N * Lp), jnp.float32),
      grid=(N // b_tile,),
      in_specs=[
          pl.BlockSpec((Cin, F), lambda i: (0, i)),      # x (padded flat)
          pl.BlockSpec((1, F), lambda i: (0, 0)),        # interior mask
          pl.BlockSpec((C, Cin), lambda i: (0, 0)),      # w1x1 (BN folded)
          pl.BlockSpec((C, 1), lambda i: (0, 0)),        # b1x1
          pl.BlockSpec((9, C, C), lambda i: (0, 0, 0)),  # conv1 taps
          pl.BlockSpec((C, 1), lambda i: (0, 0)),        # b1
          pl.BlockSpec((9, C, C), lambda i: (0, 0, 0)),  # conv2 taps
          pl.BlockSpec((C, 1), lambda i: (0, 0)),        # b2
      ],
      out_specs=pl.BlockSpec((C, F), lambda i: (0, i)),
      compiler_params=pltpu.CompilerParams(dimension_semantics=("parallel",)),
  )(xk, mask, params["w1x1"], params["b1x1"],
    params["w1"], params["b1"], params["w2"], params["b2"])

  # Un-fold batch, drop the lane tail, crop the zero-padding border.
  out = out.reshape(C, N, Lp)[:, :, :L].reshape(C, N, Hp, Wp)
  out = jnp.transpose(out, (1, 0, 2, 3))[:, :, 1:H + 1, 1:W + 1]
  return out


# ----------------------------------------------------------------------------
# Parameter folding (Conv + BatchNorm(eval) -> transposed kernel layout)
# ----------------------------------------------------------------------------
def fold_1x1_bn(w_oihw, conv_bias, gamma, beta, mean, var, eps=1e-5):
  scale = gamma / jnp.sqrt(var + eps)                        # (Cout,)
  w = w_oihw[:, :, 0, 0] * scale[:, None]                    # (Cout, Cin)
  b = (conv_bias - mean) * scale + beta
  return w.astype(jnp.float32), b.reshape(-1, 1).astype(jnp.float32)


def fold_3x3_bn(w_oihw, gamma, beta, mean, var, eps=1e-5):
  scale = gamma / jnp.sqrt(var + eps)                        # (Cout,)
  cout, cin = w_oihw.shape[0], w_oihw.shape[1]
  w = w_oihw * scale[:, None, None, None]                    # (Cout, Cin, 3, 3)
  w = jnp.transpose(w, (2, 3, 0, 1)).reshape(9, cout, cin)   # per-tap (C, Cin)
  b = (-mean) * scale + beta
  return w.astype(jnp.float32), b.reshape(-1, 1).astype(jnp.float32)


# ----------------------------------------------------------------------------
# Plain-JAX reference (unfolded conv + BN eval), mirrors the PyTorch module
# ----------------------------------------------------------------------------
def reference(x_nchw, raw, t=2, eps=1e-5):
  def bn(y, g, b, m, v):
    return (y - m[None, :, None, None]) / jnp.sqrt(v + eps)[None, :, None, None] \
        * g[None, :, None, None] + b[None, :, None, None]

  def conv(x, w, b, pad):
    y = jax.lax.conv_general_dilated(
        x, w, (1, 1), [(pad, pad), (pad, pad)],
        dimension_numbers=("NCHW", "OIHW", "NCHW"))
    if b is not None:
      y = y + b[None, :, None, None]
    return y

  x = jax.nn.relu(bn(conv(x_nchw, raw["w1x1"], raw["b1x1"], 0), *raw["bn0"]))
  residual = x

  def cbr(x, w, bn_p):
    return jax.nn.relu(bn(conv(x, w, None, 1), *bn_p))

  out = cbr(x, raw["w1"], raw["bn1"])
  for _ in range(t):
    out = cbr(out + x, raw["w1"], raw["bn1"])
  x = out
  out = cbr(x, raw["w2"], raw["bn2"])
  for _ in range(t):
    out = cbr(out + x, raw["w2"], raw["bn2"])
  return out + residual


# ----------------------------------------------------------------------------
if __name__ == "__main__":
  N, Cin, Cout, H, W, T = 2, 4, 8, 16, 16, 2

  key = jax.random.PRNGKey(0)
  ks = jax.random.split(key, 20)

  def bn_params(k0, k1, k2, k3, c):
    gamma = jax.random.uniform(k0, (c,), jnp.float32, 0.5, 1.5)
    beta = 0.1 * jax.random.normal(k1, (c,), jnp.float32)
    mean = 0.1 * jax.random.normal(k2, (c,), jnp.float32)
    var = jax.random.uniform(k3, (c,), jnp.float32, 0.5, 1.5)
    return gamma, beta, mean, var

  raw = {
      "w1x1": 0.3 * jax.random.normal(ks[0], (Cout, Cin, 1, 1), jnp.float32),
      "b1x1": 0.1 * jax.random.normal(ks[1], (Cout,), jnp.float32),
      "bn0": bn_params(ks[2], ks[3], ks[4], ks[5], Cout),
      "w1": 0.2 * jax.random.normal(ks[6], (Cout, Cout, 3, 3), jnp.float32),
      "bn1": bn_params(ks[7], ks[8], ks[9], ks[10], Cout),
      "w2": 0.2 * jax.random.normal(ks[11], (Cout, Cout, 3, 3), jnp.float32),
      "bn2": bn_params(ks[12], ks[13], ks[14], ks[15], Cout),
  }

  # Fold BN (inference mode) into the conv weights/bias used by the kernel.
  params = {}
  params["w1x1"], params["b1x1"] = fold_1x1_bn(raw["w1x1"], raw["b1x1"],
                                               *raw["bn0"])
  params["w1"], params["b1"] = fold_3x3_bn(raw["w1"], *raw["bn1"])
  params["w2"], params["b2"] = fold_3x3_bn(raw["w2"], *raw["bn2"])

  x = jax.random.normal(ks[16], (N, Cin, H, W), jnp.float32)

  fwd = jax.jit(functools.partial(recurrent_residual_block, t=T))
  out = jax.block_until_ready(fwd(x, params))

  ref = jax.block_until_ready(reference(x, raw, t=T))

  assert out.shape == (N, Cout, H, W), out.shape
  np.testing.assert_allclose(np.asarray(out), np.asarray(ref),
                             rtol=1e-2, atol=1e-2)

  print("KERNEL_OK")
</pallas_src>

<mosaic_0001>
module attributes {stable_mosaic.version = 11 : i64} {
  func.func @_r2_block_kernel(%arg0: i32, %arg1: memref<4x384xf32, #tpu.memory_space<vmem>>, %arg2: memref<1x384xf32, #tpu.memory_space<vmem>>, %arg3: memref<8x4xf32, #tpu.memory_space<vmem>>, %arg4: memref<8x1xf32, #tpu.memory_space<vmem>>, %arg5: memref<9x8x8xf32, #tpu.memory_space<vmem>>, %arg6: memref<8x1xf32, #tpu.memory_space<vmem>>, %arg7: memref<9x8x8xf32, #tpu.memory_space<vmem>>, %arg8: memref<8x1xf32, #tpu.memory_space<vmem>>, %arg9: memref<8x384xf32, #tpu.memory_space<vmem>>) attributes {dimension_semantics = [#tpu.dimension_semantics<parallel>], iteration_bounds = array<i64: 2>, scalar_prefetch = 0 : i64, scratch_operands = 0 : i64, tpu.core_type = #tpu.core_type<tc>, window_params = [{transform_indices = @transform_0, window_bounds = array<i64: 4, 384>}, {pipeline_mode = #tpu.pipeline_mode<synchronous>, transform_indices = @transform_1, window_bounds = array<i64: 1, 384>}, {pipeline_mode = #tpu.pipeline_mode<synchronous>, transform_indices = @transform_2, window_bounds = array<i64: 8, 4>}, {pipeline_mode = #tpu.pipeline_mode<synchronous>, transform_indices = @transform_3, window_bounds = array<i64: 8, 1>}, {pipeline_mode = #tpu.pipeline_mode<synchronous>, transform_indices = @transform_4, window_bounds = array<i64: 9, 8, 8>}, {pipeline_mode = #tpu.pipeline_mode<synchronous>, transform_indices = @transform_5, window_bounds = array<i64: 8, 1>}, {pipeline_mode = #tpu.pipeline_mode<synchronous>, transform_indices = @transform_6, window_bounds = array<i64: 9, 8, 8>}, {pipeline_mode = #tpu.pipeline_mode<synchronous>, transform_indices = @transform_7, window_bounds = array<i64: 8, 1>}, {transform_indices = @transform_8, window_bounds = array<i64: 8, 384>}]} {
    %c0 = arith.constant 0 : index
    %c0_0 = arith.constant 0 : index
    %0 = vector.load %arg2[%c0, %c0_0] : memref<1x384xf32, #tpu.memory_space<vmem>>, vector<1x384xf32>
    %1 = vector.shape_cast %0 : vector<1x384xf32> to vector<1x384xf32>
    %2 = vector.broadcast %1 : vector<1x384xf32> to vector<8x384xf32>
    %c0_1 = arith.constant 0 : index
    %c0_2 = arith.constant 0 : index
    %3 = vector.load %arg3[%c0_1, %c0_2] : memref<8x4xf32, #tpu.memory_space<vmem>>, vector<8x4xf32>
    %c0_3 = arith.constant 0 : index
    %c0_4 = arith.constant 0 : index
    %4 = vector.load %arg1[%c0_3, %c0_4] : memref<4x384xf32, #tpu.memory_space<vmem>>, vector<4x384xf32>
    %cst = arith.constant dense<0.000000e+00> : vector<8x384xf32>
    %5 = tpu.matmul %3, %4, %cst {dimension_numbers = #tpu.dot_dimension_numbers<[1], [0], [0], [1], [0, 0, 1, 1], [], []>} : vector<8x4xf32>, vector<4x384xf32>, vector<8x384xf32> -> vector<8x384xf32>
    %c0_5 = arith.constant 0 : index
    %c0_6 = arith.constant 0 : index
    %6 = vector.load %arg4[%c0_5, %c0_6] : memref<8x1xf32, #tpu.memory_space<vmem>>, vector<8x1xf32>
    %7 = vector.broadcast %6 : vector<8x1xf32> to vector<8x384xf32>
    %8 = arith.addf %5, %7 : vector<8x384xf32>
    %cst_7 = arith.constant 0.000000e+00 : f32
    %9 = vector.broadcast %cst_7 : f32 to vector<8x384xf32>
    %10 = arith.maximumf %8, %9 : vector<8x384xf32>
    %11 = arith.mulf %10, %2 : vector<8x384xf32>
    %c0_8 = arith.constant 0 : index
    %c0_9 = arith.constant 0 : index
    %c0_10 = arith.constant 0 : index
    %12 = vector.load %arg5[%c0_8, %c0_9, %c0_10] : memref<9x8x8xf32, #tpu.memory_space<vmem>>, vector<9x8x8xf32>
    %c0_11 = arith.constant 0 : index
    %c0_12 = arith.constant 0 : index
    %13 = vector.load %arg6[%c0_11, %c0_12] : memref<8x1xf32, #tpu.memory_space<vmem>>, vector<8x1xf32>
    %14 = vector.shape_cast %13 : vector<8x1xf32> to vector<8x1xf32>
    %15 = vector.broadcast %14 : vector<8x1xf32> to vector<8x384xf32>
    %c19_i32 = arith.constant 19 : i32
    %16 = tpu.dynamic_rotate %11 by %c19_i32 dim 1 : vector<8x384xf32>, i32 -> vector<8x384xf32>
    %17 = vector.extract_strided_slice %12 {offsets = [0, 0, 0], sizes = [1, 8, 8], strides = [1, 1, 1]} : vector<9x8x8xf32> to vector<1x8x8xf32>
    %18 = vector.shape_cast %17 : vector<1x8x8xf32> to vector<8x8xf32>
    %cst_13 = arith.constant dense<0.000000e+00> : vector<8x384xf32>
    %19 = tpu.matmul %18, %16, %cst_13 {dimension_numbers = #tpu.dot_dimension_numbers<[1], [0], [0], [1], [0, 0, 1, 1], [], []>} : vector<8x8xf32>, vector<8x384xf32>, vector<8x384xf32> -> vector<8x384xf32>
    %c18_i32 = arith.constant 18 : i32
    %20 = tpu.dynamic_rotate %11 by %c18_i32 dim 1 : vector<8x384xf32>, i32 -> vector<8x384xf32>
    %21 = vector.extract_strided_slice %12 {offsets = [1, 0, 0], sizes = [1, 8, 8], strides = [1, 1, 1]} : vector<9x8x8xf32> to vector<1x8x8xf32>
    %22 = vector.shape_cast %21 : vector<1x8x8xf32> to vector<8x8xf32>
    %cst_14 = arith.constant dense<0.000000e+00> : vector<8x384xf32>
    %23 = tpu.matmul %22, %20, %cst_14 {dimension_numbers = #tpu.dot_dimension_numbers<[1], [0], [0], [1], [0, 0, 1, 1], [], []>} : vector<8x8xf32>, vector<8x384xf32>, vector<8x384xf32> -> vector<8x384xf32>
    %24 = arith.addf %19, %23 : vector<8x384xf32>
    %c17_i32 = arith.constant 17 : i32
    %25 = tpu.dynamic_rotate %11 by %c17_i32 dim 1 : vector<8x384xf32>, i32 -> vector<8x384xf32>
    %26 = vector.extract_strided_slice %12 {offsets = [2, 0, 0], sizes = [1, 8, 8], strides = [1, 1, 1]} : vector<9x8x8xf32> to vector<1x8x8xf32>
    %27 = vector.shape_cast %26 : vector<1x8x8xf32> to vector<8x8xf32>
    %cst_15 = arith.constant dense<0.000000e+00> : vector<8x384xf32>
    %28 = tpu.matmul %27, %25, %cst_15 {dimension_numbers = #tpu.dot_dimension_numbers<[1], [0], [0], [1], [0, 0, 1, 1], [], []>} : vector<8x8xf32>, vector<8x384xf32>, vector<8x384xf32> -> vector<8x384xf32>
    %29 = arith.addf %24, %28 : vector<8x384xf32>
    %c1_i32 = arith.constant 1 : i32
    %30 = tpu.dynamic_rotate %11 by %c1_i32 dim 1 : vector<8x384xf32>, i32 -> vector<8x384xf32>
    %31 = vector.extract_strided_slice %12 {offsets = [3, 0, 0], sizes = [1, 8, 8], strides = [1, 1, 1]} : vector<9x8x8xf32> to vector<1x8x8xf32>
    %32 = vector.shape_cast %31 : vector<1x8x8xf32> to vector<8x8xf32>
    %cst_16 = arith.constant dense<0.000000e+00> : vector<8x384xf32>
    %33 = tpu.matmul %32, %30, %cst_16 {dimension_numbers = #tpu.dot_dimension_numbers<[1], [0], [0], [1], [0, 0, 1, 1], [], []>} : vector<8x8xf32>, vector<8x384xf32>, vector<8x384xf32> -> vector<8x384xf32>
    %34 = arith.addf %29, %33 : vector<8x384xf32>
    %35 = vector.extract_strided_slice %12 {offsets = [4, 0, 0], sizes = [1, 8, 8], strides = [1, 1, 1]} : vector<9x8x8xf32> to vector<1x8x8xf32>
    %36 = vector.shape_cast %35 : vector<1x8x8xf32> to vector<8x8xf32>
    %cst_17 = arith.constant dense<0.000000e+00> : vector<8x384xf32>
    %37 = tpu.matmul %36, %11, %cst_17 {dimension_numbers = #tpu.dot_dimension_numbers<[1], [0], [0], [1], [0, 0, 1, 1], [], []>} : vector<8x8xf32>, vector<8x384xf32>, vector<8x384xf32> -> vector<8x384xf32>
    %38 = arith.addf %34, %37 : vector<8x384xf32>
    %c383_i32 = arith.constant 383 : i32
    %39 = tpu.dynamic_rotate %11 by %c383_i32 dim 1 : vector<8x384xf32>, i32 -> vector<8x384xf32>
    %40 = vector.extract_strided_slice %12 {offsets = [5, 0, 0], sizes = [1, 8, 8], strides = [1, 1, 1]} : vector<9x8x8xf32> to vector<1x8x8xf32>
    %41 = vector.shape_cast %40 : vector<1x8x8xf32> to vector<8x8xf32>
    %cst_18 = arith.constant dense<0.000000e+00> : vector<8x384xf32>
    %42 = tpu.matmul %41, %39, %cst_18 {dimension_numbers = #tpu.dot_dimension_numbers<[1], [0], [0], [1], [0, 0, 1, 1], [], []>} : vector<8x8xf32>, vector<8x384xf32>, vector<8x384xf32> -> vector<8x384xf32>
    %43 = arith.addf %38, %42 : vector<8x384xf32>
    %c367_i32 = arith.constant 367 : i32
    %44 = tpu.dynamic_rotate %11 by %c367_i32 dim 1 : vector<8x384xf32>, i32 -> vector<8x384xf32>
    %45 = vector.extract_strided_slice %12 {offsets = [6, 0, 0], sizes = [1, 8, 8], strides = [1, 1, 1]} : vector<9x8x8xf32> to vector<1x8x8xf32>
    %46 = vector.shape_cast %45 : vector<1x8x8xf32> to vector<8x8xf32>
    %cst_19 = arith.constant dense<0.000000e+00> : vector<8x384xf32>
    %47 = tpu.matmul %46, %44, %cst_19 {dimension_numbers = #tpu.dot_dimension_numbers<[1], [0], [0], [1], [0, 0, 1, 1], [], []>} : vector<8x8xf32>, vector<8x384xf32>, vector<8x384xf32> -> vector<8x384xf32>
    %48 = arith.addf %43, %47 : vector<8x384xf32>
    %c366_i32 = arith.constant 366 : i32
    %49 = tpu.dynamic_rotate %11 by %c366_i32 dim 1 : vector<8x384xf32>, i32 -> vector<8x384xf32>
    %50 = vector.extract_strided_slice %12 {offsets = [7, 0, 0], sizes = [1, 8, 8], strides = [1, 1, 1]} : vector<9x8x8xf32> to vector<1x8x8xf32>
    %51 = vector.shape_cast %50 : vector<1x8x8xf32> to vector<8x8xf32>
    %cst_20 = arith.constant dense<0.000000e+00> : vector<8x384xf32>
    %52 = tpu.matmul %51, %49, %cst_20 {dimension_numbers = #tpu.dot_dimension_numbers<[1], [0], [0], [1], [0, 0, 1, 1], [], []>} : vector<8x8xf32>, vector<8x384xf32>, vector<8x384xf32> -> vector<8x384xf32>
    %53 = arith.addf %48, %52 : vector<8x384xf32>
    %c365_i32 = arith.constant 365 : i32
    %54 = tpu.dynamic_rotate %11 by %c365_i32 dim 1 : vector<8x384xf32>, i32 -> vector<8x384xf32>
    %55 = vector.extract_strided_slice %12 {offsets = [8, 0, 0], sizes = [1, 8, 8], strides = [1, 1, 1]} : vector<9x8x8xf32> to vector<1x8x8xf32>
    %56 = vector.shape_cast %55 : vector<1x8x8xf32> to vector<8x8xf32>
    %cst_21 = arith.constant dense<0.000000e+00> : vector<8x384xf32>
    %57 = tpu.matmul %56, %54, %cst_21 {dimension_numbers = #tpu.dot_dimension_numbers<[1], [0], [0], [1], [0, 0, 1, 1], [], []>} : vector<8x8xf32>, vector<8x384xf32>, vector<8x384xf32> -> vector<8x384xf32>
    %58 = arith.addf %53, %57 : vector<8x384xf32>
    %59 = arith.addf %58, %15 : vector<8x384xf32>
    %cst_22 = arith.constant 0.000000e+00 : f32
    %60 = vector.broadcast %cst_22 : f32 to vector<8x384xf32>
    %61 = arith.maximumf %59, %60 : vector<8x384xf32>
    %62 = arith.mulf %61, %2 : vector<8x384xf32>
    %63 = arith.addf %62, %11 : vector<8x384xf32>
    %c19_i32_23 = arith.constant 19 : i32
    %64 = tpu.dynamic_rotate %63 by %c19_i32_23 dim 1 : vector<8x384xf32>, i32 -> vector<8x384xf32>
    %65 = vector.extract_strided_slice %12 {offsets = [0, 0, 0], sizes = [1, 8, 8], strides = [1, 1, 1]} : vector<9x8x8xf32> to vector<1x8x8xf32>
    %66 = vector.shape_cast %65 : vector<1x8x8xf32> to vector<8x8xf32>
    %cst_24 = arith.constant dense<0.000000e+00> : vector<8x384xf32>
    %67 = tpu.matmul %66, %64, %cst_24 {dimension_numbers = #tpu.dot_dimension_numbers<[1], [0], [0], [1], [0, 0, 1, 1], [], []>} : vector<8x8xf32>, vector<8x384xf32>, vector<8x384xf32> -> vector<8x384xf32>
    %c18_i32_25 = arith.constant 18 : i32
    %68 = tpu.dynamic_rotate %63 by %c18_i32_25 dim 1 : vector<8x384xf32>, i32 -> vector<8x384xf32>
    %69 = vector.extract_strided_slice %12 {offsets = [1, 0, 0], sizes = [1, 8, 8], strides = [1, 1, 1]} : vector<9x8x8xf32> to vector<1x8x8xf32>
    %70 = vector.shape_cast %69 : vector<1x8x8xf32> to vector<8x8xf32>
    %cst_26 = arith.constant dense<0.000000e+00> : vector<8x384xf32>
    %71 = tpu.matmul %70, %68, %cst_26 {dimension_numbers = #tpu.dot_dimension_numbers<[1], [0], [0], [1], [0, 0, 1, 1], [], []>} : vector<8x8xf32>, vector<8x384xf32>, vector<8x384xf32> -> vector<8x384xf32>
    %72 = arith.addf %67, %71 : vector<8x384xf32>
    %c17_i32_27 = arith.constant 17 : i32
    %73 = tpu.dynamic_rotate %63 by %c17_i32_27 dim 1 : vector<8x384xf32>, i32 -> vector<8x384xf32>
    %74 = vector.extract_strided_slice %12 {offsets = [2, 0, 0], sizes = [1, 8, 8], strides = [1, 1, 1]} : vector<9x8x8xf32> to vector<1x8x8xf32>
    %75 = vector.shape_cast %74 : vector<1x8x8xf32> to vector<8x8xf32>
    %cst_28 = arith.constant dense<0.000000e+00> : vector<8x384xf32>
    %76 = tpu.matmul %75, %73, %cst_28 {dimension_numbers = #tpu.dot_dimension_numbers<[1], [0], [0], [1], [0, 0, 1, 1], [], []>} : vector<8x8xf32>, vector<8x384xf32>, vector<8x384xf32> -> vector<8x384xf32>
    %77 = arith.addf %72, %76 : vector<8x384xf32>
    %c1_i32_29 = arith.constant 1 : i32
    %78 = tpu.dynamic_rotate %63 by %c1_i32_29 dim 1 : vector<8x384xf32>, i32 -> vector<8x384xf32>
    %79 = vector.extract_strided_slice %12 {offsets = [3, 0, 0], sizes = [1, 8, 8], strides = [1, 1, 1]} : vector<9x8x8xf32> to vector<1x8x8xf32>
    %80 = vector.shape_cast %79 : vector<1x8x8xf32> to vector<8x8xf32>
    %cst_30 = arith.constant dense<0.000000e+00> : vector<8x384xf32>
    %81 = tpu.matmul %80, %78, %cst_30 {dimension_numbers = #tpu.dot_dimension_numbers<[1], [0], [0], [1], [0, 0, 1, 1], [], []>} : vector<8x8xf32>, vector<8x384xf32>, vector<8x384xf32> -> vector<8x384xf32>
    %82 = arith.addf %77, %81 : vector<8x384xf32>
    %83 = vector.extract_strided_slice %12 {offsets = [4, 0, 0], sizes = [1, 8, 8], strides = [1, 1, 1]} : vector<9x8x8xf32> to vector<1x8x8xf32>
    %84 = vector.shape_cast %83 : vector<1x8x8xf32> to vector<8x8xf32>
    %cst_31 = arith.constant dense<0.000000e+00> : vector<8x384xf32>
    %85 = tpu.matmul %84, %63, %cst_31 {dimension_numbers = #tpu.dot_dimension_numbers<[1], [0], [0], [1], [0, 0, 1, 1], [], []>} : vector<8x8xf32>, vector<8x384xf32>, vector<8x384xf32> -> vector<8x384xf32>
    %86 = arith.addf %82, %85 : vector<8x384xf32>
    %c383_i32_32 = arith.constant 383 : i32
    %87 = tpu.dynamic_rotate %63 by %c383_i32_32 dim 1 : vector<8x384xf32>, i32 -> vector<8x384xf32>
    %88 = vector.extract_strided_slice %12 {offsets = [5, 0, 0], sizes = [1, 8, 8], strides = [1, 1, 1]} : vector<9x8x8xf32> to vector<1x8x8xf32>
    %89 = vector.shape_cast %88 : vector<1x8x8xf32> to vector<8x8xf32>
    %cst_33 = arith.constant dense<0.000000e+00> : vector<8x384xf32>
    %90 = tpu.matmul %89, %87, %cst_33 {dimension_numbers = #tpu.dot_dimension_numbers<[1], [0], [0], [1], [0, 0, 1, 1], [], []>} : vector<8x8xf32>, vector<8x384xf32>, vector<8x384xf32> -> vector<8x384xf32>
    %91 = arith.addf %86, %90 : vector<8x384xf32>
    %c367_i32_34 = arith.constant 367 : i32
    %92 = tpu.dynamic_rotate %63 by %c367_i32_34 dim 1 : vector<8x384xf32>, i32 -> vector<8x384xf32>
    %93 = vector.extract_strided_slice %12 {offsets = [6, 0, 0], sizes = [1, 8, 8], strides = [1, 1, 1]} : vector<9x8x8xf32> to vector<1x8x8xf32>
    %94 = vector.shape_cast %93 : vector<1x8x8xf32> to vector<8x8xf32>
    %cst_35 = arith.constant dense<0.000000e+00> : vector<8x384xf32>
    %95 = tpu.matmul %94, %92, %cst_35 {dimension_numbers = #tpu.dot_dimension_numbers<[1], [0], [0], [1], [0, 0, 1, 1], [], []>} : vector<8x8xf32>, vector<8x384xf32>, vector<8x384xf32> -> vector<8x384xf32>
    %96 = arith.addf %91, %95 : vector<8x384xf32>
    %c366_i32_36 = arith.constant 366 : i32
    %97 = tpu.dynamic_rotate %63 by %c366_i32_36 dim 1 : vector<8x384xf32>, i32 -> vector<8x384xf32>
    %98 = vector.extract_strided_slice %12 {offsets = [7, 0, 0], sizes = [1, 8, 8], strides = [1, 1, 1]} : vector<9x8x8xf32> to vector<1x8x8xf32>
    %99 = vector.shape_cast %98 : vector<1x8x8xf32> to vector<8x8xf32>
    %cst_37 = arith.constant dense<0.000000e+00> : vector<8x384xf32>
    %100 = tpu.matmul %99, %97, %cst_37 {dimension_numbers = #tpu.dot_dimension_numbers<[1], [0], [0], [1], [0, 0, 1, 1], [], []>} : vector<8x8xf32>, vector<8x384xf32>, vector<8x384xf32> -> vector<8x384xf32>
    %101 = arith.addf %96, %100 : vector<8x384xf32>
    %c365_i32_38 = arith.constant 365 : i32
    %102 = tpu.dynamic_rotate %63 by %c365_i32_38 dim 1 : vector<8x384xf32>, i32 -> vector<8x384xf32>
    %103 = vector.extract_strided_slice %12 {offsets = [8, 0, 0], sizes = [1, 8, 8], strides = [1, 1, 1]} : vector<9x8x8xf32> to vector<1x8x8xf32>
    %104 = vector.shape_cast %103 : vector<1x8x8xf32> to vector<8x8xf32>
    %cst_39 = arith.constant dense<0.000000e+00> : vector<8x384xf32>
    %105 = tpu.matmul %104, %102, %cst_39 {dimension_numbers = #tpu.dot_dimension_numbers<[1], [0], [0], [1], [0, 0, 1, 1], [], []>} : vector<8x8xf32>, vector<8x384xf32>, vector<8x384xf32> -> vector<8x384xf32>
    %106 = arith.addf %101, %105 : vector<8x384xf32>
    %107 = arith.addf %106, %15 : vector<8x384xf32>
    %cst_40 = arith.constant 0.000000e+00 : f32
    %108 = vector.broadcast %cst_40 : f32 to vector<8x384xf32>
    %109 = arith.maximumf %107, %108 : vector<8x384xf32>
    %110 = arith.mulf %109, %2 : vector<8x384xf32>
    %111 = arith.addf %110, %11 : vector<8x384xf32>
    %c19_i32_41 = arith.constant 19 : i32
    %112 = tpu.dynamic_rotate %111 by %c19_i32_41 dim 1 : vector<8x384xf32>, i32 -> vector<8x384xf32>
    %113 = vector.extract_strided_slice %12 {offsets = [0, 0, 0], sizes = [1, 8, 8], strides = [1, 1, 1]} : vector<9x8x8xf32> to vector<1x8x8xf32>
    %114 = vector.shape_cast %113 : vector<1x8x8xf32> to vector<8x8xf32>
    %cst_42 = arith.constant dense<0.000000e+00> : vector<8x384xf32>
    %115 = tpu.matmul %114, %112, %cst_42 {dimension_numbers = #tpu.dot_dimension_numbers<[1], [0], [0], [1], [0, 0, 1, 1], [], []>} : vector<8x8xf32>, vector<8x384xf32>, vector<8x384xf32> -> vector<8x384xf32>
    %c18_i32_43 = arith.constant 18 : i32
    %116 = tpu.dynamic_rotate %111 by %c18_i32_43 dim 1 : vector<8x384xf32>, i32 -> vector<8x384xf32>
    %117 = vector.extract_strided_slice %12 {offsets = [1, 0, 0], sizes = [1, 8, 8], strides = [1, 1, 1]} : vector<9x8x8xf32> to vector<1x8x8xf32>
    %118 = vector.shape_cast %117 : vector<1x8x8xf32> to vector<8x8xf32>
    %cst_44 = arith.constant dense<0.000000e+00> : vector<8x384xf32>
    %119 = tpu.matmul %118, %116, %cst_44 {dimension_numbers = #tpu.dot_dimension_numbers<[1], [0], [0], [1], [0, 0, 1, 1], [], []>} : vector<8x8xf32>, vector<8x384xf32>, vector<8x384xf32> -> vector<8x384xf32>
    %120 = arith.addf %115, %119 : vector<8x384xf32>
    %c17_i32_45 = arith.constant 17 : i32
    %121 = tpu.dynamic_rotate %111 by %c17_i32_45 dim 1 : vector<8x384xf32>, i32 -> vector<8x384xf32>
    %122 = vector.extract_strided_slice %12 {offsets = [2, 0, 0], sizes = [1, 8, 8], strides = [1, 1, 1]} : vector<9x8x8xf32> to vector<1x8x8xf32>
    %123 = vector.shape_cast %122 : vector<1x8x8xf32> to vector<8x8xf32>
    %cst_46 = arith.constant dense<0.000000e+00> : vector<8x384xf32>
    %124 = tpu.matmul %123, %121, %cst_46 {dimension_numbers = #tpu.dot_dimension_numbers<[1], [0], [0], [1], [0, 0, 1, 1], [], []>} : vector<8x8xf32>, vector<8x384xf32>, vector<8x384xf32> -> vector<8x384xf32>
    %125 = arith.addf %120, %124 : vector<8x384xf32>
    %c1_i32_47 = arith.constant 1 : i32
    %126 = tpu.dynamic_rotate %111 by %c1_i32_47 dim 1 : vector<8x384xf32>, i32 -> vector<8x384xf32>
    %127 = vector.extract_strided_slice %12 {offsets = [3, 0, 0], sizes = [1, 8, 8], strides = [1, 1, 1]} : vector<9x8x8xf32> to vector<1x8x8xf32>
    %128 = vector.shape_cast %127 : vector<1x8x8xf32> to vector<8x8xf32>
    %cst_48 = arith.constant dense<0.000000e+00> : vector<8x384xf32>
    %129 = tpu.matmul %128, %126, %cst_48 {dimension_numbers = #tpu.dot_dimension_numbers<[1], [0], [0], [1], [0, 0, 1, 1], [], []>} : vector<8x8xf32>, vector<8x384xf32>, vector<8x384xf32> -> vector<8x384xf32>
    %130 = arith.addf %125, %129 : vector<8x384xf32>
    %131 = vector.extract_strided_slice %12 {offsets = [4, 0, 0], sizes = [1, 8, 8], strides = [1, 1, 1]} : vector<9x8x8xf32> to vector<1x8x8xf32>
    %132 = vector.shape_cast %131 : vector<1x8x8xf32> to vector<8x8xf32>
    %cst_49 = arith.constant dense<0.000000e+00> : vector<8x384xf32>
    %133 = tpu.matmul %132, %111, %cst_49 {dimension_numbers = #tpu.dot_dimension_numbers<[1], [0], [0], [1], [0, 0, 1, 1], [], []>} : vector<8x8xf32>, vector<8x384xf32>, vector<8x384xf32> -> vector<8x384xf32>
    %134 = arith.addf %130, %133 : vector<8x384xf32>
    %c383_i32_50 = arith.constant 383 : i32
    %135 = tpu.dynamic_rotate %111 by %c383_i32_50 dim 1 : vector<8x384xf32>, i32 -> vector<8x384xf32>
    %136 = vector.extract_strided_slice %12 {offsets = [5, 0, 0], sizes = [1, 8, 8], strides = [1, 1, 1]} : vector<9x8x8xf32> to vector<1x8x8xf32>
    %137 = vector.shape_cast %136 : vector<1x8x8xf32> to vector<8x8xf32>
    %cst_51 = arith.constant dense<0.000000e+00> : vector<8x384xf32>
    %138 = tpu.matmul %137, %135, %cst_51 {dimension_numbers = #tpu.dot_dimension_numbers<[1], [0], [0], [1], [0, 0, 1, 1], [], []>} : vector<8x8xf32>, vector<8x384xf32>, vector<8x384xf32> -> vector<8x384xf32>
    %139 = arith.addf %134, %138 : vector<8x384xf32>
    %c367_i32_52 = arith.constant 367 : i32
    %140 = tpu.dynamic_rotate %111 by %c367_i32_52 dim 1 : vector<8x384xf32>, i32 -> vector<8x384xf32>
    %141 = vector.extract_strided_slice %12 {offsets = [6, 0, 0], sizes = [1, 8, 8], strides = [1, 1, 1]} : vector<9x8x8xf32> to vector<1x8x8xf32>
    %142 = vector.shape_cast %141 : vector<1x8x8xf32> to vector<8x8xf32>
    %cst_53 = arith.constant dense<0.000000e+00> : vector<8x384xf32>
    %143 = tpu.matmul %142, %140, %cst_53 {dimension_numbers = #tpu.dot_dimension_numbers<[1], [0], [0], [1], [0, 0, 1, 1], [], []>} : vector<8x8xf32>, vector<8x384xf32>, vector<8x384xf32> -> vector<8x384xf32>
    %144 = arith.addf %139, %143 : vector<8x384xf32>
    %c366_i32_54 = arith.constant 366 : i32
    %145 = tpu.dynamic_rotate %111 by %c366_i32_54 dim 1 : vector<8x384xf32>, i32 -> vector<8x384xf32>
    %146 = vector.extract_strided_slice %12 {offsets = [7, 0, 0], sizes = [1, 8, 8], strides = [1, 1, 1]} : vector<9x8x8xf32> to vector<1x8x8xf32>
    %147 = vector.shape_cast %146 : vector<1x8x8xf32> to vector<8x8xf32>
    %cst_55 = arith.constant dense<0.000000e+00> : vector<8x384xf32>
    %148 = tpu.matmul %147, %145, %cst_55 {dimension_numbers = #tpu.dot_dimension_numbers<[1], [0], [0], [1], [0, 0, 1, 1], [], []>} : vector<8x8xf32>, vector<8x384xf32>, vector<8x384xf32> -> vector<8x384xf32>
    %149 = arith.addf %144, %148 : vector<8x384xf32>
    %c365_i32_56 = arith.constant 365 : i32
    %150 = tpu.dynamic_rotate %111 by %c365_i32_56 dim 1 : vector<8x384xf32>, i32 -> vector<8x384xf32>
    %151 = vector.extract_strided_slice %12 {offsets = [8, 0, 0], sizes = [1, 8, 8], strides = [1, 1, 1]} : vector<9x8x8xf32> to vector<1x8x8xf32>
    %152 = vector.shape_cast %151 : vector<1x8x8xf32> to vector<8x8xf32>
    %cst_57 = arith.constant dense<0.000000e+00> : vector<8x384xf32>
    %153 = tpu.matmul %152, %150, %cst_57 {dimension_numbers = #tpu.dot_dimension_numbers<[1], [0], [0], [1], [0, 0, 1, 1], [], []>} : vector<8x8xf32>, vector<8x384xf32>, vector<8x384xf32> -> vector<8x384xf32>
    %154 = arith.addf %149, %153 : vector<8x384xf32>
    %155 = arith.addf %154, %15 : vector<8x384xf32>
    %cst_58 = arith.constant 0.000000e+00 : f32
    %156 = vector.broadcast %cst_58 : f32 to vector<8x384xf32>
    %157 = arith.maximumf %155, %156 : vector<8x384xf32>
    %158 = arith.mulf %157, %2 : vector<8x384xf32>
    %c0_59 = arith.constant 0 : index
    %c0_60 = arith.constant 0 : index
    %c0_61 = arith.constant 0 : index
    %159 = vector.load %arg7[%c0_59, %c0_60, %c0_61] : memref<9x8x8xf32, #tpu.memory_space<vmem>>, vector<9x8x8xf32>
    %c0_62 = arith.constant 0 : index
    %c0_63 = arith.constant 0 : index
    %160 = vector.load %arg8[%c0_62, %c0_63] : memref<8x1xf32, #tpu.memory_space<vmem>>, vector<8x1xf32>
    %161 = vector.shape_cast %160 : vector<8x1xf32> to vector<8x1xf32>
    %162 = vector.broadcast %161 : vector<8x1xf32> to vector<8x384xf32>
    %c19_i32_64 = arith.constant 19 : i32
    %163 = tpu.dynamic_rotate %158 by %c19_i32_64 dim 1 : vector<8x384xf32>, i32 -> vector<8x384xf32>
    %164 = vector.extract_strided_slice %159 {offsets = [0, 0, 0], sizes = [1, 8, 8], strides = [1, 1, 1]} : vector<9x8x8xf32> to vector<1x8x8xf32>
    %165 = vector.shape_cast %164 : vector<1x8x8xf32> to vector<8x8xf32>
    %cst_65 = arith.constant dense<0.000000e+00> : vector<8x384xf32>
    %166 = tpu.matmul %165, %163, %cst_65 {dimension_numbers = #tpu.dot_dimension_numbers<[1], [0], [0], [1], [0, 0, 1, 1], [], []>} : vector<8x8xf32>, vector<8x384xf32>, vector<8x384xf32> -> vector<8x384xf32>
    %c18_i32_66 = arith.constant 18 : i32
    %167 = tpu.dynamic_rotate %158 by %c18_i32_66 dim 1 : vector<8x384xf32>, i32 -> vector<8x384xf32>
    %168 = vector.extract_strided_slice %159 {offsets = [1, 0, 0], sizes = [1, 8, 8], strides = [1, 1, 1]} : vector<9x8x8xf32> to vector<1x8x8xf32>
    %169 = vector.shape_cast %168 : vector<1x8x8xf32> to vector<8x8xf32>
    %cst_67 = arith.constant dense<0.000000e+00> : vector<8x384xf32>
    %170 = tpu.matmul %169, %167, %cst_67 {dimension_numbers = #tpu.dot_dimension_numbers<[1], [0], [0], [1], [0, 0, 1, 1], [], []>} : vector<8x8xf32>, vector<8x384xf32>, vector<8x384xf32> -> vector<8x384xf32>
    %171 = arith.addf %166, %170 : vector<8x384xf32>
    %c17_i32_68 = arith.constant 17 : i32
    %172 = tpu.dynamic_rotate %158 by %c17_i32_68 dim 1 : vector<8x384xf32>, i32 -> vector<8x384xf32>
    %173 = vector.extract_strided_slice %159 {offsets = [2, 0, 0], sizes = [1, 8, 8], strides = [1, 1, 1]} : vector<9x8x8xf32> to vector<1x8x8xf32>
    %174 = vector.shape_cast %173 : vector<1x8x8xf32> to vector<8x8xf32>
    %cst_69 = arith.constant dense<0.000000e+00> : vector<8x384xf32>
    %175 = tpu.matmul %174, %172, %cst_69 {dimension_numbers = #tpu.dot_dimension_numbers<[1], [0], [0], [1], [0, 0, 1, 1], [], []>} : vector<8x8xf32>, vector<8x384xf32>, vector<8x384xf32> -> vector<8x384xf32>
    %176 = arith.addf %171, %175 : vector<8x384xf32>
    %c1_i32_70 = arith.constant 1 : i32
    %177 = tpu.dynamic_rotate %158 by %c1_i32_70 dim 1 : vector<8x384xf32>, i32 -> vector<8x384xf32>
    %178 = vector.extract_strided_slice %159 {offsets = [3, 0, 0], sizes = [1, 8, 8], strides = [1, 1, 1]} : vector<9x8x8xf32> to vector<1x8x8xf32>
    %179 = vector.shape_cast %178 : vector<1x8x8xf32> to vector<8x8xf32>
    %cst_71 = arith.constant dense<0.000000e+00> : vector<8x384xf32>
    %180 = tpu.matmul %179, %177, %cst_71 {dimension_numbers = #tpu.dot_dimension_numbers<[1], [0], [0], [1], [0, 0, 1, 1], [], []>} : vector<8x8xf32>, vector<8x384xf32>, vector<8x384xf32> -> vector<8x384xf32>
    %181 = arith.addf %176, %180 : vector<8x384xf32>
    %182 = vector.extract_strided_slice %159 {offsets = [4, 0, 0], sizes = [1, 8, 8], strides = [1, 1, 1]} : vector<9x8x8xf32> to vector<1x8x8xf32>
    %183 = vector.shape_cast %182 : vector<1x8x8xf32> to vector<8x8xf32>
    %cst_72 = arith.constant dense<0.000000e+00> : vector<8x384xf32>
    %184 = tpu.matmul %183, %158, %cst_72 {dimension_numbers = #tpu.dot_dimension_numbers<[1], [0], [0], [1], [0, 0, 1, 1], [], []>} : vector<8x8xf32>, vector<8x384xf32>, vector<8x384xf32> -> vector<8x384xf32>
    %185 = arith.addf %181, %184 : vector<8x384xf32>
    %c383_i32_73 = arith.constant 383 : i32
    %186 = tpu.dynamic_rotate %158 by %c383_i32_73 dim 1 : vector<8x384xf32>, i32 -> vector<8x384xf32>
    %187 = vector.extract_strided_slice %159 {offsets = [5, 0, 0], sizes = [1, 8, 8], strides = [1, 1, 1]} : vector<9x8x8xf32> to vector<1x8x8xf32>
    %188 = vector.shape_cast %187 : vector<1x8x8xf32> to vector<8x8xf32>
    %cst_74 = arith.constant dense<0.000000e+00> : vector<8x384xf32>
    %189 = tpu.matmul %188, %186, %cst_74 {dimension_numbers = #tpu.dot_dimension_numbers<[1], [0], [0], [1], [0, 0, 1, 1], [], []>} : vector<8x8xf32>, vector<8x384xf32>, vector<8x384xf32> -> vector<8x384xf32>
    %190 = arith.addf %185, %189 : vector<8x384xf32>
    %c367_i32_75 = arith.constant 367 : i32
    %191 = tpu.dynamic_rotate %158 by %c367_i32_75 dim 1 : vector<8x384xf32>, i32 -> vector<8x384xf32>
    %192 = vector.extract_strided_slice %159 {offsets = [6, 0, 0], sizes = [1, 8, 8], strides = [1, 1, 1]} : vector<9x8x8xf32> to vector<1x8x8xf32>
    %193 = vector.shape_cast %192 : vector<1x8x8xf32> to vector<8x8xf32>
    %cst_76 = arith.constant dense<0.000000e+00> : vector<8x384xf32>
    %194 = tpu.matmul %193, %191, %cst_76 {dimension_numbers = #tpu.dot_dimension_numbers<[1], [0], [0], [1], [0, 0, 1, 1], [], []>} : vector<8x8xf32>, vector<8x384xf32>, vector<8x384xf32> -> vector<8x384xf32>
    %195 = arith.addf %190, %194 : vector<8x384xf32>
    %c366_i32_77 = arith.constant 366 : i32
    %196 = tpu.dynamic_rotate %158 by %c366_i32_77 dim 1 : vector<8x384xf32>, i32 -> vector<8x384xf32>
    %197 = vector.extract_strided_slice %159 {offsets = [7, 0, 0], sizes = [1, 8, 8], strides = [1, 1, 1]} : vector<9x8x8xf32> to vector<1x8x8xf32>
    %198 = vector.shape_cast %197 : vector<1x8x8xf32> to vector<8x8xf32>
    %cst_78 = arith.constant dense<0.000000e+00> : vector<8x384xf32>
    %199 = tpu.matmul %198, %196, %cst_78 {dimension_numbers = #tpu.dot_dimension_numbers<[1], [0], [0], [1], [0, 0, 1, 1], [], []>} : vector<8x8xf32>, vector<8x384xf32>, vector<8x384xf32> -> vector<8x384xf32>
    %200 = arith.addf %195, %199 : vector<8x384xf32>
    %c365_i32_79 = arith.constant 365 : i32
    %201 = tpu.dynamic_rotate %158 by %c365_i32_79 dim 1 : vector<8x384xf32>, i32 -> vector<8x384xf32>
    %202 = vector.extract_strided_slice %159 {offsets = [8, 0, 0], sizes = [1, 8, 8], strides = [1, 1, 1]} : vector<9x8x8xf32> to vector<1x8x8xf32>
    %203 = vector.shape_cast %202 : vector<1x8x8xf32> to vector<8x8xf32>
    %cst_80 = arith.constant dense<0.000000e+00> : vector<8x384xf32>
    %204 = tpu.matmul %203, %201, %cst_80 {dimension_numbers = #tpu.dot_dimension_numbers<[1], [0], [0], [1], [0, 0, 1, 1], [], []>} : vector<8x8xf32>, vector<8x384xf32>, vector<8x384xf32> -> vector<8x384xf32>
    %205 = arith.addf %200, %204 : vector<8x384xf32>
    %206 = arith.addf %205, %162 : vector<8x384xf32>
    %cst_81 = arith.constant 0.000000e+00 : f32
    %207 = vector.broadcast %cst_81 : f32 to vector<8x384xf32>
    %208 = arith.maximumf %206, %207 : vector<8x384xf32>
    %209 = arith.mulf %208, %2 : vector<8x384xf32>
    %210 = arith.addf %209, %158 : vector<8x384xf32>
    %c19_i32_82 = arith.constant 19 : i32
    %211 = tpu.dynamic_rotate %210 by %c19_i32_82 dim 1 : vector<8x384xf32>, i32 -> vector<8x384xf32>
    %212 = vector.extract_strided_slice %159 {offsets = [0, 0, 0], sizes = [1, 8, 8], strides = [1, 1, 1]} : vector<9x8x8xf32> to vector<1x8x8xf32>
    %213 = vector.shape_cast %212 : vector<1x8x8xf32> to vector<8x8xf32>
    %cst_83 = arith.constant dense<0.000000e+00> : vector<8x384xf32>
    %214 = tpu.matmul %213, %211, %cst_83 {dimension_numbers = #tpu.dot_dimension_numbers<[1], [0], [0], [1], [0, 0, 1, 1], [], []>} : vector<8x8xf32>, vector<8x384xf32>, vector<8x384xf32> -> vector<8x384xf32>
    %c18_i32_84 = arith.constant 18 : i32
    %215 = tpu.dynamic_rotate %210 by %c18_i32_84 dim 1 : vector<8x384xf32>, i32 -> vector<8x384xf32>
    %216 = vector.extract_strided_slice %159 {offsets = [1, 0, 0], sizes = [1, 8, 8], strides = [1, 1, 1]} : vector<9x8x8xf32> to vector<1x8x8xf32>
    %217 = vector.shape_cast %216 : vector<1x8x8xf32> to vector<8x8xf32>
    %cst_85 = arith.constant dense<0.000000e+00> : vector<8x384xf32>
    %218 = tpu.matmul %217, %215, %cst_85 {dimension_numbers = #tpu.dot_dimension_numbers<[1], [0], [0], [1], [0, 0, 1, 1], [], []>} : vector<8x8xf32>, vector<8x384xf32>, vector<8x384xf32> -> vector<8x384xf32>
    %219 = arith.addf %214, %218 : vector<8x384xf32>
    %c17_i32_86 = arith.constant 17 : i32
    %220 = tpu.dynamic_rotate %210 by %c17_i32_86 dim 1 : vector<8x384xf32>, i32 -> vector<8x384xf32>
    %221 = vector.extract_strided_slice %159 {offsets = [2, 0, 0], sizes = [1, 8, 8], strides = [1, 1, 1]} : vector<9x8x8xf32> to vector<1x8x8xf32>
    %222 = vector.shape_cast %221 : vector<1x8x8xf32> to vector<8x8xf32>
    %cst_87 = arith.constant dense<0.000000e+00> : vector<8x384xf32>
    %223 = tpu.matmul %222, %220, %cst_87 {dimension_numbers = #tpu.dot_dimension_numbers<[1], [0], [0], [1], [0, 0, 1, 1], [], []>} : vector<8x8xf32>, vector<8x384xf32>, vector<8x384xf32> -> vector<8x384xf32>
    %224 = arith.addf %219, %223 : vector<8x384xf32>
    %c1_i32_88 = arith.constant 1 : i32
    %225 = tpu.dynamic_rotate %210 by %c1_i32_88 dim 1 : vector<8x384xf32>, i32 -> vector<8x384xf32>
    %226 = vector.extract_strided_slice %159 {offsets = [3, 0, 0], sizes = [1, 8, 8], strides = [1, 1, 1]} : vector<9x8x8xf32> to vector<1x8x8xf32>
    %227 = vector.shape_cast %226 : vector<1x8x8xf32> to vector<8x8xf32>
    %cst_89 = arith.constant dense<0.000000e+00> : vector<8x384xf32>
    %228 = tpu.matmul %227, %225, %cst_89 {dimension_numbers = #tpu.dot_dimension_numbers<[1], [0], [0], [1], [0, 0, 1, 1], [], []>} : vector<8x8xf32>, vector<8x384xf32>, vector<8x384xf32> -> vector<8x384xf32>
    %229 = arith.addf %224, %228 : vector<8x384xf32>
    %230 = vector.extract_strided_slice %159 {offsets = [4, 0, 0], sizes = [1, 8, 8], strides = [1, 1, 1]} : vector<9x8x8xf32> to vector<1x8x8xf32>
    %231 = vector.shape_cast %230 : vector<1x8x8xf32> to vector<8x8xf32>
    %cst_90 = arith.constant dense<0.000000e+00> : vector<8x384xf32>
    %232 = tpu.matmul %231, %210, %cst_90 {dimension_numbers = #tpu.dot_dimension_numbers<[1], [0], [0], [1], [0, 0, 1, 1], [], []>} : vector<8x8xf32>, vector<8x384xf32>, vector<8x384xf32> -> vector<8x384xf32>
    %233 = arith.addf %229, %232 : vector<8x384xf32>
    %c383_i32_91 = arith.constant 383 : i32
    %234 = tpu.dynamic_rotate %210 by %c383_i32_91 dim 1 : vector<8x384xf32>, i32 -> vector<8x384xf32>
    %235 = vector.extract_strided_slice %159 {offsets = [5, 0, 0], sizes = [1, 8, 8], strides = [1, 1, 1]} : vector<9x8x8xf32> to vector<1x8x8xf32>
    %236 = vector.shape_cast %235 : vector<1x8x8xf32> to vector<8x8xf32>
    %cst_92 = arith.constant dense<0.000000e+00> : vector<8x384xf32>
    %237 = tpu.matmul %236, %234, %cst_92 {dimension_numbers = #tpu.dot_dimension_numbers<[1], [0], [0], [1], [0, 0, 1, 1], [], []>} : vector<8x8xf32>, vector<8x384xf32>, vector<8x384xf32> -> vector<8x384xf32>
    %238 = arith.addf %233, %237 : vector<8x384xf32>
    %c367_i32_93 = arith.constant 367 : i32
    %239 = tpu.dynamic_rotate %210 by %c367_i32_93 dim 1 : vector<8x384xf32>, i32 -> vector<8x384xf32>
    %240 = vector.extract_strided_slice %159 {offsets = [6, 0, 0], sizes = [1, 8, 8], strides = [1, 1, 1]} : vector<9x8x8xf32> to vector<1x8x8xf32>
    %241 = vector.shape_cast %240 : vector<1x8x8xf32> to vector<8x8xf32>
    %cst_94 = arith.constant dense<0.000000e+00> : vector<8x384xf32>
    %242 = tpu.matmul %241, %239, %cst_94 {dimension_numbers = #tpu.dot_dimension_numbers<[1], [0], [0], [1], [0, 0, 1, 1], [], []>} : vector<8x8xf32>, vector<8x384xf32>, vector<8x384xf32> -> vector<8x384xf32>
    %243 = arith.addf %238, %242 : vector<8x384xf32>
    %c366_i32_95 = arith.constant 366 : i32
    %244 = tpu.dynamic_rotate %210 by %c366_i32_95 dim 1 : vector<8x384xf32>, i32 -> vector<8x384xf32>
    %245 = vector.extract_strided_slice %159 {offsets = [7, 0, 0], sizes = [1, 8, 8], strides = [1, 1, 1]} : vector<9x8x8xf32> to vector<1x8x8xf32>
    %246 = vector.shape_cast %245 : vector<1x8x8xf32> to vector<8x8xf32>
    %cst_96 = arith.constant dense<0.000000e+00> : vector<8x384xf32>
    %247 = tpu.matmul %246, %244, %cst_96 {dimension_numbers = #tpu.dot_dimension_numbers<[1], [0], [0], [1], [0, 0, 1, 1], [], []>} : vector<8x8xf32>, vector<8x384xf32>, vector<8x384xf32> -> vector<8x384xf32>
    %248 = arith.addf %243, %247 : vector<8x384xf32>
    %c365_i32_97 = arith.constant 365 : i32
    %249 = tpu.dynamic_rotate %210 by %c365_i32_97 dim 1 : vector<8x384xf32>, i32 -> vector<8x384xf32>
    %250 = vector.extract_strided_slice %159 {offsets = [8, 0, 0], sizes = [1, 8, 8], strides = [1, 1, 1]} : vector<9x8x8xf32> to vector<1x8x8xf32>
    %251 = vector.shape_cast %250 : vector<1x8x8xf32> to vector<8x8xf32>
    %cst_98 = arith.constant dense<0.000000e+00> : vector<8x384xf32>
    %252 = tpu.matmul %251, %249, %cst_98 {dimension_numbers = #tpu.dot_dimension_numbers<[1], [0], [0], [1], [0, 0, 1, 1], [], []>} : vector<8x8xf32>, vector<8x384xf32>, vector<8x384xf32> -> vector<8x384xf32>
    %253 = arith.addf %248, %252 : vector<8x384xf32>
    %254 = arith.addf %253, %162 : vector<8x384xf32>
    %cst_99 = arith.constant 0.000000e+00 : f32
    %255 = vector.broadcast %cst_99 : f32 to vector<8x384xf32>
    %256 = arith.maximumf %254, %255 : vector<8x384xf32>
    %257 = arith.mulf %256, %2 : vector<8x384xf32>
    %258 = arith.addf %257, %158 : vector<8x384xf32>
    %c19_i32_100 = arith.constant 19 : i32
    %259 = tpu.dynamic_rotate %258 by %c19_i32_100 dim 1 : vector<8x384xf32>, i32 -> vector<8x384xf32>
    %260 = vector.extract_strided_slice %159 {offsets = [0, 0, 0], sizes = [1, 8, 8], strides = [1, 1, 1]} : vector<9x8x8xf32> to vector<1x8x8xf32>
    %261 = vector.shape_cast %260 : vector<1x8x8xf32> to vector<8x8xf32>
    %cst_101 = arith.constant dense<0.000000e+00> : vector<8x384xf32>
    %262 = tpu.matmul %261, %259, %cst_101 {dimension_numbers = #tpu.dot_dimension_numbers<[1], [0], [0], [1], [0, 0, 1, 1], [], []>} : vector<8x8xf32>, vector<8x384xf32>, vector<8x384xf32> -> vector<8x384xf32>
    %c18_i32_102 = arith.constant 18 : i32
    %263 = tpu.dynamic_rotate %258 by %c18_i32_102 dim 1 : vector<8x384xf32>, i32 -> vector<8x384xf32>
    %264 = vector.extract_strided_slice %159 {offsets = [1, 0, 0], sizes = [1, 8, 8], strides = [1, 1, 1]} : vector<9x8x8xf32> to vector<1x8x8xf32>
    %265 = vector.shape_cast %264 : vector<1x8x8xf32> to vector<8x8xf32>
    %cst_103 = arith.constant dense<0.000000e+00> : vector<8x384xf32>
    %266 = tpu.matmul %265, %263, %cst_103 {dimension_numbers = #tpu.dot_dimension_numbers<[1], [0], [0], [1], [0, 0, 1, 1], [], []>} : vector<8x8xf32>, vector<8x384xf32>, vector<8x384xf32> -> vector<8x384xf32>
    %267 = arith.addf %262, %266 : vector<8x384xf32>
    %c17_i32_104 = arith.constant 17 : i32
    %268 = tpu.dynamic_rotate %258 by %c17_i32_104 dim 1 : vector<8x384xf32>, i32 -> vector<8x384xf32>
    %269 = vector.extract_strided_slice %159 {offsets = [2, 0, 0], sizes = [1, 8, 8], strides = [1, 1, 1]} : vector<9x8x8xf32> to vector<1x8x8xf32>
    %270 = vector.shape_cast %269 : vector<1x8x8xf32> to vector<8x8xf32>
    %cst_105 = arith.constant dense<0.000000e+00> : vector<8x384xf32>
    %271 = tpu.matmul %270, %268, %cst_105 {dimension_numbers = #tpu.dot_dimension_numbers<[1], [0], [0], [1], [0, 0, 1, 1], [], []>} : vector<8x8xf32>, vector<8x384xf32>, vector<8x384xf32> -> vector<8x384xf32>
    %272 = arith.addf %267, %271 : vector<8x384xf32>
    %c1_i32_106 = arith.constant 1 : i32
    %273 = tpu.dynamic_rotate %258 by %c1_i32_106 dim 1 : vector<8x384xf32>, i32 -> vector<8x384xf32>
    %274 = vector.extract_strided_slice %159 {offsets = [3, 0, 0], sizes = [1, 8, 8], strides = [1, 1, 1]} : vector<9x8x8xf32> to vector<1x8x8xf32>
    %275 = vector.shape_cast %274 : vector<1x8x8xf32> to vector<8x8xf32>
    %cst_107 = arith.constant dense<0.000000e+00> : vector<8x384xf32>
    %276 = tpu.matmul %275, %273, %cst_107 {dimension_numbers = #tpu.dot_dimension_numbers<[1], [0], [0], [1], [0, 0, 1, 1], [], []>} : vector<8x8xf32>, vector<8x384xf32>, vector<8x384xf32> -> vector<8x384xf32>
    %277 = arith.addf %272, %276 : vector<8x384xf32>
    %278 = vector.extract_strided_slice %159 {offsets = [4, 0, 0], sizes = [1, 8, 8], strides = [1, 1, 1]} : vector<9x8x8xf32> to vector<1x8x8xf32>
    %279 = vector.shape_cast %278 : vector<1x8x8xf32> to vector<8x8xf32>
    %cst_108 = arith.constant dense<0.000000e+00> : vector<8x384xf32>
    %280 = tpu.matmul %279, %258, %cst_108 {dimension_numbers = #tpu.dot_dimension_numbers<[1], [0], [0], [1], [0, 0, 1, 1], [], []>} : vector<8x8xf32>, vector<8x384xf32>, vector<8x384xf32> -> vector<8x384xf32>
    %281 = arith.addf %277, %280 : vector<8x384xf32>
    %c383_i32_109 = arith.constant 383 : i32
    %282 = tpu.dynamic_rotate %258 by %c383_i32_109 dim 1 : vector<8x384xf32>, i32 -> vector<8x384xf32>
    %283 = vector.extract_strided_slice %159 {offsets = [5, 0, 0], sizes = [1, 8, 8], strides = [1, 1, 1]} : vector<9x8x8xf32> to vector<1x8x8xf32>
    %284 = vector.shape_cast %283 : vector<1x8x8xf32> to vector<8x8xf32>
    %cst_110 = arith.constant dense<0.000000e+00> : vector<8x384xf32>
    %285 = tpu.matmul %284, %282, %cst_110 {dimension_numbers = #tpu.dot_dimension_numbers<[1], [0], [0], [1], [0, 0, 1, 1], [], []>} : vector<8x8xf32>, vector<8x384xf32>, vector<8x384xf32> -> vector<8x384xf32>
    %286 = arith.addf %281, %285 : vector<8x384xf32>
    %c367_i32_111 = arith.constant 367 : i32
    %287 = tpu.dynamic_rotate %258 by %c367_i32_111 dim 1 : vector<8x384xf32>, i32 -> vector<8x384xf32>
    %288 = vector.extract_strided_slice %159 {offsets = [6, 0, 0], sizes = [1, 8, 8], strides = [1, 1, 1]} : vector<9x8x8xf32> to vector<1x8x8xf32>
    %289 = vector.shape_cast %288 : vector<1x8x8xf32> to vector<8x8xf32>
    %cst_112 = arith.constant dense<0.000000e+00> : vector<8x384xf32>
    %290 = tpu.matmul %289, %287, %cst_112 {dimension_numbers = #tpu.dot_dimension_numbers<[1], [0], [0], [1], [0, 0, 1, 1], [], []>} : vector<8x8xf32>, vector<8x384xf32>, vector<8x384xf32> -> vector<8x384xf32>
    %291 = arith.addf %286, %290 : vector<8x384xf32>
    %c366_i32_113 = arith.constant 366 : i32
    %292 = tpu.dynamic_rotate %258 by %c366_i32_113 dim 1 : vector<8x384xf32>, i32 -> vector<8x384xf32>
    %293 = vector.extract_strided_slice %159 {offsets = [7, 0, 0], sizes = [1, 8, 8], strides = [1, 1, 1]} : vector<9x8x8xf32> to vector<1x8x8xf32>
    %294 = vector.shape_cast %293 : vector<1x8x8xf32> to vector<8x8xf32>
    %cst_114 = arith.constant dense<0.000000e+00> : vector<8x384xf32>
    %295 = tpu.matmul %294, %292, %cst_114 {dimension_numbers = #tpu.dot_dimension_numbers<[1], [0], [0], [1], [0, 0, 1, 1], [], []>} : vector<8x8xf32>, vector<8x384xf32>, vector<8x384xf32> -> vector<8x384xf32>
    %296 = arith.addf %291, %295 : vector<8x384xf32>
    %c365_i32_115 = arith.constant 365 : i32
    %297 = tpu.dynamic_rotate %258 by %c365_i32_115 dim 1 : vector<8x384xf32>, i32 -> vector<8x384xf32>
    %298 = vector.extract_strided_slice %159 {offsets = [8, 0, 0], sizes = [1, 8, 8], strides = [1, 1, 1]} : vector<9x8x8xf32> to vector<1x8x8xf32>
    %299 = vector.shape_cast %298 : vector<1x8x8xf32> to vector<8x8xf32>
    %cst_116 = arith.constant dense<0.000000e+00> : vector<8x384xf32>
    %300 = tpu.matmul %299, %297, %cst_116 {dimension_numbers = #tpu.dot_dimension_numbers<[1], [0], [0], [1], [0, 0, 1, 1], [], []>} : vector<8x8xf32>, vector<8x384xf32>, vector<8x384xf32> -> vector<8x384xf32>
    %301 = arith.addf %296, %300 : vector<8x384xf32>
    %302 = arith.addf %301, %162 : vector<8x384xf32>
    %cst_117 = arith.constant 0.000000e+00 : f32
    %303 = vector.broadcast %cst_117 : f32 to vector<8x384xf32>
    %304 = arith.maximumf %302, %303 : vector<8x384xf32>
    %305 = arith.mulf %304, %2 : vector<8x384xf32>
    %306 = arith.addf %305, %11 : vector<8x384xf32>
    %c0_118 = arith.constant 0 : index
    %c0_119 = arith.constant 0 : index
    %307 = vector.load %arg9[%c0_118, %c0_119] : memref<8x384xf32, #tpu.memory_space<vmem>>, vector<8x384xf32>
    tpu.vector_store %arg9[%c0_118, %c0_119], %306 {strides = array<i32>} : memref<8x384xf32, #tpu.memory_space<vmem>>, vector<8x384xf32>,
    return
  }
  func.func @transform_0(%arg0: i32) -> (i32, i32) {
    %c0_i32 = arith.constant 0 : i32
    %c0_i32_0 = arith.constant 0 : i32
    return %c0_i32, %arg0 : i32, i32
  }
  func.func @transform_1(%arg0: i32) -> (i32, i32) {
    %c0_i32 = arith.constant 0 : i32
    %c0_i32_0 = arith.constant 0 : i32
    %c0_i32_1 = arith.constant 0 : i32
    return %c0_i32, %c0_i32_0 : i32, i32
  }
  func.func @transform_2(%arg0: i32) -> (i32, i32) {
    %c0_i32 = arith.constant 0 : i32
    %c0_i32_0 = arith.constant 0 : i32
    %c0_i32_1 = arith.constant 0 : i32
    return %c0_i32, %c0_i32_0 : i32, i32
  }
  func.func @transform_3(%arg0: i32) -> (i32, i32) {
    %c0_i32 = arith.constant 0 : i32
    %c0_i32_0 = arith.constant 0 : i32
    %c0_i32_1 = arith.constant 0 : i32
    return %c0_i32, %c0_i32_0 : i32, i32
  }
  func.func @transform_4(%arg0: i32) -> (i32, i32, i32) {
    %c0_i32 = arith.constant 0 : i32
    %c0_i32_0 = arith.constant 0 : i32
    %c0_i32_1 = arith.constant 0 : i32
    %c0_i32_2 = arith.constant 0 : i32
    return %c0_i32, %c0_i32_0, %c0_i32_1 : i32, i32, i32
  }
  func.func @transform_5(%arg0: i32) -> (i32, i32) {
    %c0_i32 = arith.constant 0 : i32
    %c0_i32_0 = arith.constant 0 : i32
    %c0_i32_1 = arith.constant 0 : i32
    return %c0_i32, %c0_i32_0 : i32, i32
  }
  func.func @transform_6(%arg0: i32) -> (i32, i32, i32) {
    %c0_i32 = arith.constant 0 : i32
    %c0_i32_0 = arith.constant 0 : i32
    %c0_i32_1 = arith.constant 0 : i32
    %c0_i32_2 = arith.constant 0 : i32
    return %c0_i32, %c0_i32_0, %c0_i32_1 : i32, i32, i32
  }
  func.func @transform_7(%arg0: i32) -> (i32, i32) {
    %c0_i32 = arith.constant 0 : i32
    %c0_i32_0 = arith.constant 0 : i32
    %c0_i32_1 = arith.constant 0 : i32
    return %c0_i32, %c0_i32_0 : i32, i32
  }
  func.func @transform_8(%arg0: i32) -> (i32, i32) {
    %c0_i32 = arith.constant 0 : i32
    %c0_i32_0 = arith.constant 0 : i32
    return %c0_i32, %arg0 : i32, i32
  }
}

</mosaic_0001>

<llo_original>
// kernel: recurrent_residual_block.1
$region0: #{recurrent_residual_block.1}
  #allocation0 [shape = 'u32[]', space=smem, size = 0x4, offset = 0x4, fixed_abs, tag = 'smem constant byte address 0x4 - core index']
  #allocation1 [shape = 'u32[72,128]{1,0:T(1,128)}', space=vmem, size = 0x9000, scoped, tag = 'internal scratch']
  %s0 = inlined_call_operand.vmem [shape: f32[4,768], index: 0, kind: input, shape index: {}]
  %s1 = inlined_call_operand.vmem [shape: f32[1,384], index: 1, kind: input, shape index: {}]
  %s2 = inlined_call_operand.vmem [shape: f32[8,4], index: 2, kind: input, shape index: {}]
  %s3 = inlined_call_operand.vmem [shape: f32[8,1], index: 3, kind: input, shape index: {}]
  %s4 = inlined_call_operand.vmem [shape: f32[9,8,8], index: 4, kind: input, shape index: {}]
  %s5 = inlined_call_operand.vmem [shape: f32[8,1], index: 5, kind: input, shape index: {}]
  %s6 = inlined_call_operand.vmem [shape: f32[9,8,8], index: 6, kind: input, shape index: {}]
  %s7 = inlined_call_operand.vmem [shape: f32[8,1], index: 7, kind: input, shape index: {}]
  %s8 = inlined_call_operand.vmem [shape: f32[8,768], index: 8, kind: output, shape index: {}]
  %s9 = sld [smem:[#allocation0]]
  $region65: #{recurrent_residual_block.1} parent=0
    _
  %s11 = ssub.s32 1, %s9
  %s12 = scalar_select 0, %s11, %s9
  loop: start=0, step=1, limit=4
  $region2: #{recurrent_residual_block.1} parent=0 // loop_pre_header
    _
  $region3: #{recurrent_residual_block.1} parent=0 // loop_header
    %s14 = sphi 0, %s18
    %p15 = scmp.ge.s32.totalorder %s14, 4
    %s24 = sphi 0, %s26
    %s27 = sphi 0, %s24
    %s28 = sphi 0, %s27
    %s44 = sphi 0, %s28
    %s48 = sphi 0, %s48
    %s50 = sphi 0, %s48
    %s51 = sphi 0, %s50
    %s65 = sphi 0, %s51
    %s69 = sphi 0, %s69
    %s71 = sphi 0, %s69
    %s72 = sphi 0, %s71
    %s86 = sphi 0, %s72
    %s90 = sphi 0, %s90
    %s92 = sphi 0, %s90
    %s93 = sphi 0, %s92
    %s107 = sphi 0, %s93
    %s111 = sphi 0, %s111
    %s113 = sphi 0, %s111
    %s114 = sphi 0, %s113
    %s128 = sphi 0, %s114
    %s132 = sphi 0, %s132
    %s134 = sphi 0, %s132
    %s135 = sphi 0, %s134
    %s149 = sphi 0, %s135
    %s153 = sphi 0, %s153
    %s155 = sphi 0, %s153
    %s156 = sphi 0, %s155
    %s170 = sphi 0, %s156
    %s174 = sphi 0, %s174
    %s176 = sphi 0, %s174
    %s177 = sphi 0, %s176
    %s191 = sphi 0, %s177
    %s197 = sphi 0, %s199
    %s200 = sphi 0, %s197
    %s201 = sphi 0, %s200
    %s217 = sphi 0, %s201
  $region4: #{recurrent_residual_block.1} parent=0 // loop_header_branch
    %17 = sbr.rel (%p15) target = $region8
  $region5: #{recurrent_residual_block.1} parent=0 // loop_body
    %s19 = ssub.s32 %s14, 1
    %s20 = ssub.s32 %s14, 2
    %s21 = sadd.s32 %s14, 1
    %s22 = ssub.s32 %s14, %s21
    %p23 = scmp.eq.s32.totalorder %s22, 0
    %s25 = sadd.s32 %s24, 1
    %s26 = scalar_select %p23, %s24, %s25
    %p29 = pneg %p23
    %p30 = scmp.eq.s32.totalorder %s14, 1
    %p31 = por %p29, %p30
    %p32 = scmp.ne.s32.totalorder %s24, %s27
    %p33 = scmp.eq.s32.totalorder %s14, 0
    %p34 = por %p32, %p33
    %p35 = scmp.ne.s32.totalorder %s24, %s27
    %p36 = scmp.eq.s32.totalorder %s19, 1
    %p37 = por %p35, %p36
    %p38 = scmp.ne.s32.totalorder %s27, %s28
    %p39 = scmp.eq.s32.totalorder %s19, 0
    %p40 = por %p38, %p39
    %p41 = scmp.ne.s32.totalorder %s27, %s28
    %p42 = scmp.eq.s32.totalorder %s20, 1
    %p43 = por %p41, %p42
    %p45 = scmp.ne.s32.totalorder %s28, %s44
    %p46 = scmp.eq.s32.totalorder %s20, 0
    %p47 = por %p45, %p46
    %s49 = sadd.s32 %s48, 1
    %p52 = scmp.eq.s32.totalorder %s14, 1
    %p53 = scmp.ne.s32.totalorder %s48, %s50
    %p54 = scmp.eq.s32.totalorder %s14, 0
    %p55 = por %p53, %p54
    %p56 = scmp.ne.s32.totalorder %s48, %s50
    %p57 = scmp.eq.s32.totalorder %s19, 1
    %p58 = por %p56, %p57
    %p59 = scmp.ne.s32.totalorder %s50, %s51
    %p60 = scmp.eq.s32.totalorder %s19, 0
    %p61 = por %p59, %p60
    %p62 = scmp.ne.s32.totalorder %s50, %s51
    %p63 = scmp.eq.s32.totalorder %s20, 1
    %p64 = por %p62, %p63
    %p66 = scmp.ne.s32.totalorder %s51, %s65
    %p67 = scmp.eq.s32.totalorder %s20, 0
    %p68 = por %p66, %p67
    %s70 = sadd.s32 %s69, 1
    %p73 = scmp.eq.s32.totalorder %s14, 1
    %p74 = scmp.ne.s32.totalorder %s69, %s71
    %p75 = scmp.eq.s32.totalorder %s14, 0
    %p76 = por %p74, %p75
    %p77 = scmp.ne.s32.totalorder %s69, %s71
    %p78 = scmp.eq.s32.totalorder %s19, 1
    %p79 = por %p77, %p78
    %p80 = scmp.ne.s32.totalorder %s71, %s72
    %p81 = scmp.eq.s32.totalorder %s19, 0
    %p82 = por %p80, %p81
    %p83 = scmp.ne.s32.totalorder %s71, %s72
    %p84 = scmp.eq.s32.totalorder %s20, 1
    %p85 = por %p83, %p84
    %p87 = scmp.ne.s32.totalorder %s72, %s86
    %p88 = scmp.eq.s32.totalorder %s20, 0
    %p89 = por %p87, %p88
    %s91 = sadd.s32 %s90, 1
    %p94 = scmp.eq.s32.totalorder %s14, 1
    %p95 = scmp.ne.s32.totalorder %s90, %s92
    %p96 = scmp.eq.s32.totalorder %s14, 0
    %p97 = por %p95, %p96
    %p98 = scmp.ne.s32.totalorder %s90, %s92
    %p99 = scmp.eq.s32.totalorder %s19, 1
    %p100 = por %p98, %p99
    %p101 = scmp.ne.s32.totalorder %s92, %s93
    %p102 = scmp.eq.s32.totalorder %s19, 0
    %p103 = por %p101, %p102
    %p104 = scmp.ne.s32.totalorder %s92, %s93
    %p105 = scmp.eq.s32.totalorder %s20, 1
    %p106 = por %p104, %p105
    %p108 = scmp.ne.s32.totalorder %s93, %s107
    %p109 = scmp.eq.s32.totalorder %s20, 0
    %p110 = por %p108, %p109
    %s112 = sadd.s32 %s111, 1
    %p115 = scmp.eq.s32.totalorder %s14, 1
    %p116 = scmp.ne.s32.totalorder %s111, %s113
    %p117 = scmp.eq.s32.totalorder %s14, 0
    %p118 = por %p116, %p117
    %p119 = scmp.ne.s32.totalorder %s111, %s113
    %p120 = scmp.eq.s32.totalorder %s19, 1
    %p121 = por %p119, %p120
    %p122 = scmp.ne.s32.totalorder %s113, %s114
    %p123 = scmp.eq.s32.totalorder %s19, 0
    %p124 = por %p122, %p123
    %p125 = scmp.ne.s32.totalorder %s113, %s114
    %p126 = scmp.eq.s32.totalorder %s20, 1
    %p127 = por %p125, %p126
    %p129 = scmp.ne.s32.totalorder %s114, %s128
    %p130 = scmp.eq.s32.totalorder %s20, 0
    %p131 = por %p129, %p130
    %s133 = sadd.s32 %s132, 1
    %p136 = scmp.eq.s32.totalorder %s14, 1
    %p137 = scmp.ne.s32.totalorder %s132, %s134
    %p138 = scmp.eq.s32.totalorder %s14, 0
    %p139 = por %p137, %p138
    %p140 = scmp.ne.s32.totalorder %s132, %s134
    %p141 = scmp.eq.s32.totalorder %s19, 1
    %p142 = por %p140, %p141
    %p143 = scmp.ne.s32.totalorder %s134, %s135
    %p144 = scmp.eq.s32.totalorder %s19, 0
    %p145 = por %p143, %p144
    %p146 = scmp.ne.s32.totalorder %s134, %s135
    %p147 = scmp.eq.s32.totalorder %s20, 1
    %p148 = por %p146, %p147
    %p150 = scmp.ne.s32.totalorder %s135, %s149
    %p151 = scmp.eq.s32.totalorder %s20, 0
    %p152 = por %p150, %p151
    %s154 = sadd.s32 %s153, 1
    %p157 = scmp.eq.s32.totalorder %s14, 1
    %p158 = scmp.ne.s32.totalorder %s153, %s155
    %p159 = scmp.eq.s32.totalorder %s14, 0
    %p160 = por %p158, %p159
    %p161 = scmp.ne.s32.totalorder %s153, %s155
    %p162 = scmp.eq.s32.totalorder %s19, 1
    %p163 = por %p161, %p162
    %p164 = scmp.ne.s32.totalorder %s155, %s156
    %p165 = scmp.eq.s32.totalorder %s19, 0
    %p166 = por %p164, %p165
    %p167 = scmp.ne.s32.totalorder %s155, %s156
    %p168 = scmp.eq.s32.totalorder %s20, 1
    %p169 = por %p167, %p168
    %p171 = scmp.ne.s32.totalorder %s156, %s170
    %p172 = scmp.eq.s32.totalorder %s20, 0
    %p173 = por %p171, %p172
    %s175 = sadd.s32 %s174, 1
    %p178 = scmp.eq.s32.totalorder %s14, 1
    %p179 = scmp.ne.s32.totalorder %s174, %s176
    %p180 = scmp.eq.s32.totalorder %s14, 0
    %p181 = por %p179, %p180
    %p182 = scmp.ne.s32.totalorder %s174, %s176
    %p183 = scmp.eq.s32.totalorder %s19, 1
    %p184 = por %p182, %p183
    %p185 = scmp.ne.s32.totalorder %s176, %s177
    %p186 = scmp.eq.s32.totalorder %s19, 0
    %p187 = por %p185, %p186
    %p188 = scmp.ne.s32.totalorder %s176, %s177
    %p189 = scmp.eq.s32.totalorder %s20, 1
    %p190 = por %p188, %p189
    %p192 = scmp.ne.s32.totalorder %s177, %s191
    %p193 = scmp.eq.s32.totalorder %s20, 0
    %p194 = por %p192, %p193
    %s195 = ssub.s32 %s14, %s21
    %p196 = scmp.eq.s32.totalorder %s195, 0
    %s198 = sadd.s32 %s197, 1
    %s199 = scalar_select %p196, %s197, %s198
    %p202 = pneg %p196
    %p203 = scmp.eq.s32.totalorder %s14, 1
    %p204 = por %p202, %p203
    %p205 = scmp.ne.s32.totalorder %s197, %s200
    %p206 = scmp.eq.s32.totalorder %s14, 0
    %p207 = por %p205, %p206
    %p208 = scmp.ne.s32.totalorder %s197, %s200
    %p209 = scmp.eq.s32.totalorder %s19, 1
    %p210 = por %p208, %p209
    %p211 = scmp.ne.s32.totalorder %s200, %s201
    %p212 = scmp.eq.s32.totalorder %s19, 0
    %p213 = por %p211, %p212
    %p214 = scmp.ne.s32.totalorder %s200, %s201
    %p215 = scmp.eq.s32.totalorder %s20, 1
    %p216 = por %p214, %p215
    %p218 = scmp.ne.s32.totalorder %s201, %s217
    %p219 = scmp.eq.s32.totalorder %s20, 0
    %p220 = por %p218, %p219
    %p221 = scmp.le.s32.totalorder 1, %s14
    %p222 = scmp.lt.s32.totalorder %s14, 3
    %p223 = pnand %p221, %p222
    %p224 = pneg %p223
    // Predicated region
    $region9: #{recurrent_residual_block.1} parent=5 // pred_check
      _
    $region10: #{recurrent_residual_block.1} parent=5 // pred_check_branch
      %226 = sbr.rel (%p223) target = $region12
    $region11: #{recurrent_residual_block.1} parent=5 // pred_region
      %s227 = ssub.s32 %s14, 1
      // Predicated region
      $region13: #{recurrent_residual_block.1} parent=11 // pred_check
        %p228 = pneg %p61
      $region14: #{recurrent_residual_block.1} parent=11 // pred_check_branch
        %230 = sbr.rel (%p228) target = $region16
      $region15: #{recurrent_residual_block.1} parent=11 // pred_region
        _
      $region16: #{recurrent_residual_block.1} parent=11 // pred_fallthru
        _
      // Predicated region
      $region17: #{recurrent_residual_block.1} parent=11 // pred_check
        %p231 = pneg %p82
      $region18: #{recurrent_residual_block.1} parent=11 // pred_check_branch
        %233 = sbr.rel (%p231) target = $region20
      $region19: #{recurrent_residual_block.1} parent=11 // pred_region
        _
      $region20: #{recurrent_residual_block.1} parent=11 // pred_fallthru
        _
      // Predicated region
      $region21: #{recurrent_residual_block.1} parent=11 // pred_check
        %p234 = pneg %p103
      $region22: #{recurrent_residual_block.1} parent=11 // pred_check_branch
        %236 = sbr.rel (%p234) target = $region24
      $region23: #{recurrent_residual_block.1} parent=11 // pred_region
        _
      $region24: #{recurrent_residual_block.1} parent=11 // pred_fallthru
        _
      // Predicated region
      $region25: #{recurrent_residual_block.1} parent=11 // pred_check
        %p237 = pneg %p124
      $region26: #{recurrent_residual_block.1} parent=11 // pred_check_branch
        %239 = sbr.rel (%p237) target = $region28
      $region27: #{recurrent_residual_block.1} parent=11 // pred_region
        _
      $region28: #{recurrent_residual_block.1} parent=11 // pred_fallthru
        _
      // Predicated region
      $region29: #{recurrent_residual_block.1} parent=11 // pred_check
        %p240 = pneg %p145
      $region30: #{recurrent_residual_block.1} parent=11 // pred_check_branch
        %242 = sbr.rel (%p240) target = $region32
      $region31: #{recurrent_residual_block.1} parent=11 // pred_region
        _
      $region32: #{recurrent_residual_block.1} parent=11 // pred_fallthru
        _
      // Predicated region
      $region33: #{recurrent_residual_block.1} parent=11 // pred_check
        %p243 = pneg %p166
      $region34: #{recurrent_residual_block.1} parent=11 // pred_check_branch
        %245 = sbr.rel (%p243) target = $region36
      $region35: #{recurrent_residual_block.1} parent=11 // pred_region
        _
      $region36: #{recurrent_residual_block.1} parent=11 // pred_fallthru
        _
      // Predicated region
      $region37: #{recurrent_residual_block.1} parent=11 // pred_check
        %p246 = pneg %p187
      $region38: #{recurrent_residual_block.1} parent=11 // pred_check_branch
        %248 = sbr.rel (%p246) target = $region40
      $region39: #{recurrent_residual_block.1} parent=11 // pred_region
        _
      $region40: #{recurrent_residual_block.1} parent=11 // pred_fallthru
        _
    $region12: #{recurrent_residual_block.1} parent=5 // pred_fallthru
      _
    %p249 = scmp.lt.s32.totalorder %s14, 2
    // Predicated region
    $region41: #{recurrent_residual_block.1} parent=5 // pred_check
      %p250 = pneg %p249
    $region42: #{recurrent_residual_block.1} parent=5 // pred_check_branch
      %252 = sbr.rel (%p250) target = $region44
    $region43: #{recurrent_residual_block.1} parent=5 // pred_region
      // Predicated region
      $region45: #{recurrent_residual_block.1} parent=43 // pred_check
        %p253 = pneg %p34
      $region46: #{recurrent_residual_block.1} parent=43 // pred_check_branch
        %255 = sbr.rel (%p253) target = $region48
      $region47: #{recurrent_residual_block.1} parent=43 // pred_region
        %s256 = smul.u32 3, %s14
        %p257 = scmp.lt.s32.totalorder %s256, 5
        %s258 = scalar_select %p257, %s256, 5
        %s259 = smul.addr %s258, 4
        %s260 = scalar_lea.vmem %s0, %s259
        %s261 = smul.u32 3, %s14
      $region48: #{recurrent_residual_block.1} parent=43 // pred_fallthru
        _
    $region44: #{recurrent_residual_block.1} parent=5 // pred_fallthru
      _
    %p262 = scmp.le.s32.totalorder 1, %s14
    %p263 = scmp.lt.s32.totalorder %s14, 3
    %p264 = pnand %p262, %p263
    %p265 = pneg %p264
    // Predicated region
    $region49: #{recurrent_residual_block.1} parent=5 // pred_check
      _
    $region50: #{recurrent_residual_block.1} parent=5 // pred_check_branch
      %267 = sbr.rel (%p264) target = $region52
    $region51: #{recurrent_residual_block.1} parent=5 // pred_region
      %s268 = ssub.s32 %s14, 1
      %s269 = smul.u32 3, %s19
      %p270 = scmp.lt.s32.totalorder %s269, 5
      %s271 = scalar_select %p270, %s269, 5
      %s272 = smul.addr %s271, 4
      %s273 = scalar_lea.vmem %s0, %s272
      %p274 = pneg %p40
      %p275 = pneg %p37
      %p276 = pneg %p61
      %p277 = pneg %p58
      %p278 = pneg %p82
      %p279 = pneg %p79
      %p280 = pneg %p103
      %p281 = pneg %p100
      %p282 = pneg %p124
      %p283 = pneg %p121
      %p284 = pneg %p145
      %p285 = pneg %p142
      %p286 = pneg %p166
      %p287 = pneg %p163
      %p288 = pneg %p187
      %p289 = pneg %p184
      %p290 = pneg %p213
      %p291 = pneg %p210
      %s292 = smul.u32 3, %s19
      %p293 = scmp.lt.s32.totalorder %s292, 5
      %s294 = scalar_select %p293, %s292, 5
      %s295 = smul.addr %s294, 8
      %s296 = scalar_lea.vmem %s8, %s295
      %s297 = smul.u32 3, %s19
      %p298 = scmp.lt.s32.totalorder %s297, 5
      %s299 = scalar_select %p298, %s297, 5
      %s300 = smul.addr %s299, 4
      %s301 = scalar_lea.vmem %s0, %s300
      %s302 = smul.u32 3, %s19
      %s303 = smul.u32 3, %s19
      %p304 = scmp.lt.s32.totalorder %s303, 5
      %s305 = scalar_select %p304, %s303, 5
      %s306 = smul.addr %s305, 8
      %s307 = scalar_lea.vmem %s8, %s306
      %s308 = smul.u32 3, %s19
      %v309 = vld [vmem:[%s1] sm:$0x7]
      %v311 = vperm.slane %v309, 0
      %v312 = vperm.slane %v309, 1
      %v313 = vperm.slane %v309, 2
      %v317 = vld [vmem:[%s2] sm:$0xff]
      %v318 = vld [vmem:[%s301] sm:$0xff]
      %v319 = vld [vmem:[%s301 + $0x8] sm:$0xf]
      %v320 = vld [vmem:[%s3] sm:$0xff]
      %322 = vset.pattern.permute.xlu0 0
      %323 = vperm.xlu0 %322, %v320
      %v324 = vpop.permute.xlu0 %323
      %328 = vst [vmem:[#allocation1] ss:$2 sm:$0xff] %v318
      %s329 = scalar_lea.vmem [#allocation1], 16
      %330 = vst [vmem:[%s329] ss:$2 sm:$0xff] %v319
      %v331 = vld.sshfl [vmem:[#allocation1] sm:$0xff pattern:$0x75316420]
      %v332 = vld.sshfl [vmem:[#allocation1 + $0x8] sm:$0xff pattern:$0x75316420]
      %v333 = vld.sshfl [vmem:[#allocation1 + $0x10] sm:$0xff pattern:$0x75316420]
      %vm334 = vcmask 31744
      %v336 = vsel %vm334, %v317, 0
      %vm338 = vcmask 1043456
      %v339 = vsel %vm338, %v331, 0
      %v341 = vsel %vm338, %v332, 0
      %v343 = vsel %vm338, %v333, 0
      %345 = vmatpush.msra.mxu0 0.0
      %346 = vmatpush.msra.mxu0 0.0
      %347 = vmatpush.msra.mxu0 0.0
      %348 = vmatpush.msra.mxu0 0.0
      %349 = vmatpush.msra.mxu0 0.0
      %350 = vmatpush.msra.mxu0 0.0
      %351 = vmatpush.msra.mxu0 0.0
      %352 = vmatpush.msra.mxu0 0.0
      %353 = vmatpush.msra.mxu0 0.0
      %354 = vmatpush.msra.mxu0 0.0
      %355 = vmatpush.msra.mxu0 0.0
      %356 = vmatpush.msra.mxu0 0.0
      %357 = vmatpush.msra.mxu0 0.0
      %358 = vmatpush.msra.mxu0 0.0
      %359 = vmatpush.msra.mxu0 0.0
      %360 = vmatpush.msra.mxu0 %v339
      %361 = vmatmul.f32.gmra.mxu0 %v336
      %v362 = vpop.f32.mrf.mxu0
      %v363 = vadd.f32 %v324, %v362
      %364 = vdwg.mxu0
      %365 = vmatpush.msra.mxu0 0.0
      %366 = vmatpush.msra.mxu0 0.0
      %367 = vmatpush.msra.mxu0 0.0
      %368 = vmatpush.msra.mxu0 0.0
      %369 = vmatpush.msra.mxu0 0.0
      %370 = vmatpush.msra.mxu0 0.0
      %371 = vmatpush.msra.mxu0 0.0
      %372 = vmatpush.msra.mxu0 0.0
      %373 = vmatpush.msra.mxu0 0.0
      %374 = vmatpush.msra.mxu0 0.0
      %375 = vmatpush.msra.mxu0 0.0
      %376 = vmatpush.msra.mxu0 0.0
      %377 = vmatpush.msra.mxu0 0.0
      %378 = vmatpush.msra.mxu0 0.0
      %379 = vmatpush.msra.mxu0 0.0
      %380 = vmatpush.msra.mxu0 %v341
      %381 = vmatmul.f32.gmra.mxu0 %v336
      %v382 = vpop.f32.mrf.mxu0
      %v383 = vadd.f32 %v324, %v382
      %384 = vdwg.mxu0
      %385 = vmatpush.msra.mxu0 0.0
      %386 = vmatpush.msra.mxu0 0.0
      %387 = vmatpush.msra.mxu0 0.0
      %388 = vmatpush.msra.mxu0 0.0
      %389 = vmatpush.msra.mxu0 0.0
      %390 = vmatpush.msra.mxu0 0.0
      %391 = vmatpush.msra.mxu0 0.0
      %392 = vmatpush.msra.mxu0 0.0
      %393 = vmatpush.msra.mxu0 0.0
      %394 = vmatpush.msra.mxu0 0.0
      %395 = vmatpush.msra.mxu0 0.0
      %396 = vmatpush.msra.mxu0 0.0
      %397 = vmatpush.msra.mxu0 0.0
      %398 = vmatpush.msra.mxu0 0.0
      %399 = vmatpush.msra.mxu0 0.0
      %400 = vmatpush.msra.mxu0 %v343
      %401 = vmatmul.f32.gmra.mxu0 %v336
      %v402 = vpop.f32.mrf.mxu0
      %v403 = vadd.f32 %v324, %v402
      %404 = vdwg.mxu0
      %v405 = vmax.f32 %v363, 0.0
      %v406 = vmax.f32 %v383, 0.0
      %v407 = vmax.f32 %v403, 0.0
      %v408 = vmul.f32 %v405, %v311
      %v409 = vmul.f32 %v406, %v312
      %v410 = vmul.f32 %v407, %v313
      %v411 = vld [vmem:[%s4] sm:$0xff]
      %v412 = vld [vmem:[%s4 + $0x8] sm:$0xff]
      %v413 = vld [vmem:[%s4 + $0x10] sm:$0xff]
      %v414 = vld [vmem:[%s4 + $0x18] sm:$0xff]
      %v415 = vld [vmem:[%s4 + $0x20] sm:$0xff]
      %v416 = vld [vmem:[%s4 + $0x28] sm:$0xff]
      %v417 = vld [vmem:[%s4 + $0x30] sm:$0xff]
      %v418 = vld [vmem:[%s4 + $0x38] sm:$0xff]
      %v419 = vld [vmem:[%s4 + $0x40] sm:$0xff]
      %v420 = vld [vmem:[%s5] sm:$0xff]
      %422 = vset.pattern.permute.xlu0 0
      %423 = vperm.xlu0 %422, %v420
      %v424 = vpop.permute.xlu0 %423
      %426 = vrot.lane.b32.xlu0 %v408, 19
      %v427 = vpop.permute.xlu0 %426
      %428 = vrot.lane.b32.xlu0 %v409, 19
      %v429 = vpop.permute.xlu0 %428
      %430 = vrot.lane.b32.xlu0 %v410, 19
      %v431 = vpop.permute.xlu0 %430
      %v432 = vlaneseq
      %v433 = vand.u32 %v432, 127
      %vm434 = vcmp.lt.s32.totalorder %v433, 19
      %v435 = vsel %vm434, %v429, %v431
      %v436 = vsel %vm434, %v427, %v429
      %v437 = vsel %vm434, %v431, %v427
      %438 = vrot.lane.b32.xlu0 %v408, 18
      %v439 = vpop.permute.xlu0 %438
      %440 = vrot.lane.b32.xlu0 %v409, 18
      %v441 = vpop.permute.xlu0 %440
      %442 = vrot.lane.b32.xlu0 %v410, 18
      %v443 = vpop.permute.xlu0 %442
      %vm444 = vcmp.lt.s32.totalorder %v433, 18
      %v445 = vsel %vm444, %v441, %v443
      %v446 = vsel %vm444, %v439, %v441
      %v447 = vsel %vm444, %v443, %v439
      %vm448 = vcmask 64512
      %v450 = vsel %vm448, %v412, 0
      %452 = vmatpush.msra.mxu0 0.0
      %453 = vmatpush.msra.mxu0 0.0
      %454 = vmatpush.msra.mxu0 0.0
      %455 = vmatpush.msra.mxu0 0.0
      %456 = vmatpush.msra.mxu0 0.0
      %457 = vmatpush.msra.mxu0 0.0
      %458 = vmatpush.msra.mxu0 0.0
      %459 = vmatpush.msra.mxu0 0.0
      %460 = vmatpush.msra.mxu0 0.0
      %461 = vmatpush.msra.mxu0 0.0
      %462 = vmatpush.msra.mxu0 0.0
      %463 = vmatpush.msra.mxu0 0.0
      %464 = vmatpush.msra.mxu0 0.0
      %465 = vmatpush.msra.mxu0 0.0
      %466 = vmatpush.msra.mxu0 0.0
      %467 = vmatpush.msra.mxu0 %v447
      %468 = vmatmul.f32.gmra.mxu0 %v450
      %v469 = vpop.f32.mrf.mxu0
      %v470 = vadd.f32 0.0, %v469
      %471 = vdwg.mxu0
      %472 = vmatpush.msra.mxu0 0.0
      %473 = vmatpush.msra.mxu0 0.0
      %474 = vmatpush.msra.mxu0 0.0
      %475 = vmatpush.msra.mxu0 0.0
      %476 = vmatpush.msra.mxu0 0.0
      %477 = vmatpush.msra.mxu0 0.0
      %478 = vmatpush.msra.mxu0 0.0
      %479 = vmatpush.msra.mxu0 0.0
      %480 = vmatpush.msra.mxu0 0.0
      %481 = vmatpush.msra.mxu0 0.0
      %482 = vmatpush.msra.mxu0 0.0
      %483 = vmatpush.msra.mxu0 0.0
      %484 = vmatpush.msra.mxu0 0.0
      %485 = vmatpush.msra.mxu0 0.0
      %486 = vmatpush.msra.mxu0 0.0
      %487 = vmatpush.msra.mxu0 %v446
      %488 = vmatmul.f32.gmra.mxu0 %v450
      %v489 = vpop.f32.mrf.mxu0
      %v490 = vadd.f32 0.0, %v489
      %491 = vdwg.mxu0
      %492 = vmatpush.msra.mxu0 0.0
      %493 = vmatpush.msra.mxu0 0.0
      %494 = vmatpush.msra.mxu0 0.0
      %495 = vmatpush.msra.mxu0 0.0
      %496 = vmatpush.msra.mxu0 0.0
      %497 = vmatpush.msra.mxu0 0.0
      %498 = vmatpush.msra.mxu0 0.0
      %499 = vmatpush.msra.mxu0 0.0
      %500 = vmatpush.msra.mxu0 0.0
      %501 = vmatpush.msra.mxu0 0.0
      %502 = vmatpush.msra.mxu0 0.0
      %503 = vmatpush.msra.mxu0 0.0
      %504 = vmatpush.msra.mxu0 0.0
      %505 = vmatpush.msra.mxu0 0.0
      %506 = vmatpush.msra.mxu0 0.0
      %507 = vmatpush.msra.mxu0 %v445
      %508 = vmatmul.f32.gmra.mxu0 %v450
      %v509 = vpop.f32.mrf.mxu0
      %v510 = vadd.f32 0.0, %v509
      %511 = vdwg.mxu0
      %v513 = vsel %vm448, %v411, 0
      %515 = vmatpush.msra.mxu0 0.0
      %516 = vmatpush.msra.mxu0 0.0
      %517 = vmatpush.msra.mxu0 0.0
      %518 = vmatpush.msra.mxu0 0.0
      %519 = vmatpush.msra.mxu0 0.0
      %520 = vmatpush.msra.mxu0 0.0
      %521 = vmatpush.msra.mxu0 0.0
      %522 = vmatpush.msra.mxu0 0.0
      %523 = vmatpush.msra.mxu0 0.0
      %524 = vmatpush.msra.mxu0 0.0
      %525 = vmatpush.msra.mxu0 0.0
      %526 = vmatpush.msra.mxu0 0.0
      %527 = vmatpush.msra.mxu0 0.0
      %528 = vmatpush.msra.mxu0 0.0
      %529 = vmatpush.msra.mxu0 0.0
      %530 = vmatpush.msra.mxu0 %v437
      %531 = vmatmul.f32.gmra.mxu0 %v513
      %v532 = vpop.f32.mrf.mxu0
      %v533 = vadd.f32 %v470, %v532
      %534 = vdwg.mxu0
      %535 = vmatpush.msra.mxu0 0.0
      %536 = vmatpush.msra.mxu0 0.0
      %537 = vmatpush.msra.mxu0 0.0
      %538 = vmatpush.msra.mxu0 0.0
      %539 = vmatpush.msra.mxu0 0.0
      %540 = vmatpush.msra.mxu0 0.0
      %541 = vmatpush.msra.mxu0 0.0
      %542 = vmatpush.msra.mxu0 0.0
      %543 = vmatpush.msra.mxu0 0.0
      %544 = vmatpush.msra.mxu0 0.0
      %545 = vmatpush.msra.mxu0 0.0
      %546 = vmatpush.msra.mxu0 0.0
      %547 = vmatpush.msra.mxu0 0.0
      %548 = vmatpush.msra.mxu0 0.0
      %549 = vmatpush.msra.mxu0 0.0
      %550 = vmatpush.msra.mxu0 %v436
      %551 = vmatmul.f32.gmra.mxu0 %v513
      %v552 = vpop.f32.mrf.mxu0
      %v553 = vadd.f32 %v490, %v552
      %554 = vdwg.mxu0
      %555 = vmatpush.msra.mxu0 0.0
      %556 = vmatpush.msra.mxu0 0.0
      %557 = vmatpush.msra.mxu0 0.0
      %558 = vmatpush.msra.mxu0 0.0
      %559 = vmatpush.msra.mxu0 0.0
      %560 = vmatpush.msra.mxu0 0.0
      %561 = vmatpush.msra.mxu0 0.0
      %562 = vmatpush.msra.mxu0 0.0
      %563 = vmatpush.msra.mxu0 0.0
      %564 = vmatpush.msra.mxu0 0.0
      %565 = vmatpush.msra.mxu0 0.0
      %566 = vmatpush.msra.mxu0 0.0
      %567 = vmatpush.msra.mxu0 0.0
      %568 = vmatpush.msra.mxu0 0.0
      %569 = vmatpush.msra.mxu0 0.0
      %570 = vmatpush.msra.mxu0 %v435
      %571 = vmatmul.f32.gmra.mxu0 %v513
      %v572 = vpop.f32.mrf.mxu0
      %v573 = vadd.f32 %v510, %v572
      %574 = vdwg.mxu0
      %575 = vrot.lane.b32.xlu0 %v408, 17
      %v576 = vpop.permute.xlu0 %575
      %577 = vrot.lane.b32.xlu0 %v409, 17
      %v578 = vpop.permute.xlu0 %577
      %579 = vrot.lane.b32.xlu0 %v410, 17
      %v580 = vpop.permute.xlu0 %579
      %vm581 = vcmp.lt.s32.totalorder %v433, 17
      %v582 = vsel %vm581, %v578, %v580
      %v583 = vsel %vm581, %v576, %v578
      %v584 = vsel %vm581, %v580, %v576
      %v586 = vsel %vm448, %v413, 0
      %588 = vmatpush.msra.mxu0 0.0
      %589 = vmatpush.msra.mxu0 0.0
      %590 = vmatpush.msra.mxu0 0.0
      %591 = vmatpush.msra.mxu0 0.0
      %592 = vmatpush.msra.mxu0 0.0
      %593 = vmatpush.msra.mxu0 0.0
      %594 = vmatpush.msra.mxu0 0.0
      %595 = vmatpush.msra.mxu0 0.0
      %596 = vmatpush.msra.mxu0 0.0
      %597 = vmatpush.msra.mxu0 0.0
      %598 = vmatpush.msra.mxu0 0.0
      %599 = vmatpush.msra.mxu0 0.0
      %600 = vmatpush.msra.mxu0 0.0
      %601 = vmatpush.msra.mxu0 0.0
      %602 = vmatpush.msra.mxu0 0.0
      %603 = vmatpush.msra.mxu0 %v584
      %604 = vmatmul.f32.gmra.mxu0 %v586
      %v605 = vpop.f32.mrf.mxu0
      %v606 = vadd.f32 0.0, %v605
      %607 = vdwg.mxu0
      %608 = vmatpush.msra.mxu0 0.0
      %609 = vmatpush.msra.mxu0 0.0
      %610 = vmatpush.msra.mxu0 0.0
      %611 = vmatpush.msra.mxu0 0.0
      %612 = vmatpush.msra.mxu0 0.0
      %613 = vmatpush.msra.mxu0 0.0
      %614 = vmatpush.msra.mxu0 0.0
      %615 = vmatpush.msra.mxu0 0.0
      %616 = vmatpush.msra.mxu0 0.0
      %617 = vmatpush.msra.mxu0 0.0
      %618 = vmatpush.msra.mxu0 0.0
      %619 = vmatpush.msra.mxu0 0.0
      %620 = vmatpush.msra.mxu0 0.0
      %621 = vmatpush.msra.mxu0 0.0
      %622 = vmatpush.msra.mxu0 0.0
      %623 = vmatpush.msra.mxu0 %v583
      %624 = vmatmul.f32.gmra.mxu0 %v586
      %v625 = vpop.f32.mrf.mxu0
      %v626 = vadd.f32 0.0, %v625
      %627 = vdwg.mxu0
      %628 = vmatpush.msra.mxu0 0.0
      %629 = vmatpush.msra.mxu0 0.0
      %630 = vmatpush.msra.mxu0 0.0
      %631 = vmatpush.msra.mxu0 0.0
      %632 = vmatpush.msra.mxu0 0.0
      %633 = vmatpush.msra.mxu0 0.0
      %634 = vmatpush.msra.mxu0 0.0
      %635 = vmatpush.msra.mxu0 0.0
      %636 = vmatpush.msra.mxu0 0.0
      %637 = vmatpush.msra.mxu0 0.0
      %638 = vmatpush.msra.mxu0 0.0
      %639 = vmatpush.msra.mxu0 0.0
      %640 = vmatpush.msra.mxu0 0.0
      %641 = vmatpush.msra.mxu0 0.0
      %642 = vmatpush.msra.mxu0 0.0
      %643 = vmatpush.msra.mxu0 %v582
      %644 = vmatmul.f32.gmra.mxu0 %v586
      %v645 = vpop.f32.mrf.mxu0
      %v646 = vadd.f32 0.0, %v645
      %647 = vdwg.mxu0
      %v648 = vadd.f32 %v533, %v606
      %v649 = vadd.f32 %v553, %v626
      %v650 = vadd.f32 %v573, %v646
      %651 = vrot.lane.b32.xlu0 %v408, 1
      %v652 = vpop.permute.xlu0 %651
      %653 = vrot.lane.b32.xlu0 %v409, 1
      %v654 = vpop.permute.xlu0 %653
      %655 = vrot.lane.b32.xlu0 %v410, 1
      %v656 = vpop.permute.xlu0 %655
      %vm657 = vcmp.lt.s32.totalorder %v433, 1
      %v658 = vsel %vm657, %v654, %v656
      %v659 = vsel %vm657, %v652, %v654
      %v660 = vsel %vm657, %v656, %v652
      %v662 = vsel %vm448, %v414, 0
      %664 = vmatpush.msra.mxu0 0.0
      %665 = vmatpush.msra.mxu0 0.0
      %666 = vmatpush.msra.mxu0 0.0
      %667 = vmatpush.msra.mxu0 0.0
      %668 = vmatpush.msra.mxu0 0.0
      %669 = vmatpush.msra.mxu0 0.0
      %670 = vmatpush.msra.mxu0 0.0
      %671 = vmatpush.msra.mxu0 0.0
      %672 = vmatpush.msra.mxu0 0.0
      %673 = vmatpush.msra.mxu0 0.0
      %674 = vmatpush.msra.mxu0 0.0
      %675 = vmatpush.msra.mxu0 0.0
      %676 = vmatpush.msra.mxu0 0.0
      %677 = vmatpush.msra.mxu0 0.0
      %678 = vmatpush.msra.mxu0 0.0
      %679 = vmatpush.msra.mxu0 %v660
      %680 = vmatmul.f32.gmra.mxu0 %v662
      %v681 = vpop.f32.mrf.mxu0
      %v682 = vadd.f32 0.0, %v681
      %683 = vdwg.mxu0
      %684 = vmatpush.msra.mxu0 0.0
      %685 = vmatpush.msra.mxu0 0.0
      %686 = vmatpush.msra.mxu0 0.0
      %687 = vmatpush.msra.mxu0 0.0
      %688 = vmatpush.msra.mxu0 0.0
      %689 = vmatpush.msra.mxu0 0.0
      %690 = vmatpush.msra.mxu0 0.0
      %691 = vmatpush.msra.mxu0 0.0
      %692 = vmatpush.msra.mxu0 0.0
      %693 = vmatpush.msra.mxu0 0.0
      %694 = vmatpush.msra.mxu0 0.0
      %695 = vmatpush.msra.mxu0 0.0
      %696 = vmatpush.msra.mxu0 0.0
      %697 = vmatpush.msra.mxu0 0.0
      %698 = vmatpush.msra.mxu0 0.0
      %699 = vmatpush.msra.mxu0 %v659
      %700 = vmatmul.f32.gmra.mxu0 %v662
      %v701 = vpop.f32.mrf.mxu0
      %v702 = vadd.f32 0.0, %v701
      %703 = vdwg.mxu0
      %704 = vmatpush.msra.mxu0 0.0
      %705 = vmatpush.msra.mxu0 0.0
      %706 = vmatpush.msra.mxu0 0.0
      %707 = vmatpush.msra.mxu0 0.0
      %708 = vmatpush.msra.mxu0 0.0
      %709 = vmatpush.msra.mxu0 0.0
      %710 = vmatpush.msra.mxu0 0.0
      %711 = vmatpush.msra.mxu0 0.0
      %712 = vmatpush.msra.mxu0 0.0
      %713 = vmatpush.msra.mxu0 0.0
      %714 = vmatpush.msra.mxu0 0.0
      %715 = vmatpush.msra.mxu0 0.0
      %716 = vmatpush.msra.mxu0 0.0
      %717 = vmatpush.msra.mxu0 0.0
      %718 = vmatpush.msra.mxu0 0.0
      %719 = vmatpush.msra.mxu0 %v658
      %720 = vmatmul.f32.gmra.mxu0 %v662
      %v721 = vpop.f32.mrf.mxu0
      %v722 = vadd.f32 0.0, %v721
      %723 = vdwg.mxu0
      %v724 = vadd.f32 %v648, %v682
      %v725 = vadd.f32 %v649, %v702
      %v726 = vadd.f32 %v650, %v722
      %v728 = vsel %vm448, %v415, 0
      %730 = vmatpush.msra.mxu0 0.0
      %731 = vmatpush.msra.mxu0 0.0
      %732 = vmatpush.msra.mxu0 0.0
      %733 = vmatpush.msra.mxu0 0.0
      %734 = vmatpush.msra.mxu0 0.0
      %735 = vmatpush.msra.mxu0 0.0
      %736 = vmatpush.msra.mxu0 0.0
      %737 = vmatpush.msra.mxu0 0.0
      %738 = vmatpush.msra.mxu0 0.0
      %739 = vmatpush.msra.mxu0 0.0
      %740 = vmatpush.msra.mxu0 0.0
      %741 = vmatpush.msra.mxu0 0.0
      %742 = vmatpush.msra.mxu0 0.0
      %743 = vmatpush.msra.mxu0 0.0
      %744 = vmatpush.msra.mxu0 0.0
      %745 = vmatpush.msra.mxu0 %v408
      %746 = vmatmul.f32.gmra.mxu0 %v728
      %v747 = vpop.f32.mrf.mxu0
      %v748 = vadd.f32 0.0, %v747
      %749 = vdwg.mxu0
      %750 = vmatpush.msra.mxu0 0.0
      %751 = vmatpush.msra.mxu0 0.0
      %752 = vmatpush.msra.mxu0 0.0
      %753 = vmatpush.msra.mxu0 0.0
      %754 = vmatpush.msra.mxu0 0.0
      %755 = vmatpush.msra.mxu0 0.0
      %756 = vmatpush.msra.mxu0 0.0
      %757 = vmatpush.msra.mxu0 0.0
      %758 = vmatpush.msra.mxu0 0.0
      %759 = vmatpush.msra.mxu0 0.0
      %760 = vmatpush.msra.mxu0 0.0
      %761 = vmatpush.msra.mxu0 0.0
      %762 = vmatpush.msra.mxu0 0.0
      %763 = vmatpush.msra.mxu0 0.0
      %764 = vmatpush.msra.mxu0 0.0
      %765 = vmatpush.msra.mxu0 %v409
      %766 = vmatmul.f32.gmra.mxu0 %v728
      %v767 = vpop.f32.mrf.mxu0
      %v768 = vadd.f32 0.0, %v767
      %769 = vdwg.mxu0
      %770 = vmatpush.msra.mxu0 0.0
      %771 = vmatpush.msra.mxu0 0.0
      %772 = vmatpush.msra.mxu0 0.0
      %773 = vmatpush.msra.mxu0 0.0
      %774 = vmatpush.msra.mxu0 0.0
      %775 = vmatpush.msra.mxu0 0.0
      %776 = vmatpush.msra.mxu0 0.0
      %777 = vmatpush.msra.mxu0 0.0
      %778 = vmatpush.msra.mxu0 0.0
      %779 = vmatpush.msra.mxu0 0.0
      %780 = vmatpush.msra.mxu0 0.0
      %781 = vmatpush.msra.mxu0 0.0
      %782 = vmatpush.msra.mxu0 0.0
      %783 = vmatpush.msra.mxu0 0.0
      %784 = vmatpush.msra.mxu0 0.0
      %785 = vmatpush.msra.mxu0 %v410
      %786 = vmatmul.f32.gmra.mxu0 %v728
      %v787 = vpop.f32.mrf.mxu0
      %v788 = vadd.f32 0.0, %v787
      %789 = vdwg.mxu0
      %v790 = vadd.f32 %v724, %v748
      %v791 = vadd.f32 %v725, %v768
      %v792 = vadd.f32 %v726, %v788
      %793 = vrot.lane.b32.xlu0 %v408, 127
      %v794 = vpop.permute.xlu0 %793
      %795 = vrot.lane.b32.xlu0 %v409, 127
      %v796 = vpop.permute.xlu0 %795
      %797 = vrot.lane.b32.xlu0 %v410, 127
      %v798 = vpop.permute.xlu0 %797
      %vm799 = vcmp.lt.s32.totalorder %v433, 127
      %v800 = vsel %vm799, %v796, %v798
      %v801 = vsel %vm799, %v794, %v796
      %v802 = vsel %vm799, %v798, %v794
      %v804 = vsel %vm448, %v416, 0
      %806 = vmatpush.msra.mxu0 0.0
      %807 = vmatpush.msra.mxu0 0.0
      %808 = vmatpush.msra.mxu0 0.0
      %809 = vmatpush.msra.mxu0 0.0
      %810 = vmatpush.msra.mxu0 0.0
      %811 = vmatpush.msra.mxu0 0.0
      %812 = vmatpush.msra.mxu0 0.0
      %813 = vmatpush.msra.mxu0 0.0
      %814 = vmatpush.msra.mxu0 0.0
      %815 = vmatpush.msra.mxu0 0.0
      %816 = vmatpush.msra.mxu0 0.0
      %817 = vmatpush.msra.mxu0 0.0
      %818 = vmatpush.msra.mxu0 0.0
      %819 = vmatpush.msra.mxu0 0.0
      %820 = vmatpush.msra.mxu0 0.0
      %821 = vmatpush.msra.mxu0 %v801
      %822 = vmatmul.f32.gmra.mxu0 %v804
      %v823 = vpop.f32.mrf.mxu0
      %v824 = vadd.f32 0.0, %v823
      %825 = vdwg.mxu0
      %826 = vmatpush.msra.mxu0 0.0
      %827 = vmatpush.msra.mxu0 0.0
      %828 = vmatpush.msra.mxu0 0.0
      %829 = vmatpush.msra.mxu0 0.0
      %830 = vmatpush.msra.mxu0 0.0
      %831 = vmatpush.msra.mxu0 0.0
      %832 = vmatpush.msra.mxu0 0.0
      %833 = vmatpush.msra.mxu0 0.0
      %834 = vmatpush.msra.mxu0 0.0
      %835 = vmatpush.msra.mxu0 0.0
      %836 = vmatpush.msra.mxu0 0.0
      %837 = vmatpush.msra.mxu0 0.0
      %838 = vmatpush.msra.mxu0 0.0
      %839 = vmatpush.msra.mxu0 0.0
      %840 = vmatpush.msra.mxu0 0.0
      %841 = vmatpush.msra.mxu0 %v800
      %842 = vmatmul.f32.gmra.mxu0 %v804
      %v843 = vpop.f32.mrf.mxu0
      %v844 = vadd.f32 0.0, %v843
      %845 = vdwg.mxu0
      %846 = vmatpush.msra.mxu0 0.0
      %847 = vmatpush.msra.mxu0 0.0
      %848 = vmatpush.msra.mxu0 0.0
      %849 = vmatpush.msra.mxu0 0.0
      %850 = vmatpush.msra.mxu0 0.0
      %851 = vmatpush.msra.mxu0 0.0
      %852 = vmatpush.msra.mxu0 0.0
      %853 = vmatpush.msra.mxu0 0.0
      %854 = vmatpush.msra.mxu0 0.0
      %855 = vmatpush.msra.mxu0 0.0
      %856 = vmatpush.msra.mxu0 0.0
      %857 = vmatpush.msra.mxu0 0.0
      %858 = vmatpush.msra.mxu0 0.0
      %859 = vmatpush.msra.mxu0 0.0
      %860 = vmatpush.msra.mxu0 0.0
      %861 = vmatpush.msra.mxu0 %v802
      %862 = vmatmul.f32.gmra.mxu0 %v804
      %v863 = vpop.f32.mrf.mxu0
      %v864 = vadd.f32 0.0, %v863
      %865 = vdwg.mxu0
      %v866 = vadd.f32 %v790, %v824
      %v867 = vadd.f32 %v791, %v844
      %v868 = vadd.f32 %v792, %v864
      %869 = vrot.lane.b32.xlu0 %v408, 111
      %v870 = vpop.permute.xlu0 %869
      %871 = vrot.lane.b32.xlu0 %v409, 111
      %v872 = vpop.permute.xlu0 %871
      %873 = vrot.lane.b32.xlu0 %v410, 111
      %v874 = vpop.permute.xlu0 %873
      %vm875 = vcmp.lt.s32.totalorder %v433, 111
      %v876 = vsel %vm875, %v872, %v874
      %v877 = vsel %vm875, %v870, %v872
      %v878 = vsel %vm875, %v874, %v870
      %v880 = vsel %vm448, %v417, 0
      %882 = vmatpush.msra.mxu0 0.0
      %883 = vmatpush.msra.mxu0 0.0
      %884 = vmatpush.msra.mxu0 0.0
      %885 = vmatpush.msra.mxu0 0.0
      %886 = vmatpush.msra.mxu0 0.0
      %887 = vmatpush.msra.mxu0 0.0
      %888 = vmatpush.msra.mxu0 0.0
      %889 = vmatpush.msra.mxu0 0.0
      %890 = vmatpush.msra.mxu0 0.0
      %891 = vmatpush.msra.mxu0 0.0
      %892 = vmatpush.msra.mxu0 0.0
      %893 = vmatpush.msra.mxu0 0.0
      %894 = vmatpush.msra.mxu0 0.0
      %895 = vmatpush.msra.mxu0 0.0
      %896 = vmatpush.msra.mxu0 0.0
      %897 = vmatpush.msra.mxu0 %v877
      %898 = vmatmul.f32.gmra.mxu0 %v880
      %v899 = vpop.f32.mrf.mxu0
      %v900 = vadd.f32 0.0, %v899
      %901 = vdwg.mxu0
      %902 = vmatpush.msra.mxu0 0.0
      %903 = vmatpush.msra.mxu0 0.0
      %904 = vmatpush.msra.mxu0 0.0
      %905 = vmatpush.msra.mxu0 0.0
      %906 = vmatpush.msra.mxu0 0.0
      %907 = vmatpush.msra.mxu0 0.0
      %908 = vmatpush.msra.mxu0 0.0
      %909 = vmatpush.msra.mxu0 0.0
      %910 = vmatpush.msra.mxu0 0.0
      %911 = vmatpush.msra.mxu0 0.0
      %912 = vmatpush.msra.mxu0 0.0
      %913 = vmatpush.msra.mxu0 0.0
      %914 = vmatpush.msra.mxu0 0.0
      %915 = vmatpush.msra.mxu0 0.0
      %916 = vmatpush.msra.mxu0 0.0
      %917 = vmatpush.msra.mxu0 %v876
      %918 = vmatmul.f32.gmra.mxu0 %v880
      %v919 = vpop.f32.mrf.mxu0
      %v920 = vadd.f32 0.0, %v919
      %921 = vdwg.mxu0
      %922 = vmatpush.msra.mxu0 0.0
      %923 = vmatpush.msra.mxu0 0.0
      %924 = vmatpush.msra.mxu0 0.0
      %925 = vmatpush.msra.mxu0 0.0
      %926 = vmatpush.msra.mxu0 0.0
      %927 = vmatpush.msra.mxu0 0.0
      %928 = vmatpush.msra.mxu0 0.0
      %929 = vmatpush.msra.mxu0 0.0
      %930 = vmatpush.msra.mxu0 0.0
      %931 = vmatpush.msra.mxu0 0.0
      %932 = vmatpush.msra.mxu0 0.0
      %933 = vmatpush.msra.mxu0 0.0
      %934 = vmatpush.msra.mxu0 0.0
      %935 = vmatpush.msra.mxu0 0.0
      %936 = vmatpush.msra.mxu0 0.0
      %937 = vmatpush.msra.mxu0 %v878
      %938 = vmatmul.f32.gmra.mxu0 %v880
      %v939 = vpop.f32.mrf.mxu0
      %v940 = vadd.f32 0.0, %v939
      %941 = vdwg.mxu0
      %v942 = vadd.f32 %v866, %v900
      %v943 = vadd.f32 %v867, %v920
      %v944 = vadd.f32 %v868, %v940
      %945 = vrot.lane.b32.xlu0 %v408, 110
      %v946 = vpop.permute.xlu0 %945
      %947 = vrot.lane.b32.xlu0 %v409, 110
      %v948 = vpop.permute.xlu0 %947
      %949 = vrot.lane.b32.xlu0 %v410, 110
      %v950 = vpop.permute.xlu0 %949
      %vm951 = vcmp.lt.s32.totalorder %v433, 110
      %v952 = vsel %vm951, %v948, %v950
      %v953 = vsel %vm951, %v946, %v948
      %v954 = vsel %vm951, %v950, %v946
      %v956 = vsel %vm448, %v418, 0
      %958 = vmatpush.msra.mxu0 0.0
      %959 = vmatpush.msra.mxu0 0.0
      %960 = vmatpush.msra.mxu0 0.0
      %961 = vmatpush.msra.mxu0 0.0
      %962 = vmatpush.msra.mxu0 0.0
      %963 = vmatpush.msra.mxu0 0.0
      %964 = vmatpush.msra.mxu0 0.0
      %965 = vmatpush.msra.mxu0 0.0
      %966 = vmatpush.msra.mxu0 0.0
      %967 = vmatpush.msra.mxu0 0.0
      %968 = vmatpush.msra.mxu0 0.0
      %969 = vmatpush.msra.mxu0 0.0
      %970 = vmatpush.msra.mxu0 0.0
      %971 = vmatpush.msra.mxu0 0.0
      %972 = vmatpush.msra.mxu0 0.0
      %973 = vmatpush.msra.mxu0 %v953
      %974 = vmatmul.f32.gmra.mxu0 %v956
      %v975 = vpop.f32.mrf.mxu0
      %v976 = vadd.f32 0.0, %v975
      %977 = vdwg.mxu0
      %978 = vmatpush.msra.mxu0 0.0
      %979 = vmatpush.msra.mxu0 0.0
      %980 = vmatpush.msra.mxu0 0.0
      %981 = vmatpush.msra.mxu0 0.0
      %982 = vmatpush.msra.mxu0 0.0
      %983 = vmatpush.msra.mxu0 0.0
      %984 = vmatpush.msra.mxu0 0.0
      %985 = vmatpush.msra.mxu0 0.0
      %986 = vmatpush.msra.mxu0 0.0
      %987 = vmatpush.msra.mxu0 0.0
      %988 = vmatpush.msra.mxu0 0.0
      %989 = vmatpush.msra.mxu0 0.0
      %990 = vmatpush.msra.mxu0 0.0
      %991 = vmatpush.msra.mxu0 0.0
      %992 = vmatpush.msra.mxu0 0.0
      %993 = vmatpush.msra.mxu0 %v952
      %994 = vmatmul.f32.gmra.mxu0 %v956
      %v995 = vpop.f32.mrf.mxu0
      %v996 = vadd.f32 0.0, %v995
      %997 = vdwg.mxu0
      %998 = vmatpush.msra.mxu0 0.0
      %999 = vmatpush.msra.mxu0 0.0
      %1000 = vmatpush.msra.mxu0 0.0
      %1001 = vmatpush.msra.mxu0 0.0
      %1002 = vmatpush.msra.mxu0 0.0
      %1003 = vmatpush.msra.mxu0 0.0
      %1004 = vmatpush.msra.mxu0 0.0
      %1005 = vmatpush.msra.mxu0 0.0
      %1006 = vmatpush.msra.mxu0 0.0
      %1007 = vmatpush.msra.mxu0 0.0
      %1008 = vmatpush.msra.mxu0 0.0
      %1009 = vmatpush.msra.mxu0 0.0
      %1010 = vmatpush.msra.mxu0 0.0
      %1011 = vmatpush.msra.mxu0 0.0
      %1012 = vmatpush.msra.mxu0 0.0
      %1013 = vmatpush.msra.mxu0 %v954
      %1014 = vmatmul.f32.gmra.mxu0 %v956
      %v1015 = vpop.f32.mrf.mxu0
      %v1016 = vadd.f32 0.0, %v1015
      %1017 = vdwg.mxu0
      %v1018 = vadd.f32 %v942, %v976
      %v1019 = vadd.f32 %v943, %v996
      %v1020 = vadd.f32 %v944, %v1016
      %1021 = vrot.lane.b32.xlu0 %v408, 109
      %v1022 = vpop.permute.xlu0 %1021
      %1023 = vrot.lane.b32.xlu0 %v409, 109
      %v1024 = vpop.permute.xlu0 %1023
      %1025 = vrot.lane.b32.xlu0 %v410, 109
      %v1026 = vpop.permute.xlu0 %1025
      %vm1027 = vcmp.lt.s32.totalorder %v433, 109
      %v1028 = vsel %vm1027, %v1024, %v1026
      %v1029 = vsel %vm1027, %v1022, %v1024
      %v1030 = vsel %vm1027, %v1026, %v1022
      %v1032 = vsel %vm448, %v419, 0
      %1034 = vmatpush.msra.mxu0 0.0
      %1035 = vmatpush.msra.mxu0 0.0
      %1036 = vmatpush.msra.mxu0 0.0
      %1037 = vmatpush.msra.mxu0 0.0
      %1038 = vmatpush.msra.mxu0 0.0
      %1039 = vmatpush.msra.mxu0 0.0
      %1040 = vmatpush.msra.mxu0 0.0
      %1041 = vmatpush.msra.mxu0 0.0
      %1042 = vmatpush.msra.mxu0 0.0
      %1043 = vmatpush.msra.mxu0 0.0
      %1044 = vmatpush.msra.mxu0 0.0
      %1045 = vmatpush.msra.mxu0 0.0
      %1046 = vmatpush.msra.mxu0 0.0
      %1047 = vmatpush.msra.mxu0 0.0
      %1048 = vmatpush.msra.mxu0 0.0
      %1049 = vmatpush.msra.mxu0 %v1029
      %1050 = vmatmul.f32.gmra.mxu0 %v1032
      %v1051 = vpop.f32.mrf.mxu0
      %v1052 = vadd.f32 0.0, %v1051
      %1053 = vdwg.mxu0
      %1054 = vmatpush.msra.mxu0 0.0
      %1055 = vmatpush.msra.mxu0 0.0
      %1056 = vmatpush.msra.mxu0 0.0
      %1057 = vmatpush.msra.mxu0 0.0
      %1058 = vmatpush.msra.mxu0 0.0
      %1059 = vmatpush.msra.mxu0 0.0
      %1060 = vmatpush.msra.mxu0 0.0
      %1061 = vmatpush.msra.mxu0 0.0
      %1062 = vmatpush.msra.mxu0 0.0
      %1063 = vmatpush.msra.mxu0 0.0
      %1064 = vmatpush.msra.mxu0 0.0
      %1065 = vmatpush.msra.mxu0 0.0
      %1066 = vmatpush.msra.mxu0 0.0
      %1067 = vmatpush.msra.mxu0 0.0
      %1068 = vmatpush.msra.mxu0 0.0
      %1069 = vmatpush.msra.mxu0 %v1028
      %1070 = vmatmul.f32.gmra.mxu0 %v1032
      %v1071 = vpop.f32.mrf.mxu0
      %v1072 = vadd.f32 0.0, %v1071
      %1073 = vdwg.mxu0
      %1074 = vmatpush.msra.mxu0 0.0
      %1075 = vmatpush.msra.mxu0 0.0
      %1076 = vmatpush.msra.mxu0 0.0
      %1077 = vmatpush.msra.mxu0 0.0
      %1078 = vmatpush.msra.mxu0 0.0
      %1079 = vmatpush.msra.mxu0 0.0
      %1080 = vmatpush.msra.mxu0 0.0
      %1081 = vmatpush.msra.mxu0 0.0
      %1082 = vmatpush.msra.mxu0 0.0
      %1083 = vmatpush.msra.mxu0 0.0
      %1084 = vmatpush.msra.mxu0 0.0
      %1085 = vmatpush.msra.mxu0 0.0
      %1086 = vmatpush.msra.mxu0 0.0
      %1087 = vmatpush.msra.mxu0 0.0
      %1088 = vmatpush.msra.mxu0 0.0
      %1089 = vmatpush.msra.mxu0 %v1030
      %1090 = vmatmul.f32.gmra.mxu0 %v1032
      %v1091 = vpop.f32.mrf.mxu0
      %v1092 = vadd.f32 0.0, %v1091
      %1093 = vdwg.mxu0
      %v1094 = vadd.f32 %v1018, %v1052
      %v1095 = vadd.f32 %v1019, %v1072
      %v1096 = vadd.f32 %v1020, %v1092
      %v1097 = vadd.f32 %v1094, %v424
      %v1098 = vadd.f32 %v1095, %v424
      %v1099 = vadd.f32 %v1096, %v424
      %v1100 = vmax.f32 %v1097, 0.0
      %v1101 = vmax.f32 %v1098, 0.0
      %v1102 = vmax.f32 %v1099, 0.0
      %v1103 = vmul.f32 %v1100, %v311
      %v1104 = vmul.f32 %v1101, %v312
      %v1105 = vmul.f32 %v1102, %v313
      %v1106 = vadd.f32 %v1103, %v408
      %v1107 = vadd.f32 %v1104, %v409
      %v1108 = vadd.f32 %v1105, %v410
      %1109 = vrot.lane.b32.xlu0 %v1106, 19
      %v1110 = vpop.permute.xlu0 %1109
      %1111 = vrot.lane.b32.xlu0 %v1107, 19
      %v1112 = vpop.permute.xlu0 %1111
      %1113 = vrot.lane.b32.xlu0 %v1108, 19
      %v1114 = vpop.permute.xlu0 %1113
      %v1115 = vsel %vm434, %v1112, %v1114
      %v1116 = vsel %vm434, %v1110, %v1112
      %v1117 = vsel %vm434, %v1114, %v1110
      %1118 = vrot.lane.b32.xlu0 %v1106, 18
      %v1119 = vpop.permute.xlu0 %1118
      %1120 = vrot.lane.b32.xlu0 %v1107, 18
      %v1121 = vpop.permute.xlu0 %1120
      %1122 = vrot.lane.b32.xlu0 %v1108, 18
      %v1123 = vpop.permute.xlu0 %1122
      %v1124 = vsel %vm444, %v1121, %v1123
      %v1125 = vsel %vm444, %v1119, %v1121
      %v1126 = vsel %vm444, %v1123, %v1119
      %1127 = vmatpush.msra.mxu0 0.0
      %1128 = vmatpush.msra.mxu0 0.0
      %1129 = vmatpush.msra.mxu0 0.0
      %1130 = vmatpush.msra.mxu0 0.0
      %1131 = vmatpush.msra.mxu0 0.0
      %1132 = vmatpush.msra.mxu0 0.0
      %1133 = vmatpush.msra.mxu0 0.0
      %1134 = vmatpush.msra.mxu0 0.0
      %1135 = vmatpush.msra.mxu0 0.0
      %1136 = vmatpush.msra.mxu0 0.0
      %1137 = vmatpush.msra.mxu0 0.0
      %1138 = vmatpush.msra.mxu0 0.0
      %1139 = vmatpush.msra.mxu0 0.0
      %1140 = vmatpush.msra.mxu0 0.0
      %1141 = vmatpush.msra.mxu0 0.0
      %1142 = vmatpush.msra.mxu0 %v1126
      %1143 = vmatmul.f32.gmra.mxu0 %v450
      %v1144 = vpop.f32.mrf.mxu0
      %v1145 = vadd.f32 0.0, %v1144
      %1146 = vdwg.mxu0
      %1147 = vmatpush.msra.mxu0 0.0
      %1148 = vmatpush.msra.mxu0 0.0
      %1149 = vmatpush.msra.mxu0 0.0
      %1150 = vmatpush.msra.mxu0 0.0
      %1151 = vmatpush.msra.mxu0 0.0
      %1152 = vmatpush.msra.mxu0 0.0
      %1153 = vmatpush.msra.mxu0 0.0
      %1154 = vmatpush.msra.mxu0 0.0
      %1155 = vmatpush.msra.mxu0 0.0
      %1156 = vmatpush.msra.mxu0 0.0
      %1157 = vmatpush.msra.mxu0 0.0
      %1158 = vmatpush.msra.mxu0 0.0
      %1159 = vmatpush.msra.mxu0 0.0
      %1160 = vmatpush.msra.mxu0 0.0
      %1161 = vmatpush.msra.mxu0 0.0
      %1162 = vmatpush.msra.mxu0 %v1125
      %1163 = vmatmul.f32.gmra.mxu0 %v450
      %v1164 = vpop.f32.mrf.mxu0
      %v1165 = vadd.f32 0.0, %v1164
      %1166 = vdwg.mxu0
      %1167 = vmatpush.msra.mxu0 0.0
      %1168 = vmatpush.msra.mxu0 0.0
      %1169 = vmatpush.msra.mxu0 0.0
      %1170 = vmatpush.msra.mxu0 0.0
      %1171 = vmatpush.msra.mxu0 0.0
      %1172 = vmatpush.msra.mxu0 0.0
      %1173 = vmatpush.msra.mxu0 0.0
      %1174 = vmatpush.msra.mxu0 0.0
      %1175 = vmatpush.msra.mxu0 0.0
      %1176 = vmatpush.msra.mxu0 0.0
      %1177 = vmatpush.msra.mxu0 0.0
      %1178 = vmatpush.msra.mxu0 0.0
      %1179 = vmatpush.msra.mxu0 0.0
      %1180 = vmatpush.msra.mxu0 0.0
      %1181 = vmatpush.msra.mxu0 0.0
      %1182 = vmatpush.msra.mxu0 %v1124
      %1183 = vmatmul.f32.gmra.mxu0 %v450
      %v1184 = vpop.f32.mrf.mxu0
      %v1185 = vadd.f32 0.0, %v1184
      %1186 = vdwg.mxu0
      %1187 = vmatpush.msra.mxu0 0.0
      %1188 = vmatpush.msra.mxu0 0.0
      %1189 = vmatpush.msra.mxu0 0.0
      %1190 = vmatpush.msra.mxu0 0.0
      %1191 = vmatpush.msra.mxu0 0.0
      %1192 = vmatpush.msra.mxu0 0.0
      %1193 = vmatpush.msra.mxu0 0.0
      %1194 = vmatpush.msra.mxu0 0.0
      %1195 = vmatpush.msra.mxu0 0.0
      %1196 = vmatpush.msra.mxu0 0.0
      %1197 = vmatpush.msra.mxu0 0.0
      %1198 = vmatpush.msra.mxu0 0.0
      %1199 = vmatpush.msra.mxu0 0.0
      %1200 = vmatpush.msra.mxu0 0.0
      %1201 = vmatpush.msra.mxu0 0.0
      %1202 = vmatpush.msra.mxu0 %v1117
      %1203 = vmatmul.f32.gmra.mxu0 %v513
      %v1204 = vpop.f32.mrf.mxu0
      %v1205 = vadd.f32 %v1145, %v1204
      %1206 = vdwg.mxu0
      %1207 = vmatpush.msra.mxu0 0.0
      %1208 = vmatpush.msra.mxu0 0.0
      %1209 = vmatpush.msra.mxu0 0.0
      %1210 = vmatpush.msra.mxu0 0.0
      %1211 = vmatpush.msra.mxu0 0.0
      %1212 = vmatpush.msra.mxu0 0.0
      %1213 = vmatpush.msra.mxu0 0.0
      %1214 = vmatpush.msra.mxu0 0.0
      %1215 = vmatpush.msra.mxu0 0.0
      %1216 = vmatpush.msra.mxu0 0.0
      %1217 = vmatpush.msra.mxu0 0.0
      %1218 = vmatpush.msra.mxu0 0.0
      %1219 = vmatpush.msra.mxu0 0.0
      %1220 = vmatpush.msra.mxu0 0.0
      %1221 = vmatpush.msra.mxu0 0.0
      %1222 = vmatpush.msra.mxu0 %v1116
      %1223 = vmatmul.f32.gmra.mxu0 %v513
      %v1224 = vpop.f32.mrf.mxu0
      %v1225 = vadd.f32 %v1165, %v1224
      %1226 = vdwg.mxu0
      %1227 = vmatpush.msra.mxu0 0.0
      %1228 = vmatpush.msra.mxu0 0.0
      %1229 = vmatpush.msra.mxu0 0.0
      %1230 = vmatpush.msra.mxu0 0.0
      %1231 = vmatpush.msra.mxu0 0.0
      %1232 = vmatpush.msra.mxu0 0.0
      %1233 = vmatpush.msra.mxu0 0.0
      %1234 = vmatpush.msra.mxu0 0.0
      %1235 = vmatpush.msra.mxu0 0.0
      %1236 = vmatpush.msra.mxu0 0.0
      %1237 = vmatpush.msra.mxu0 0.0
      %1238 = vmatpush.msra.mxu0 0.0
      %1239 = vmatpush.msra.mxu0 0.0
      %1240 = vmatpush.msra.mxu0 0.0
      %1241 = vmatpush.msra.mxu0 0.0
      %1242 = vmatpush.msra.mxu0 %v1115
      %1243 = vmatmul.f32.gmra.mxu0 %v513
      %v1244 = vpop.f32.mrf.mxu0
      %v1245 = vadd.f32 %v1185, %v1244
      %1246 = vdwg.mxu0
      %1247 = vrot.lane.b32.xlu0 %v1106, 17
      %v1248 = vpop.permute.xlu0 %1247
      %1249 = vrot.lane.b32.xlu0 %v1107, 17
      %v1250 = vpop.permute.xlu0 %1249
      %1251 = vrot.lane.b32.xlu0 %v1108, 17
      %v1252 = vpop.permute.xlu0 %1251
      %v1253 = vsel %vm581, %v1250, %v1252
      %v1254 = vsel %vm581, %v1248, %v1250
      %v1255 = vsel %vm581, %v1252, %v1248
      %1256 = vmatpush.msra.mxu0 0.0
      %1257 = vmatpush.msra.mxu0 0.0
      %1258 = vmatpush.msra.mxu0 0.0
      %1259 = vmatpush.msra.mxu0 0.0
      %1260 = vmatpush.msra.mxu0 0.0
      %1261 = vmatpush.msra.mxu0 0.0
      %1262 = vmatpush.msra.mxu0 0.0
      %1263 = vmatpush.msra.mxu0 0.0
      %1264 = vmatpush.msra.mxu0 0.0
      %1265 = vmatpush.msra.mxu0 0.0
      %1266 = vmatpush.msra.mxu0 0.0
      %1267 = vmatpush.msra.mxu0 0.0
      %1268 = vmatpush.msra.mxu0 0.0
      %1269 = vmatpush.msra.mxu0 0.0
      %1270 = vmatpush.msra.mxu0 0.0
      %1271 = vmatpush.msra.mxu0 %v1255
      %1272 = vmatmul.f32.gmra.mxu0 %v586
      %v1273 = vpop.f32.mrf.mxu0
      %v1274 = vadd.f32 0.0, %v1273
      %1275 = vdwg.mxu0
      %1276 = vmatpush.msra.mxu0 0.0
      %1277 = vmatpush.msra.mxu0 0.0
      %1278 = vmatpush.msra.mxu0 0.0
      %1279 = vmatpush.msra.mxu0 0.0
      %1280 = vmatpush.msra.mxu0 0.0
      %1281 = vmatpush.msra.mxu0 0.0
      %1282 = vmatpush.msra.mxu0 0.0
      %1283 = vmatpush.msra.mxu0 0.0
      %1284 = vmatpush.msra.mxu0 0.0
      %1285 = vmatpush.msra.mxu0 0.0
      %1286 = vmatpush.msra.mxu0 0.0
      %1287 = vmatpush.msra.mxu0 0.0
      %1288 = vmatpush.msra.mxu0 0.0
      %1289 = vmatpush.msra.mxu0 0.0
      %1290 = vmatpush.msra.mxu0 0.0
      %1291 = vmatpush.msra.mxu0 %v1254
      %1292 = vmatmul.f32.gmra.mxu0 %v586
      %v1293 = vpop.f32.mrf.mxu0
      %v1294 = vadd.f32 0.0, %v1293
      %1295 = vdwg.mxu0
      %1296 = vmatpush.msra.mxu0 0.0
      %1297 = vmatpush.msra.mxu0 0.0
      %1298 = vmatpush.msra.mxu0 0.0
      %1299 = vmatpush.msra.mxu0 0.0
      %1300 = vmatpush.msra.mxu0 0.0
      %1301 = vmatpush.msra.mxu0 0.0
      %1302 = vmatpush.msra.mxu0 0.0
      %1303 = vmatpush.msra.mxu0 0.0
      %1304 = vmatpush.msra.mxu0 0.0
      %1305 = vmatpush.msra.mxu0 0.0
      %1306 = vmatpush.msra.mxu0 0.0
      %1307 = vmatpush.msra.mxu0 0.0
      %1308 = vmatpush.msra.mxu0 0.0
      %1309 = vmatpush.msra.mxu0 0.0
      %1310 = vmatpush.msra.mxu0 0.0
      %1311 = vmatpush.msra.mxu0 %v1253
      %1312 = vmatmul.f32.gmra.mxu0 %v586
      %v1313 = vpop.f32.mrf.mxu0
      %v1314 = vadd.f32 0.0, %v1313
      %1315 = vdwg.mxu0
      %v1316 = vadd.f32 %v1205, %v1274
      %v1317 = vadd.f32 %v1225, %v1294
      %v1318 = vadd.f32 %v1245, %v1314
      %1319 = vrot.lane.b32.xlu0 %v1106, 1
      %v1320 = vpop.permute.xlu0 %1319
      %1321 = vrot.lane.b32.xlu0 %v1107, 1
      %v1322 = vpop.permute.xlu0 %1321
      %1323 = vrot.lane.b32.xlu0 %v1108, 1
      %v1324 = vpop.permute.xlu0 %1323
      %v1325 = vsel %vm657, %v1322, %v1324
      %v1326 = vsel %vm657, %v1320, %v1322
      %v1327 = vsel %vm657, %v1324, %v1320
      %1328 = vmatpush.msra.mxu0 0.0
      %1329 = vmatpush.msra.mxu0 0.0
      %1330 = vmatpush.msra.mxu0 0.0
      %1331 = vmatpush.msra.mxu0 0.0
      %1332 = vmatpush.msra.mxu0 0.0
      %1333 = vmatpush.msra.mxu0 0.0
      %1334 = vmatpush.msra.mxu0 0.0
      %1335 = vmatpush.msra.mxu0 0.0
      %1336 = vmatpush.msra.mxu0 0.0
      %1337 = vmatpush.msra.mxu0 0.0
      %1338 = vmatpush.msra.mxu0 0.0
      %1339 = vmatpush.msra.mxu0 0.0
      %1340 = vmatpush.msra.mxu0 0.0
      %1341 = vmatpush.msra.mxu0 0.0
      %1342 = vmatpush.msra.mxu0 0.0
      %1343 = vmatpush.msra.mxu0 %v1327
      %1344 = vmatmul.f32.gmra.mxu0 %v662
      %v1345 = vpop.f32.mrf.mxu0
      %v1346 = vadd.f32 0.0, %v1345
      %1347 = vdwg.mxu0
      %1348 = vmatpush.msra.mxu0 0.0
      %1349 = vmatpush.msra.mxu0 0.0
      %1350 = vmatpush.msra.mxu0 0.0
      %1351 = vmatpush.msra.mxu0 0.0
      %1352 = vmatpush.msra.mxu0 0.0
      %1353 = vmatpush.msra.mxu0 0.0
      %1354 = vmatpush.msra.mxu0 0.0
      %1355 = vmatpush.msra.mxu0 0.0
      %1356 = vmatpush.msra.mxu0 0.0
      %1357 = vmatpush.msra.mxu0 0.0
      %1358 = vmatpush.msra.mxu0 0.0
      %1359 = vmatpush.msra.mxu0 0.0
      %1360 = vmatpush.msra.mxu0 0.0
      %1361 = vmatpush.msra.mxu0 0.0
      %1362 = vmatpush.msra.mxu0 0.0
      %1363 = vmatpush.msra.mxu0 %v1326
      %1364 = vmatmul.f32.gmra.mxu0 %v662
      %v1365 = vpop.f32.mrf.mxu0
      %v1366 = vadd.f32 0.0, %v1365
      %1367 = vdwg.mxu0
      %1368 = vmatpush.msra.mxu0 0.0
      %1369 = vmatpush.msra.mxu0 0.0
      %1370 = vmatpush.msra.mxu0 0.0
      %1371 = vmatpush.msra.mxu0 0.0
      %1372 = vmatpush.msra.mxu0 0.0
      %1373 = vmatpush.msra.mxu0 0.0
      %1374 = vmatpush.msra.mxu0 0.0
      %1375 = vmatpush.msra.mxu0 0.0
      %1376 = vmatpush.msra.mxu0 0.0
      %1377 = vmatpush.msra.mxu0 0.0
      %1378 = vmatpush.msra.mxu0 0.0
      %1379 = vmatpush.msra.mxu0 0.0
      %1380 = vmatpush.msra.mxu0 0.0
      %1381 = vmatpush.msra.mxu0 0.0
      %1382 = vmatpush.msra.mxu0 0.0
      %1383 = vmatpush.msra.mxu0 %v1325
      %1384 = vmatmul.f32.gmra.mxu0 %v662
      %v1385 = vpop.f32.mrf.mxu0
      %v1386 = vadd.f32 0.0, %v1385
      %1387 = vdwg.mxu0
      %v1388 = vadd.f32 %v1316, %v1346
      %v1389 = vadd.f32 %v1317, %v1366
      %v1390 = vadd.f32 %v1318, %v1386
      %1391 = vmatpush.msra.mxu0 0.0
      %1392 = vmatpush.msra.mxu0 0.0
      %1393 = vmatpush.msra.mxu0 0.0
      %1394 = vmatpush.msra.mxu0 0.0
      %1395 = vmatpush.msra.mxu0 0.0
      %1396 = vmatpush.msra.mxu0 0.0
      %1397 = vmatpush.msra.mxu0 0.0
      %1398 = vmatpush.msra.mxu0 0.0
      %1399 = vmatpush.msra.mxu0 0.0
      %1400 = vmatpush.msra.mxu0 0.0
      %1401 = vmatpush.msra.mxu0 0.0
      %1402 = vmatpush.msra.mxu0 0.0
      %1403 = vmatpush.msra.mxu0 0.0
      %1404 = vmatpush.msra.mxu0 0.0
      %1405 = vmatpush.msra.mxu0 0.0
      %1406 = vmatpush.msra.mxu0 %v1106
      %1407 = vmatmul.f32.gmra.mxu0 %v728
      %v1408 = vpop.f32.mrf.mxu0
      %v1409 = vadd.f32 0.0, %v1408
      %1410 = vdwg.mxu0
      %1411 = vmatpush.msra.mxu0 0.0
      %1412 = vmatpush.msra.mxu0 0.0
      %1413 = vmatpush.msra.mxu0 0.0
      %1414 = vmatpush.msra.mxu0 0.0
      %1415 = vmatpush.msra.mxu0 0.0
      %1416 = vmatpush.msra.mxu0 0.0
      %1417 = vmatpush.msra.mxu0 0.0
      %1418 = vmatpush.msra.mxu0 0.0
      %1419 = vmatpush.msra.mxu0 0.0
      %1420 = vmatpush.msra.mxu0 0.0
      %1421 = vmatpush.msra.mxu0 0.0
      %1422 = vmatpush.msra.mxu0 0.0
      %1423 = vmatpush.msra.mxu0 0.0
      %1424 = vmatpush.msra.mxu0 0.0
      %1425 = vmatpush.msra.mxu0 0.0
      %1426 = vmatpush.msra.mxu0 %v1107
      %1427 = vmatmul.f32.gmra.mxu0 %v728
      %v1428 = vpop.f32.mrf.mxu0
      %v1429 = vadd.f32 0.0, %v1428
      %1430 = vdwg.mxu0
      %1431 = vmatpush.msra.mxu0 0.0
      %1432 = vmatpush.msra.mxu0 0.0
      %1433 = vmatpush.msra.mxu0 0.0
      %1434 = vmatpush.msra.mxu0 0.0
      %1435 = vmatpush.msra.mxu0 0.0
      %1436 = vmatpush.msra.mxu0 0.0
      %1437 = vmatpush.msra.mxu0 0.0
      %1438 = vmatpush.msra.mxu0 0.0
      %1439 = vmatpush.msra.mxu0 0.0
      %1440 = vmatpush.msra.mxu0 0.0
      %1441 = vmatpush.msra.mxu0 0.0
      %1442 = vmatpush.msra.mxu0 0.0
      %1443 = vmatpush.msra.mxu0 0.0
      %1444 = vmatpush.msra.mxu0 0.0
      %1445 = vmatpush.msra.mxu0 0.0
      %1446 = vmatpush.msra.mxu0 %v1108
      %1447 = vmatmul.f32.gmra.mxu0 %v728
      %v1448 = vpop.f32.mrf.mxu0
      %v1449 = vadd.f32 0.0, %v1448
      %1450 = vdwg.mxu0
      %v1451 = vadd.f32 %v1388, %v1409
      %v1452 = vadd.f32 %v1389, %v1429
      %v1453 = vadd.f32 %v1390, %v1449
      %1454 = vrot.lane.b32.xlu0 %v1106, 127
      %v1455 = vpop.permute.xlu0 %1454
      %1456 = vrot.lane.b32.xlu0 %v1107, 127
      %v1457 = vpop.permute.xlu0 %1456
      %1458 = vrot.lane.b32.xlu0 %v1108, 127
      %v1459 = vpop.permute.xlu0 %1458
      %v1460 = vsel %vm799, %v1457, %v1459
      %v1461 = vsel %vm799, %v1455, %v1457
      %v1462 = vsel %vm799, %v1459, %v1455
      %1463 = vmatpush.msra.mxu0 0.0
      %1464 = vmatpush.msra.mxu0 0.0
      %1465 = vmatpush.msra.mxu0 0.0
      %1466 = vmatpush.msra.mxu0 0.0
      %1467 = vmatpush.msra.mxu0 0.0
      %1468 = vmatpush.msra.mxu0 0.0
      %1469 = vmatpush.msra.mxu0 0.0
      %1470 = vmatpush.msra.mxu0 0.0
      %1471 = vmatpush.msra.mxu0 0.0
      %1472 = vmatpush.msra.mxu0 0.0
      %1473 = vmatpush.msra.mxu0 0.0
      %1474 = vmatpush.msra.mxu0 0.0
      %1475 = vmatpush.msra.mxu0 0.0
      %1476 = vmatpush.msra.mxu0 0.0
      %1477 = vmatpush.msra.mxu0 0.0
      %1478 = vmatpush.msra.mxu0 %v1461
      %1479 = vmatmul.f32.gmra.mxu0 %v804
      %v1480 = vpop.f32.mrf.mxu0
      %v1481 = vadd.f32 0.0, %v1480
      %1482 = vdwg.mxu0
      %1483 = vmatpush.msra.mxu0 0.0
      %1484 = vmatpush.msra.mxu0 0.0
      %1485 = vmatpush.msra.mxu0 0.0
      %1486 = vmatpush.msra.mxu0 0.0
      %1487 = vmatpush.msra.mxu0 0.0
      %1488 = vmatpush.msra.mxu0 0.0
      %1489 = vmatpush.msra.mxu0 0.0
      %1490 = vmatpush.msra.mxu0 0.0
      %1491 = vmatpush.msra.mxu0 0.0
      %1492 = vmatpush.msra.mxu0 0.0
      %1493 = vmatpush.msra.mxu0 0.0
      %1494 = vmatpush.msra.mxu0 0.0
      %1495 = vmatpush.msra.mxu0 0.0
      %1496 = vmatpush.msra.mxu0 0.0
      %1497 = vmatpush.msra.mxu0 0.0
      %1498 = vmatpush.msra.mxu0 %v1460
      %1499 = vmatmul.f32.gmra.mxu0 %v804
      %v1500 = vpop.f32.mrf.mxu0
      %v1501 = vadd.f32 0.0, %v1500
      %1502 = vdwg.mxu0
      %1503 = vmatpush.msra.mxu0 0.0
      %1504 = vmatpush.msra.mxu0 0.0
      %1505 = vmatpush.msra.mxu0 0.0
      %1506 = vmatpush.msra.mxu0 0.0
      %1507 = vmatpush.msra.mxu0 0.0
      %1508 = vmatpush.msra.mxu0 0.0
      %1509 = vmatpush.msra.mxu0 0.0
      %1510 = vmatpush.msra.mxu0 0.0
      %1511 = vmatpush.msra.mxu0 0.0
      %1512 = vmatpush.msra.mxu0 0.0
      %1513 = vmatpush.msra.mxu0 0.0
      %1514 = vmatpush.msra.mxu0 0.0
      %1515 = vmatpush.msra.mxu0 0.0
      %1516 = vmatpush.msra.mxu0 0.0
      %1517 = vmatpush.msra.mxu0 0.0
      %1518 = vmatpush.msra.mxu0 %v1462
      %1519 = vmatmul.f32.gmra.mxu0 %v804
      %v1520 = vpop.f32.mrf.mxu0
      %v1521 = vadd.f32 0.0, %v1520
      %1522 = vdwg.mxu0
      %v1523 = vadd.f32 %v1451, %v1481
      %v1524 = vadd.f32 %v1452, %v1501
      %v1525 = vadd.f32 %v1453, %v1521
      %1526 = vrot.lane.b32.xlu0 %v1106, 111
      %v1527 = vpop.permute.xlu0 %1526
      %1528 = vrot.lane.b32.xlu0 %v1107, 111
      %v1529 = vpop.permute.xlu0 %1528
      %1530 = vrot.lane.b32.xlu0 %v1108, 111
      %v1531 = vpop.permute.xlu0 %1530
      %v1532 = vsel %vm875, %v1529, %v1531
      %v1533 = vsel %vm875, %v1527, %v1529
      %v1534 = vsel %vm875, %v1531, %v1527
      %1535 = vmatpush.msra.mxu0 0.0
      %1536 = vmatpush.msra.mxu0 0.0
      %1537 = vmatpush.msra.mxu0 0.0
      %1538 = vmatpush.msra.mxu0 0.0
      %1539 = vmatpush.msra.mxu0 0.0
      %1540 = vmatpush.msra.mxu0 0.0
      %1541 = vmatpush.msra.mxu0 0.0
      %1542 = vmatpush.msra.mxu0 0.0
      %1543 = vmatpush.msra.mxu0 0.0
      %1544 = vmatpush.msra.mxu0 0.0
      %1545 = vmatpush.msra.mxu0 0.0
      %1546 = vmatpush.msra.mxu0 0.0
      %1547 = vmatpush.msra.mxu0 0.0
      %1548 = vmatpush.msra.mxu0 0.0
      %1549 = vmatpush.msra.mxu0 0.0
      %1550 = vmatpush.msra.mxu0 %v1533
      %1551 = vmatmul.f32.gmra.mxu0 %v880
      %v1552 = vpop.f32.mrf.mxu0
      %v1553 = vadd.f32 0.0, %v1552
      %1554 = vdwg.mxu0
      %1555 = vmatpush.msra.mxu0 0.0
      %1556 = vmatpush.msra.mxu0 0.0
      %1557 = vmatpush.msra.mxu0 0.0
      %1558 = vmatpush.msra.mxu0 0.0
      %1559 = vmatpush.msra.mxu0 0.0
      %1560 = vmatpush.msra.mxu0 0.0
      %1561 = vmatpush.msra.mxu0 0.0
      %1562 = vmatpush.msra.mxu0 0.0
      %1563 = vmatpush.msra.mxu0 0.0
      %1564 = vmatpush.msra.mxu0 0.0
      %1565 = vmatpush.msra.mxu0 0.0
      %1566 = vmatpush.msra.mxu0 0.0
      %1567 = vmatpush.msra.mxu0 0.0
      %1568 = vmatpush.msra.mxu0 0.0
      %1569 = vmatpush.msra.mxu0 0.0
      %1570 = vmatpush.msra.mxu0 %v1532
      %1571 = vmatmul.f32.gmra.mxu0 %v880
      %v1572 = vpop.f32.mrf.mxu0
      %v1573 = vadd.f32 0.0, %v1572
      %1574 = vdwg.mxu0
      %1575 = vmatpush.msra.mxu0 0.0
      %1576 = vmatpush.msra.mxu0 0.0
      %1577 = vmatpush.msra.mxu0 0.0
      %1578 = vmatpush.msra.mxu0 0.0
      %1579 = vmatpush.msra.mxu0 0.0
      %1580 = vmatpush.msra.mxu0 0.0
      %1581 = vmatpush.msra.mxu0 0.0
      %1582 = vmatpush.msra.mxu0 0.0
      %1583 = vmatpush.msra.mxu0 0.0
      %1584 = vmatpush.msra.mxu0 0.0
      %1585 = vmatpush.msra.mxu0 0.0
      %1586 = vmatpush.msra.mxu0 0.0
      %1587 = vmatpush.msra.mxu0 0.0
      %1588 = vmatpush.msra.mxu0 0.0
      %1589 = vmatpush.msra.mxu0 0.0
      %1590 = vmatpush.msra.mxu0 %v1534
      %1591 = vmatmul.f32.gmra.mxu0 %v880
      %v1592 = vpop.f32.mrf.mxu0
      %v1593 = vadd.f32 0.0, %v1592
      %1594 = vdwg.mxu0
      %v1595 = vadd.f32 %v1523, %v1553
      %v1596 = vadd.f32 %v1524, %v1573
      %v1597 = vadd.f32 %v1525, %v1593
      %1598 = vrot.lane.b32.xlu0 %v1106, 110
      %v1599 = vpop.permute.xlu0 %1598
      %1600 = vrot.lane.b32.xlu0 %v1107, 110
      %v1601 = vpop.permute.xlu0 %1600
      %1602 = vrot.lane.b32.xlu0 %v1108, 110
      %v1603 = vpop.permute.xlu0 %1602
      %v1604 = vsel %vm951, %v1601, %v1603
      %v1605 = vsel %vm951, %v1599, %v1601
      %v1606 = vsel %vm951, %v1603, %v1599
      %1607 = vmatpush.msra.mxu0 0.0
      %1608 = vmatpush.msra.mxu0 0.0
      %1609 = vmatpush.msra.mxu0 0.0
      %1610 = vmatpush.msra.mxu0 0.0
      %1611 = vmatpush.msra.mxu0 0.0
      %1612 = vmatpush.msra.mxu0 0.0
      %1613 = vmatpush.msra.mxu0 0.0
      %1614 = vmatpush.msra.mxu0 0.0
      %1615 = vmatpush.msra.mxu0 0.0
      %1616 = vmatpush.msra.mxu0 0.0
      %1617 = vmatpush.msra.mxu0 0.0
      %1618 = vmatpush.msra.mxu0 0.0
      %1619 = vmatpush.msra.mxu0 0.0
      %1620 = vmatpush.msra.mxu0 0.0
      %1621 = vmatpush.msra.mxu0 0.0
      %1622 = vmatpush.msra.mxu0 %v1605
      %1623 = vmatmul.f32.gmra.mxu0 %v956
      %v1624 = vpop.f32.mrf.mxu0
      %v1625 = vadd.f32 0.0, %v1624
      %1626 = vdwg.mxu0
      %1627 = vmatpush.msra.mxu0 0.0
      %1628 = vmatpush.msra.mxu0 0.0
      %1629 = vmatpush.msra.mxu0 0.0
      %1630 = vmatpush.msra.mxu0 0.0
      %1631 = vmatpush.msra.mxu0 0.0
      %1632 = vmatpush.msra.mxu0 0.0
      %1633 = vmatpush.msra.mxu0 0.0
      %1634 = vmatpush.msra.mxu0 0.0
      %1635 = vmatpush.msra.mxu0 0.0
      %1636 = vmatpush.msra.mxu0 0.0
      %1637 = vmatpush.msra.mxu0 0.0
      %1638 = vmatpush.msra.mxu0 0.0
      %1639 = vmatpush.msra.mxu0 0.0
      %1640 = vmatpush.msra.mxu0 0.0
      %1641 = vmatpush.msra.mxu0 0.0
      %1642 = vmatpush.msra.mxu0 %v1604
      %1643 = vmatmul.f32.gmra.mxu0 %v956
      %v1644 = vpop.f32.mrf.mxu0
      %v1645 = vadd.f32 0.0, %v1644
      %1646 = vdwg.mxu0
      %1647 = vmatpush.msra.mxu0 0.0
      %1648 = vmatpush.msra.mxu0 0.0
      %1649 = vmatpush.msra.mxu0 0.0
      %1650 = vmatpush.msra.mxu0 0.0
      %1651 = vmatpush.msra.mxu0 0.0
      %1652 = vmatpush.msra.mxu0 0.0
      %1653 = vmatpush.msra.mxu0 0.0
      %1654 = vmatpush.msra.mxu0 0.0
      %1655 = vmatpush.msra.mxu0 0.0
      %1656 = vmatpush.msra.mxu0 0.0
      %1657 = vmatpush.msra.mxu0 0.0
      %1658 = vmatpush.msra.mxu0 0.0
      %1659 = vmatpush.msra.mxu0 0.0
      %1660 = vmatpush.msra.mxu0 0.0
      %1661 = vmatpush.msra.mxu0 0.0
      %1662 = vmatpush.msra.mxu0 %v1606
      %1663 = vmatmul.f32.gmra.mxu0 %v956
      %v1664 = vpop.f32.mrf.mxu0
      %v1665 = vadd.f32 0.0, %v1664
      %1666 = vdwg.mxu0
      %v1667 = vadd.f32 %v1595, %v1625
      %v1668 = vadd.f32 %v1596, %v1645
      %v1669 = vadd.f32 %v1597, %v1665
      %1670 = vrot.lane.b32.xlu0 %v1106, 109
      %v1671 = vpop.permute.xlu0 %1670
      %1672 = vrot.lane.b32.xlu0 %v1107, 109
      %v1673 = vpop.permute.xlu0 %1672
      %1674 = vrot.lane.b32.xlu0 %v1108, 109
      %v1675 = vpop.permute.xlu0 %1674
      %v1676 = vsel %vm1027, %v1673, %v1675
      %v1677 = vsel %vm1027, %v1671, %v1673
      %v1678 = vsel %vm1027, %v1675, %v1671
      %1679 = vmatpush.msra.mxu0 0.0
      %1680 = vmatpush.msra.mxu0 0.0
      %1681 = vmatpush.msra.mxu0 0.0
      %1682 = vmatpush.msra.mxu0 0.0
      %1683 = vmatpush.msra.mxu0 0.0
      %1684 = vmatpush.msra.mxu0 0.0
      %1685 = vmatpush.msra.mxu0 0.0
      %1686 = vmatpush.msra.mxu0 0.0
      %1687 = vmatpush.msra.mxu0 0.0
      %1688 = vmatpush.msra.mxu0 0.0
      %1689 = vmatpush.msra.mxu0 0.0
      %1690 = vmatpush.msra.mxu0 0.0
      %1691 = vmatpush.msra.mxu0 0.0
      %1692 = vmatpush.msra.mxu0 0.0
      %1693 = vmatpush.msra.mxu0 0.0
      %1694 = vmatpush.msra.mxu0 %v1677
      %1695 = vmatmul.f32.gmra.mxu0 %v1032
      %v1696 = vpop.f32.mrf.mxu0
      %v1697 = vadd.f32 0.0, %v1696
      %1698 = vdwg.mxu0
      %1699 = vmatpush.msra.mxu0 0.0
      %1700 = vmatpush.msra.mxu0 0.0
      %1701 = vmatpush.msra.mxu0 0.0
      %1702 = vmatpush.msra.mxu0 0.0
      %1703 = vmatpush.msra.mxu0 0.0
      %1704 = vmatpush.msra.mxu0 0.0
      %1705 = vmatpush.msra.mxu0 0.0
      %1706 = vmatpush.msra.mxu0 0.0
      %1707 = vmatpush.msra.mxu0 0.0
      %1708 = vmatpush.msra.mxu0 0.0
      %1709 = vmatpush.msra.mxu0 0.0
      %1710 = vmatpush.msra.mxu0 0.0
      %1711 = vmatpush.msra.mxu0 0.0
      %1712 = vmatpush.msra.mxu0 0.0
      %1713 = vmatpush.msra.mxu0 0.0
      %1714 = vmatpush.msra.mxu0 %v1676
      %1715 = vmatmul.f32.gmra.mxu0 %v1032
      %v1716 = vpop.f32.mrf.mxu0
      %v1717 = vadd.f32 0.0, %v1716
      %1718 = vdwg.mxu0
      %1719 = vmatpush.msra.mxu0 0.0
      %1720 = vmatpush.msra.mxu0 0.0
      %1721 = vmatpush.msra.mxu0 0.0
      %1722 = vmatpush.msra.mxu0 0.0
      %1723 = vmatpush.msra.mxu0 0.0
      %1724 = vmatpush.msra.mxu0 0.0
      %1725 = vmatpush.msra.mxu0 0.0
      %1726 = vmatpush.msra.mxu0 0.0
      %1727 = vmatpush.msra.mxu0 0.0
      %1728 = vmatpush.msra.mxu0 0.0
      %1729 = vmatpush.msra.mxu0 0.0
      %1730 = vmatpush.msra.mxu0 0.0
      %1731 = vmatpush.msra.mxu0 0.0
      %1732 = vmatpush.msra.mxu0 0.0
      %1733 = vmatpush.msra.mxu0 0.0
      %1734 = vmatpush.msra.mxu0 %v1678
      %1735 = vmatmul.f32.gmra.mxu0 %v1032
      %v1736 = vpop.f32.mrf.mxu0
      %v1737 = vadd.f32 0.0, %v1736
      %1738 = vdwg.mxu0
      %v1739 = vadd.f32 %v1667, %v1697
      %v1740 = vadd.f32 %v1668, %v1717
      %v1741 = vadd.f32 %v1669, %v1737
      %v1742 = vadd.f32 %v1739, %v424
      %v1743 = vadd.f32 %v1740, %v424
      %v1744 = vadd.f32 %v1741, %v424
      %v1745 = vmax.f32 %v1742, 0.0
      %v1746 = vmax.f32 %v1743, 0.0
      %v1747 = vmax.f32 %v1744, 0.0
      %v1748 = vmul.f32 %v1745, %v311
      %v1749 = vmul.f32 %v1746, %v312
      %v1750 = vmul.f32 %v1747, %v313
      %v1751 = vadd.f32 %v1748, %v408
      %v1752 = vadd.f32 %v1749, %v409
      %v1753 = vadd.f32 %v1750, %v410
      %1754 = vrot.lane.b32.xlu0 %v1751, 19
      %v1755 = vpop.permute.xlu0 %1754
      %1756 = vrot.lane.b32.xlu0 %v1752, 19
      %v1757 = vpop.permute.xlu0 %1756
      %1758 = vrot.lane.b32.xlu0 %v1753, 19
      %v1759 = vpop.permute.xlu0 %1758
      %v1760 = vsel %vm434, %v1757, %v1759
      %v1761 = vsel %vm434, %v1755, %v1757
      %v1762 = vsel %vm434, %v1759, %v1755
      %1763 = vrot.lane.b32.xlu0 %v1751, 18
      %v1764 = vpop.permute.xlu0 %1763
      %1765 = vrot.lane.b32.xlu0 %v1752, 18
      %v1766 = vpop.permute.xlu0 %1765
      %1767 = vrot.lane.b32.xlu0 %v1753, 18
      %v1768 = vpop.permute.xlu0 %1767
      %v1769 = vsel %vm444, %v1766, %v1768
      %v1770 = vsel %vm444, %v1764, %v1766
      %v1771 = vsel %vm444, %v1768, %v1764
      %1772 = vmatpush.msra.mxu0 0.0
      %1773 = vmatpush.msra.mxu0 0.0
      %1774 = vmatpush.msra.mxu0 0.0
      %1775 = vmatpush.msra.mxu0 0.0
      %1776 = vmatpush.msra.mxu0 0.0
      %1777 = vmatpush.msra.mxu0 0.0
      %1778 = vmatpush.msra.mxu0 0.0
      %1779 = vmatpush.msra.mxu0 0.0
      %1780 = vmatpush.msra.mxu0 0.0
      %1781 = vmatpush.msra.mxu0 0.0
      %1782 = vmatpush.msra.mxu0 0.0
      %1783 = vmatpush.msra.mxu0 0.0
      %1784 = vmatpush.msra.mxu0 0.0
      %1785 = vmatpush.msra.mxu0 0.0
      %1786 = vmatpush.msra.mxu0 0.0
      %1787 = vmatpush.msra.mxu0 %v1771
      %1788 = vmatmul.f32.gmra.mxu0 %v450
      %v1789 = vpop.f32.mrf.mxu0
      %v1790 = vadd.f32 0.0, %v1789
      %1791 = vdwg.mxu0
      %1792 = vmatpush.msra.mxu0 0.0
      %1793 = vmatpush.msra.mxu0 0.0
      %1794 = vmatpush.msra.mxu0 0.0
      %1795 = vmatpush.msra.mxu0 0.0
      %1796 = vmatpush.msra.mxu0 0.0
      %1797 = vmatpush.msra.mxu0 0.0
      %1798 = vmatpush.msra.mxu0 0.0
      %1799 = vmatpush.msra.mxu0 0.0
      %1800 = vmatpush.msra.mxu0 0.0
      %1801 = vmatpush.msra.mxu0 0.0
      %1802 = vmatpush.msra.mxu0 0.0
      %1803 = vmatpush.msra.mxu0 0.0
      %1804 = vmatpush.msra.mxu0 0.0
      %1805 = vmatpush.msra.mxu0 0.0
      %1806 = vmatpush.msra.mxu0 0.0
      %1807 = vmatpush.msra.mxu0 %v1770
      %1808 = vmatmul.f32.gmra.mxu0 %v450
      %v1809 = vpop.f32.mrf.mxu0
      %v1810 = vadd.f32 0.0, %v1809
      %1811 = vdwg.mxu0
      %1812 = vmatpush.msra.mxu0 0.0
      %1813 = vmatpush.msra.mxu0 0.0
      %1814 = vmatpush.msra.mxu0 0.0
      %1815 = vmatpush.msra.mxu0 0.0
      %1816 = vmatpush.msra.mxu0 0.0
      %1817 = vmatpush.msra.mxu0 0.0
      %1818 = vmatpush.msra.mxu0 0.0
      %1819 = vmatpush.msra.mxu0 0.0
      %1820 = vmatpush.msra.mxu0 0.0
      %1821 = vmatpush.msra.mxu0 0.0
      %1822 = vmatpush.msra.mxu0 0.0
      %1823 = vmatpush.msra.mxu0 0.0
      %1824 = vmatpush.msra.mxu0 0.0
      %1825 = vmatpush.msra.mxu0 0.0
      %1826 = vmatpush.msra.mxu0 0.0
      %1827 = vmatpush.msra.mxu0 %v1769
      %1828 = vmatmul.f32.gmra.mxu0 %v450
      %v1829 = vpop.f32.mrf.mxu0
      %v1830 = vadd.f32 0.0, %v1829
      %1831 = vdwg.mxu0
      %1832 = vmatpush.msra.mxu0 0.0
      %1833 = vmatpush.msra.mxu0 0.0
      %1834 = vmatpush.msra.mxu0 0.0
      %1835 = vmatpush.msra.mxu0 0.0
      %1836 = vmatpush.msra.mxu0 0.0
      %1837 = vmatpush.msra.mxu0 0.0
      %1838 = vmatpush.msra.mxu0 0.0
      %1839 = vmatpush.msra.mxu0 0.0
      %1840 = vmatpush.msra.mxu0 0.0
      %1841 = vmatpush.msra.mxu0 0.0
      %1842 = vmatpush.msra.mxu0 0.0
      %1843 = vmatpush.msra.mxu0 0.0
      %1844 = vmatpush.msra.mxu0 0.0
      %1845 = vmatpush.msra.mxu0 0.0
      %1846 = vmatpush.msra.mxu0 0.0
      %1847 = vmatpush.msra.mxu0 %v1762
      %1848 = vmatmul.f32.gmra.mxu0 %v513
      %v1849 = vpop.f32.mrf.mxu0
      %v1850 = vadd.f32 %v1790, %v1849
      %1851 = vdwg.mxu0
      %1852 = vmatpush.msra.mxu0 0.0
      %1853 = vmatpush.msra.mxu0 0.0
      %1854 = vmatpush.msra.mxu0 0.0
      %1855 = vmatpush.msra.mxu0 0.0
      %1856 = vmatpush.msra.mxu0 0.0
      %1857 = vmatpush.msra.mxu0 0.0
      %1858 = vmatpush.msra.mxu0 0.0
      %1859 = vmatpush.msra.mxu0 0.0
      %1860 = vmatpush.msra.mxu0 0.0
      %1861 = vmatpush.msra.mxu0 0.0
      %1862 = vmatpush.msra.mxu0 0.0
      %1863 = vmatpush.msra.mxu0 0.0
      %1864 = vmatpush.msra.mxu0 0.0
      %1865 = vmatpush.msra.mxu0 0.0
      %1866 = vmatpush.msra.mxu0 0.0
      %1867 = vmatpush.msra.mxu0 %v1761
      %1868 = vmatmul.f32.gmra.mxu0 %v513
      %v1869 = vpop.f32.mrf.mxu0
      %v1870 = vadd.f32 %v1810, %v1869
      %1871 = vdwg.mxu0
      %1872 = vmatpush.msra.mxu0 0.0
      %1873 = vmatpush.msra.mxu0 0.0
      %1874 = vmatpush.msra.mxu0 0.0
      %1875 = vmatpush.msra.mxu0 0.0
      %1876 = vmatpush.msra.mxu0 0.0
      %1877 = vmatpush.msra.mxu0 0.0
      %1878 = vmatpush.msra.mxu0 0.0
      %1879 = vmatpush.msra.mxu0 0.0
      %1880 = vmatpush.msra.mxu0 0.0
      %1881 = vmatpush.msra.mxu0 0.0
      %1882 = vmatpush.msra.mxu0 0.0
      %1883 = vmatpush.msra.mxu0 0.0
      %1884 = vmatpush.msra.mxu0 0.0
      %1885 = vmatpush.msra.mxu0 0.0
      %1886 = vmatpush.msra.mxu0 0.0
      %1887 = vmatpush.msra.mxu0 %v1760
      %1888 = vmatmul.f32.gmra.mxu0 %v513
      %v1889 = vpop.f32.mrf.mxu0
      %v1890 = vadd.f32 %v1830, %v1889
      %1891 = vdwg.mxu0
      %1892 = vrot.lane.b32.xlu0 %v1751, 17
      %v1893 = vpop.permute.xlu0 %1892
      %1894 = vrot.lane.b32.xlu0 %v1752, 17
      %v1895 = vpop.permute.xlu0 %1894
      %1896 = vrot.lane.b32.xlu0 %v1753, 17
      %v1897 = vpop.permute.xlu0 %1896
      %v1898 = vsel %vm581, %v1895, %v1897
      %v1899 = vsel %vm581, %v1893, %v1895
      %v1900 = vsel %vm581, %v1897, %v1893
      %1901 = vmatpush.msra.mxu0 0.0
      %1902 = vmatpush.msra.mxu0 0.0
      %1903 = vmatpush.msra.mxu0 0.0
      %1904 = vmatpush.msra.mxu0 0.0
      %1905 = vmatpush.msra.mxu0 0.0
      %1906 = vmatpush.msra.mxu0 0.0
      %1907 = vmatpush.msra.mxu0 0.0
      %1908 = vmatpush.msra.mxu0 0.0
      %1909 = vmatpush.msra.mxu0 0.0
      %1910 = vmatpush.msra.mxu0 0.0
      %1911 = vmatpush.msra.mxu0 0.0
      %1912 = vmatpush.msra.mxu0 0.0
      %1913 = vmatpush.msra.mxu0 0.0
      %1914 = vmatpush.msra.mxu0 0.0
      %1915 = vmatpush.msra.mxu0 0.0
      %1916 = vmatpush.msra.mxu0 %v1900
      %1917 = vmatmul.f32.gmra.mxu0 %v586
      %v1918 = vpop.f32.mrf.mxu0
      %v1919 = vadd.f32 0.0, %v1918
      %1920 = vdwg.mxu0
      %1921 = vmatpush.msra.mxu0 0.0
      %1922 = vmatpush.msra.mxu0 0.0
      %1923 = vmatpush.msra.mxu0 0.0
      %1924 = vmatpush.msra.mxu0 0.0
      %1925 = vmatpush.msra.mxu0 0.0
      %1926 = vmatpush.msra.mxu0 0.0
      %1927 = vmatpush.msra.mxu0 0.0
      %1928 = vmatpush.msra.mxu0 0.0
      %1929 = vmatpush.msra.mxu0 0.0
      %1930 = vmatpush.msra.mxu0 0.0
      %1931 = vmatpush.msra.mxu0 0.0
      %1932 = vmatpush.msra.mxu0 0.0
      %1933 = vmatpush.msra.mxu0 0.0
      %1934 = vmatpush.msra.mxu0 0.0
      %1935 = vmatpush.msra.mxu0 0.0
      %1936 = vmatpush.msra.mxu0 %v1899
      %1937 = vmatmul.f32.gmra.mxu0 %v586
      %v1938 = vpop.f32.mrf.mxu0
      %v1939 = vadd.f32 0.0, %v1938
      %1940 = vdwg.mxu0
      %1941 = vmatpush.msra.mxu0 0.0
      %1942 = vmatpush.msra.mxu0 0.0
      %1943 = vmatpush.msra.mxu0 0.0
      %1944 = vmatpush.msra.mxu0 0.0
      %1945 = vmatpush.msra.mxu0 0.0
      %1946 = vmatpush.msra.mxu0 0.0
      %1947 = vmatpush.msra.mxu0 0.0
      %1948 = vmatpush.msra.mxu0 0.0
      %1949 = vmatpush.msra.mxu0 0.0
      %1950 = vmatpush.msra.mxu0 0.0
      %1951 = vmatpush.msra.mxu0 0.0
      %1952 = vmatpush.msra.mxu0 0.0
      %1953 = vmatpush.msra.mxu0 0.0
      %1954 = vmatpush.msra.mxu0 0.0
      %1955 = vmatpush.msra.mxu0 0.0
      %1956 = vmatpush.msra.mxu0 %v1898
      %1957 = vmatmul.f32.gmra.mxu0 %v586
      %v1958 = vpop.f32.mrf.mxu0
      %v1959 = vadd.f32 0.0, %v1958
      %1960 = vdwg.mxu0
      %v1961 = vadd.f32 %v1850, %v1919
      %v1962 = vadd.f32 %v1870, %v1939
      %v1963 = vadd.f32 %v1890, %v1959
      %1964 = vrot.lane.b32.xlu0 %v1751, 1
      %v1965 = vpop.permute.xlu0 %1964
      %1966 = vrot.lane.b32.xlu0 %v1752, 1
      %v1967 = vpop.permute.xlu0 %1966
      %1968 = vrot.lane.b32.xlu0 %v1753, 1
      %v1969 = vpop.permute.xlu0 %1968
      %v1970 = vsel %vm657, %v1967, %v1969
      %v1971 = vsel %vm657, %v1965, %v1967
      %v1972 = vsel %vm657, %v1969, %v1965
      %1973 = vmatpush.msra.mxu0 0.0
      %1974 = vmatpush.msra.mxu0 0.0
      %1975 = vmatpush.msra.mxu0 0.0
      %1976 = vmatpush.msra.mxu0 0.0
      %1977 = vmatpush.msra.mxu0 0.0
      %1978 = vmatpush.msra.mxu0 0.0
      %1979 = vmatpush.msra.mxu0 0.0
      %1980 = vmatpush.msra.mxu0 0.0
      %1981 = vmatpush.msra.mxu0 0.0
      %1982 = vmatpush.msra.mxu0 0.0
      %1983 = vmatpush.msra.mxu0 0.0
      %1984 = vmatpush.msra.mxu0 0.0
      %1985 = vmatpush.msra.mxu0 0.0
      %1986 = vmatpush.msra.mxu0 0.0
      %1987 = vmatpush.msra.mxu0 0.0
      %1988 = vmatpush.msra.mxu0 %v1972
      %1989 = vmatmul.f32.gmra.mxu0 %v662
      %v1990 = vpop.f32.mrf.mxu0
      %v1991 = vadd.f32 0.0, %v1990
      %1992 = vdwg.mxu0
      %1993 = vmatpush.msra.mxu0 0.0
      %1994 = vmatpush.msra.mxu0 0.0
      %1995 = vmatpush.msra.mxu0 0.0
      %1996 = vmatpush.msra.mxu0 0.0
      %1997 = vmatpush.msra.mxu0 0.0
      %1998 = vmatpush.msra.mxu0 0.0
      %1999 = vmatpush.msra.mxu0 0.0
      %2000 = vmatpush.msra.mxu0 0.0
      %2001 = vmatpush.msra.mxu0 0.0
      %2002 = vmatpush.msra.mxu0 0.0
      %2003 = vmatpush.msra.mxu0 0.0
      %2004 = vmatpush.msra.mxu0 0.0
      %2005 = vmatpush.msra.mxu0 0.0
      %2006 = vmatpush.msra.mxu0 0.0
      %2007 = vmatpush.msra.mxu0 0.0
      %2008 = vmatpush.msra.mxu0 %v1971
      %2009 = vmatmul.f32.gmra.mxu0 %v662
      %v2010 = vpop.f32.mrf.mxu0
      %v2011 = vadd.f32 0.0, %v2010
      %2012 = vdwg.mxu0
      %2013 = vmatpush.msra.mxu0 0.0
      %2014 = vmatpush.msra.mxu0 0.0
      %2015 = vmatpush.msra.mxu0 0.0
      %2016 = vmatpush.msra.mxu0 0.0
      %2017 = vmatpush.msra.mxu0 0.0
      %2018 = vmatpush.msra.mxu0 0.0
      %2019 = vmatpush.msra.mxu0 0.0
      %2020 = vmatpush.msra.mxu0 0.0
      %2021 = vmatpush.msra.mxu0 0.0
      %2022 = vmatpush.msra.mxu0 0.0
      %2023 = vmatpush.msra.mxu0 0.0
      %2024 = vmatpush.msra.mxu0 0.0
      %2025 = vmatpush.msra.mxu0 0.0
      %2026 = vmatpush.msra.mxu0 0.0
      %2027 = vmatpush.msra.mxu0 0.0
      %2028 = vmatpush.msra.mxu0 %v1970
      %2029 = vmatmul.f32.gmra.mxu0 %v662
      %v2030 = vpop.f32.mrf.mxu0
      %v2031 = vadd.f32 0.0, %v2030
      %2032 = vdwg.mxu0
      %v2033 = vadd.f32 %v1961, %v1991
      %v2034 = vadd.f32 %v1962, %v2011
      %v2035 = vadd.f32 %v1963, %v2031
      %2036 = vmatpush.msra.mxu0 0.0
      %2037 = vmatpush.msra.mxu0 0.0
      %2038 = vmatpush.msra.mxu0 0.0
      %2039 = vmatpush.msra.mxu0 0.0
      %2040 = vmatpush.msra.mxu0 0.0
      %2041 = vmatpush.msra.mxu0 0.0
      %2042 = vmatpush.msra.mxu0 0.0
      %2043 = vmatpush.msra.mxu0 0.0
      %2044 = vmatpush.msra.mxu0 0.0
      %2045 = vmatpush.msra.mxu0 0.0
      %2046 = vmatpush.msra.mxu0 0.0
      %2047 = vmatpush.msra.mxu0 0.0
      %2048 = vmatpush.msra.mxu0 0.0
      %2049 = vmatpush.msra.mxu0 0.0
      %2050 = vmatpush.msra.mxu0 0.0
      %2051 = vmatpush.msra.mxu0 %v1751
      %2052 = vmatmul.f32.gmra.mxu0 %v728
      %v2053 = vpop.f32.mrf.mxu0
      %v2054 = vadd.f32 0.0, %v2053
      %2055 = vdwg.mxu0
      %2056 = vmatpush.msra.mxu0 0.0
      %2057 = vmatpush.msra.mxu0 0.0
      %2058 = vmatpush.msra.mxu0 0.0
      %2059 = vmatpush.msra.mxu0 0.0
      %2060 = vmatpush.msra.mxu0 0.0
      %2061 = vmatpush.msra.mxu0 0.0
      %2062 = vmatpush.msra.mxu0 0.0
      %2063 = vmatpush.msra.mxu0 0.0
      %2064 = vmatpush.msra.mxu0 0.0
      %2065 = vmatpush.msra.mxu0 0.0
      %2066 = vmatpush.msra.mxu0 0.0
      %2067 = vmatpush.msra.mxu0 0.0
      %2068 = vmatpush.msra.mxu0 0.0
      %2069 = vmatpush.msra.mxu0 0.0
      %2070 = vmatpush.msra.mxu0 0.0
      %2071 = vmatpush.msra.mxu0 %v1752
      %2072 = vmatmul.f32.gmra.mxu0 %v728
      %v2073 = vpop.f32.mrf.mxu0
      %v2074 = vadd.f32 0.0, %v2073
      %2075 = vdwg.mxu0
      %2076 = vmatpush.msra.mxu0 0.0
      %2077 = vmatpush.msra.mxu0 0.0
      %2078 = vmatpush.msra.mxu0 0.0
      %2079 = vmatpush.msra.mxu0 0.0
      %2080 = vmatpush.msra.mxu0 0.0
      %2081 = vmatpush.msra.mxu0 0.0
      %2082 = vmatpush.msra.mxu0 0.0
      %2083 = vmatpush.msra.mxu0 0.0
      %2084 = vmatpush.msra.mxu0 0.0
      %2085 = vmatpush.msra.mxu0 0.0
      %2086 = vmatpush.msra.mxu0 0.0
      %2087 = vmatpush.msra.mxu0 0.0
      %2088 = vmatpush.msra.mxu0 0.0
      %2089 = vmatpush.msra.mxu0 0.0
      %2090 = vmatpush.msra.mxu0 0.0
      %2091 = vmatpush.msra.mxu0 %v1753
      %2092 = vmatmul.f32.gmra.mxu0 %v728
      %v2093 = vpop.f32.mrf.mxu0
      %v2094 = vadd.f32 0.0, %v2093
      %2095 = vdwg.mxu0
      %v2096 = vadd.f32 %v2033, %v2054
      %v2097 = vadd.f32 %v2034, %v2074
      %v2098 = vadd.f32 %v2035, %v2094
      %2099 = vrot.lane.b32.xlu0 %v1751, 127
      %v2100 = vpop.permute.xlu0 %2099
      %2101 = vrot.lane.b32.xlu0 %v1752, 127
      %v2102 = vpop.permute.xlu0 %2101
      %2103 = vrot.lane.b32.xlu0 %v1753, 127
      %v2104 = vpop.permute.xlu0 %2103
      %v2105 = vsel %vm799, %v2102, %v2104
      %v2106 = vsel %vm799, %v2100, %v2102
      %v2107 = vsel %vm799, %v2104, %v2100
      %2108 = vmatpush.msra.mxu0 0.0
      %2109 = vmatpush.msra.mxu0 0.0
      %2110 = vmatpush.msra.mxu0 0.0
      %2111 = vmatpush.msra.mxu0 0.0
      %2112 = vmatpush.msra.mxu0 0.0
      %2113 = vmatpush.msra.mxu0 0.0
      %2114 = vmatpush.msra.mxu0 0.0
      %2115 = vmatpush.msra.mxu0 0.0
      %2116 = vmatpush.msra.mxu0 0.0
      %2117 = vmatpush.msra.mxu0 0.0
      %2118 = vmatpush.msra.mxu0 0.0
      %2119 = vmatpush.msra.mxu0 0.0
      %2120 = vmatpush.msra.mxu0 0.0
      %2121 = vmatpush.msra.mxu0 0.0
      %2122 = vmatpush.msra.mxu0 0.0
      %2123 = vmatpush.msra.mxu0 %v2106
      %2124 = vmatmul.f32.gmra.mxu0 %v804
      %v2125 = vpop.f32.mrf.mxu0
      %v2126 = vadd.f32 0.0, %v2125
      %2127 = vdwg.mxu0
      %2128 = vmatpush.msra.mxu0 0.0
      %2129 = vmatpush.msra.mxu0 0.0
      %2130 = vmatpush.msra.mxu0 0.0
      %2131 = vmatpush.msra.mxu0 0.0
      %2132 = vmatpush.msra.mxu0 0.0
      %2133 = vmatpush.msra.mxu0 0.0
      %2134 = vmatpush.msra.mxu0 0.0
      %2135 = vmatpush.msra.mxu0 0.0
      %2136 = vmatpush.msra.mxu0 0.0
      %2137 = vmatpush.msra.mxu0 0.0
      %2138 = vmatpush.msra.mxu0 0.0
      %2139 = vmatpush.msra.mxu0 0.0
      %2140 = vmatpush.msra.mxu0 0.0
      %2141 = vmatpush.msra.mxu0 0.0
      %2142 = vmatpush.msra.mxu0 0.0
      %2143 = vmatpush.msra.mxu0 %v2105
      %2144 = vmatmul.f32.gmra.mxu0 %v804
      %v2145 = vpop.f32.mrf.mxu0
      %v2146 = vadd.f32 0.0, %v2145
      %2147 = vdwg.mxu0
      %2148 = vmatpush.msra.mxu0 0.0
      %2149 = vmatpush.msra.mxu0 0.0
      %2150 = vmatpush.msra.mxu0 0.0
      %2151 = vmatpush.msra.mxu0 0.0
      %2152 = vmatpush.msra.mxu0 0.0
      %2153 = vmatpush.msra.mxu0 0.0
      %2154 = vmatpush.msra.mxu0 0.0
      %2155 = vmatpush.msra.mxu0 0.0
      %2156 = vmatpush.msra.mxu0 0.0
      %2157 = vmatpush.msra.mxu0 0.0
      %2158 = vmatpush.msra.mxu0 0.0
      %2159 = vmatpush.msra.mxu0 0.0
      %2160 = vmatpush.msra.mxu0 0.0
      %2161 = vmatpush.msra.mxu0 0.0
      %2162 = vmatpush.msra.mxu0 0.0
      %2163 = vmatpush.msra.mxu0 %v2107
      %2164 = vmatmul.f32.gmra.mxu0 %v804
      %v2165 = vpop.f32.mrf.mxu0
      %v2166 = vadd.f32 0.0, %v2165
      %2167 = vdwg.mxu0
      %v2168 = vadd.f32 %v2096, %v2126
      %v2169 = vadd.f32 %v2097, %v2146
      %v2170 = vadd.f32 %v2098, %v2166
      %2171 = vrot.lane.b32.xlu0 %v1751, 111
      %v2172 = vpop.permute.xlu0 %2171
      %2173 = vrot.lane.b32.xlu0 %v1752, 111
      %v2174 = vpop.permute.xlu0 %2173
      %2175 = vrot.lane.b32.xlu0 %v1753, 111
      %v2176 = vpop.permute.xlu0 %2175
      %v2177 = vsel %vm875, %v2174, %v2176
      %v2178 = vsel %vm875, %v2172, %v2174
      %v2179 = vsel %vm875, %v2176, %v2172
      %2180 = vmatpush.msra.mxu0 0.0
      %2181 = vmatpush.msra.mxu0 0.0
      %2182 = vmatpush.msra.mxu0 0.0
      %2183 = vmatpush.msra.mxu0 0.0
      %2184 = vmatpush.msra.mxu0 0.0
      %2185 = vmatpush.msra.mxu0 0.0
      %2186 = vmatpush.msra.mxu0 0.0
      %2187 = vmatpush.msra.mxu0 0.0
      %2188 = vmatpush.msra.mxu0 0.0
      %2189 = vmatpush.msra.mxu0 0.0
      %2190 = vmatpush.msra.mxu0 0.0
      %2191 = vmatpush.msra.mxu0 0.0
      %2192 = vmatpush.msra.mxu0 0.0
      %2193 = vmatpush.msra.mxu0 0.0
      %2194 = vmatpush.msra.mxu0 0.0
      %2195 = vmatpush.msra.mxu0 %v2178
      %2196 = vmatmul.f32.gmra.mxu0 %v880
      %v2197 = vpop.f32.mrf.mxu0
      %v2198 = vadd.f32 0.0, %v2197
      %2199 = vdwg.mxu0
      %2200 = vmatpush.msra.mxu0 0.0
      %2201 = vmatpush.msra.mxu0 0.0
      %2202 = vmatpush.msra.mxu0 0.0
      %2203 = vmatpush.msra.mxu0 0.0
      %2204 = vmatpush.msra.mxu0 0.0
      %2205 = vmatpush.msra.mxu0 0.0
      %2206 = vmatpush.msra.mxu0 0.0
      %2207 = vmatpush.msra.mxu0 0.0
      %2208 = vmatpush.msra.mxu0 0.0
      %2209 = vmatpush.msra.mxu0 0.0
      %2210 = vmatpush.msra.mxu0 0.0
      %2211 = vmatpush.msra.mxu0 0.0
      %2212 = vmatpush.msra.mxu0 0.0
      %2213 = vmatpush.msra.mxu0 0.0
      %2214 = vmatpush.msra.mxu0 0.0
      %2215 = vmatpush.msra.mxu0 %v2177
      %2216 = vmatmul.f32.gmra.mxu0 %v880
      %v2217 = vpop.f32.mrf.mxu0
      %v2218 = vadd.f32 0.0, %v2217
      %2219 = vdwg.mxu0
      %2220 = vmatpush.msra.mxu0 0.0
      %2221 = vmatpush.msra.mxu0 0.0
      %2222 = vmatpush.msra.mxu0 0.0
      %2223 = vmatpush.msra.mxu0 0.0
      %2224 = vmatpush.msra.mxu0 0.0
      %2225 = vmatpush.msra.mxu0 0.0
      %2226 = vmatpush.msra.mxu0 0.0
      %2227 = vmatpush.msra.mxu0 0.0
      %2228 = vmatpush.msra.mxu0 0.0
      %2229 = vmatpush.msra.mxu0 0.0
      %2230 = vmatpush.msra.mxu0 0.0
      %2231 = vmatpush.msra.mxu0 0.0
      %2232 = vmatpush.msra.mxu0 0.0
      %2233 = vmatpush.msra.mxu0 0.0
      %2234 = vmatpush.msra.mxu0 0.0
      %2235 = vmatpush.msra.mxu0 %v2179
      %2236 = vmatmul.f32.gmra.mxu0 %v880
      %v2237 = vpop.f32.mrf.mxu0
      %v2238 = vadd.f32 0.0, %v2237
      %2239 = vdwg.mxu0
      %v2240 = vadd.f32 %v2168, %v2198
      %v2241 = vadd.f32 %v2169, %v2218
      %v2242 = vadd.f32 %v2170, %v2238
      %2243 = vrot.lane.b32.xlu0 %v1751, 110
      %v2244 = vpop.permute.xlu0 %2243
      %2245 = vrot.lane.b32.xlu0 %v1752, 110
      %v2246 = vpop.permute.xlu0 %2245
      %2247 = vrot.lane.b32.xlu0 %v1753, 110
      %v2248 = vpop.permute.xlu0 %2247
      %v2249 = vsel %vm951, %v2246, %v2248
      %v2250 = vsel %vm951, %v2244, %v2246
      %v2251 = vsel %vm951, %v2248, %v2244
      %2252 = vmatpush.msra.mxu0 0.0
      %2253 = vmatpush.msra.mxu0 0.0
      %2254 = vmatpush.msra.mxu0 0.0
      %2255 = vmatpush.msra.mxu0 0.0
      %2256 = vmatpush.msra.mxu0 0.0
      %2257 = vmatpush.msra.mxu0 0.0
      %2258 = vmatpush.msra.mxu0 0.0
      %2259 = vmatpush.msra.mxu0 0.0
      %2260 = vmatpush.msra.mxu0 0.0
      %2261 = vmatpush.msra.mxu0 0.0
      %2262 = vmatpush.msra.mxu0 0.0
      %2263 = vmatpush.msra.mxu0 0.0
      %2264 = vmatpush.msra.mxu0 0.0
      %2265 = vmatpush.msra.mxu0 0.0
      %2266 = vmatpush.msra.mxu0 0.0
      %2267 = vmatpush.msra.mxu0 %v2250
      %2268 = vmatmul.f32.gmra.mxu0 %v956
      %v2269 = vpop.f32.mrf.mxu0
      %v2270 = vadd.f32 0.0, %v2269
      %2271 = vdwg.mxu0
      %2272 = vmatpush.msra.mxu0 0.0
      %2273 = vmatpush.msra.mxu0 0.0
      %2274 = vmatpush.msra.mxu0 0.0
      %2275 = vmatpush.msra.mxu0 0.0
      %2276 = vmatpush.msra.mxu0 0.0
      %2277 = vmatpush.msra.mxu0 0.0
      %2278 = vmatpush.msra.mxu0 0.0
      %2279 = vmatpush.msra.mxu0 0.0
      %2280 = vmatpush.msra.mxu0 0.0
      %2281 = vmatpush.msra.mxu0 0.0
      %2282 = vmatpush.msra.mxu0 0.0
      %2283 = vmatpush.msra.mxu0 0.0
      %2284 = vmatpush.msra.mxu0 0.0
      %2285 = vmatpush.msra.mxu0 0.0
      %2286 = vmatpush.msra.mxu0 0.0
      %2287 = vmatpush.msra.mxu0 %v2249
      %2288 = vmatmul.f32.gmra.mxu0 %v956
      %v2289 = vpop.f32.mrf.mxu0
      %v2290 = vadd.f32 0.0, %v2289
      %2291 = vdwg.mxu0
      %2292 = vmatpush.msra.mxu0 0.0
      %2293 = vmatpush.msra.mxu0 0.0
      %2294 = vmatpush.msra.mxu0 0.0
      %2295 = vmatpush.msra.mxu0 0.0
      %2296 = vmatpush.msra.mxu0 0.0
      %2297 = vmatpush.msra.mxu0 0.0
      %2298 = vmatpush.msra.mxu0 0.0
      %2299 = vmatpush.msra.mxu0 0.0
      %2300 = vmatpush.msra.mxu0 0.0
      %2301 = vmatpush.msra.mxu0 0.0
      %2302 = vmatpush.msra.mxu0 0.0
      %2303 = vmatpush.msra.mxu0 0.0
      %2304 = vmatpush.msra.mxu0 0.0
      %2305 = vmatpush.msra.mxu0 0.0
      %2306 = vmatpush.msra.mxu0 0.0
      %2307 = vmatpush.msra.mxu0 %v2251
      %2308 = vmatmul.f32.gmra.mxu0 %v956
      %v2309 = vpop.f32.mrf.mxu0
      %v2310 = vadd.f32 0.0, %v2309
      %2311 = vdwg.mxu0
      %v2312 = vadd.f32 %v2240, %v2270
      %v2313 = vadd.f32 %v2241, %v2290
      %v2314 = vadd.f32 %v2242, %v2310
      %2315 = vrot.lane.b32.xlu0 %v1751, 109
      %v2316 = vpop.permute.xlu0 %2315
      %2317 = vrot.lane.b32.xlu0 %v1752, 109
      %v2318 = vpop.permute.xlu0 %2317
      %2319 = vrot.lane.b32.xlu0 %v1753, 109
      %v2320 = vpop.permute.xlu0 %2319
      %v2321 = vsel %vm1027, %v2318, %v2320
      %v2322 = vsel %vm1027, %v2316, %v2318
      %v2323 = vsel %vm1027, %v2320, %v2316
      %2324 = vmatpush.msra.mxu0 0.0
      %2325 = vmatpush.msra.mxu0 0.0
      %2326 = vmatpush.msra.mxu0 0.0
      %2327 = vmatpush.msra.mxu0 0.0
      %2328 = vmatpush.msra.mxu0 0.0
      %2329 = vmatpush.msra.mxu0 0.0
      %2330 = vmatpush.msra.mxu0 0.0
      %2331 = vmatpush.msra.mxu0 0.0
      %2332 = vmatpush.msra.mxu0 0.0
      %2333 = vmatpush.msra.mxu0 0.0
      %2334 = vmatpush.msra.mxu0 0.0
      %2335 = vmatpush.msra.mxu0 0.0
      %2336 = vmatpush.msra.mxu0 0.0
      %2337 = vmatpush.msra.mxu0 0.0
      %2338 = vmatpush.msra.mxu0 0.0
      %2339 = vmatpush.msra.mxu0 %v2322
      %2340 = vmatmul.f32.gmra.mxu0 %v1032
      %v2341 = vpop.f32.mrf.mxu0
      %v2342 = vadd.f32 0.0, %v2341
      %2343 = vdwg.mxu0
      %2344 = vmatpush.msra.mxu0 0.0
      %2345 = vmatpush.msra.mxu0 0.0
      %2346 = vmatpush.msra.mxu0 0.0
      %2347 = vmatpush.msra.mxu0 0.0
      %2348 = vmatpush.msra.mxu0 0.0
      %2349 = vmatpush.msra.mxu0 0.0
      %2350 = vmatpush.msra.mxu0 0.0
      %2351 = vmatpush.msra.mxu0 0.0
      %2352 = vmatpush.msra.mxu0 0.0
      %2353 = vmatpush.msra.mxu0 0.0
      %2354 = vmatpush.msra.mxu0 0.0
      %2355 = vmatpush.msra.mxu0 0.0
      %2356 = vmatpush.msra.mxu0 0.0
      %2357 = vmatpush.msra.mxu0 0.0
      %2358 = vmatpush.msra.mxu0 0.0
      %2359 = vmatpush.msra.mxu0 %v2321
      %2360 = vmatmul.f32.gmra.mxu0 %v1032
      %v2361 = vpop.f32.mrf.mxu0
      %v2362 = vadd.f32 0.0, %v2361
      %2363 = vdwg.mxu0
      %2364 = vmatpush.msra.mxu0 0.0
      %2365 = vmatpush.msra.mxu0 0.0
      %2366 = vmatpush.msra.mxu0 0.0
      %2367 = vmatpush.msra.mxu0 0.0
      %2368 = vmatpush.msra.mxu0 0.0
      %2369 = vmatpush.msra.mxu0 0.0
      %2370 = vmatpush.msra.mxu0 0.0
      %2371 = vmatpush.msra.mxu0 0.0
      %2372 = vmatpush.msra.mxu0 0.0
      %2373 = vmatpush.msra.mxu0 0.0
      %2374 = vmatpush.msra.mxu0 0.0
      %2375 = vmatpush.msra.mxu0 0.0
      %2376 = vmatpush.msra.mxu0 0.0
      %2377 = vmatpush.msra.mxu0 0.0
      %2378 = vmatpush.msra.mxu0 0.0
      %2379 = vmatpush.msra.mxu0 %v2323
      %2380 = vmatmul.f32.gmra.mxu0 %v1032
      %v2381 = vpop.f32.mrf.mxu0
      %v2382 = vadd.f32 0.0, %v2381
      %2383 = vdwg.mxu0
      %v2384 = vadd.f32 %v2312, %v2342
      %v2385 = vadd.f32 %v2313, %v2362
      %v2386 = vadd.f32 %v2314, %v2382
      %v2387 = vadd.f32 %v2384, %v424
      %v2388 = vadd.f32 %v2385, %v424
      %v2389 = vadd.f32 %v2386, %v424
      %v2390 = vmax.f32 %v2387, 0.0
      %v2391 = vmax.f32 %v2388, 0.0
      %v2392 = vmax.f32 %v2389, 0.0
      %v2393 = vmul.f32 %v2390, %v311
      %v2394 = vmul.f32 %v2391, %v312
      %v2395 = vmul.f32 %v2392, %v313
      %v2396 = vld [vmem:[%s6] sm:$0xff]
      %v2397 = vld [vmem:[%s6 + $0x8] sm:$0xff]
      %v2398 = vld [vmem:[%s6 + $0x10] sm:$0xff]
      %v2399 = vld [vmem:[%s6 + $0x18] sm:$0xff]
      %v2400 = vld [vmem:[%s6 + $0x20] sm:$0xff]
      %v2401 = vld [vmem:[%s6 + $0x28] sm:$0xff]
      %v2402 = vld [vmem:[%s6 + $0x30] sm:$0xff]
      %v2403 = vld [vmem:[%s6 + $0x38] sm:$0xff]
      %v2404 = vld [vmem:[%s6 + $0x40] sm:$0xff]
      %v2405 = vld [vmem:[%s7] sm:$0xff]
      %2407 = vset.pattern.permute.xlu0 0
      %2408 = vperm.xlu0 %2407, %v2405
      %v2409 = vpop.permute.xlu0 %2408
      %2411 = vrot.lane.b32.xlu0 %v2393, 19
      %v2412 = vpop.permute.xlu0 %2411
      %2413 = vrot.lane.b32.xlu0 %v2394, 19
      %v2414 = vpop.permute.xlu0 %2413
      %2415 = vrot.lane.b32.xlu0 %v2395, 19
      %v2416 = vpop.permute.xlu0 %2415
      %v2417 = vsel %vm434, %v2414, %v2416
      %v2418 = vsel %vm434, %v2412, %v2414
      %v2419 = vsel %vm434, %v2416, %v2412
      %2420 = vrot.lane.b32.xlu0 %v2393, 18
      %v2421 = vpop.permute.xlu0 %2420
      %2422 = vrot.lane.b32.xlu0 %v2394, 18
      %v2423 = vpop.permute.xlu0 %2422
      %2424 = vrot.lane.b32.xlu0 %v2395, 18
      %v2425 = vpop.permute.xlu0 %2424
      %v2426 = vsel %vm444, %v2423, %v2425
      %v2427 = vsel %vm444, %v2421, %v2423
      %v2428 = vsel %vm444, %v2425, %v2421
      %v2430 = vsel %vm448, %v2397, 0
      %2432 = vmatpush.msra.mxu0 0.0
      %2433 = vmatpush.msra.mxu0 0.0
      %2434 = vmatpush.msra.mxu0 0.0
      %2435 = vmatpush.msra.mxu0 0.0
      %2436 = vmatpush.msra.mxu0 0.0
      %2437 = vmatpush.msra.mxu0 0.0
      %2438 = vmatpush.msra.mxu0 0.0
      %2439 = vmatpush.msra.mxu0 0.0
      %2440 = vmatpush.msra.mxu0 0.0
      %2441 = vmatpush.msra.mxu0 0.0
      %2442 = vmatpush.msra.mxu0 0.0
      %2443 = vmatpush.msra.mxu0 0.0
      %2444 = vmatpush.msra.mxu0 0.0
      %2445 = vmatpush.msra.mxu0 0.0
      %2446 = vmatpush.msra.mxu0 0.0
      %2447 = vmatpush.msra.mxu0 %v2428
      %2448 = vmatmul.f32.gmra.mxu0 %v2430
      %v2449 = vpop.f32.mrf.mxu0
      %v2450 = vadd.f32 0.0, %v2449
      %2451 = vdwg.mxu0
      %2452 = vmatpush.msra.mxu0 0.0
      %2453 = vmatpush.msra.mxu0 0.0
      %2454 = vmatpush.msra.mxu0 0.0
      %2455 = vmatpush.msra.mxu0 0.0
      %2456 = vmatpush.msra.mxu0 0.0
      %2457 = vmatpush.msra.mxu0 0.0
      %2458 = vmatpush.msra.mxu0 0.0
      %2459 = vmatpush.msra.mxu0 0.0
      %2460 = vmatpush.msra.mxu0 0.0
      %2461 = vmatpush.msra.mxu0 0.0
      %2462 = vmatpush.msra.mxu0 0.0
      %2463 = vmatpush.msra.mxu0 0.0
      %2464 = vmatpush.msra.mxu0 0.0
      %2465 = vmatpush.msra.mxu0 0.0
      %2466 = vmatpush.msra.mxu0 0.0
      %2467 = vmatpush.msra.mxu0 %v2427
      %2468 = vmatmul.f32.gmra.mxu0 %v2430
      %v2469 = vpop.f32.mrf.mxu0
      %v2470 = vadd.f32 0.0, %v2469
      %2471 = vdwg.mxu0
      %2472 = vmatpush.msra.mxu0 0.0
      %2473 = vmatpush.msra.mxu0 0.0
      %2474 = vmatpush.msra.mxu0 0.0
      %2475 = vmatpush.msra.mxu0 0.0
      %2476 = vmatpush.msra.mxu0 0.0
      %2477 = vmatpush.msra.mxu0 0.0
      %2478 = vmatpush.msra.mxu0 0.0
      %2479 = vmatpush.msra.mxu0 0.0
      %2480 = vmatpush.msra.mxu0 0.0
      %2481 = vmatpush.msra.mxu0 0.0
      %2482 = vmatpush.msra.mxu0 0.0
      %2483 = vmatpush.msra.mxu0 0.0
      %2484 = vmatpush.msra.mxu0 0.0
      %2485 = vmatpush.msra.mxu0 0.0
      %2486 = vmatpush.msra.mxu0 0.0
      %2487 = vmatpush.msra.mxu0 %v2426
      %2488 = vmatmul.f32.gmra.mxu0 %v2430
      %v2489 = vpop.f32.mrf.mxu0
      %v2490 = vadd.f32 0.0, %v2489
      %2491 = vdwg.mxu0
      %v2493 = vsel %vm448, %v2396, 0
      %2495 = vmatpush.msra.mxu0 0.0
      %2496 = vmatpush.msra.mxu0 0.0
      %2497 = vmatpush.msra.mxu0 0.0
      %2498 = vmatpush.msra.mxu0 0.0
      %2499 = vmatpush.msra.mxu0 0.0
      %2500 = vmatpush.msra.mxu0 0.0
      %2501 = vmatpush.msra.mxu0 0.0
      %2502 = vmatpush.msra.mxu0 0.0
      %2503 = vmatpush.msra.mxu0 0.0
      %2504 = vmatpush.msra.mxu0 0.0
      %2505 = vmatpush.msra.mxu0 0.0
      %2506 = vmatpush.msra.mxu0 0.0
      %2507 = vmatpush.msra.mxu0 0.0
      %2508 = vmatpush.msra.mxu0 0.0
      %2509 = vmatpush.msra.mxu0 0.0
      %2510 = vmatpush.msra.mxu0 %v2419
      %2511 = vmatmul.f32.gmra.mxu0 %v2493
      %v2512 = vpop.f32.mrf.mxu0
      %v2513 = vadd.f32 %v2450, %v2512
      %2514 = vdwg.mxu0
      %2515 = vmatpush.msra.mxu0 0.0
      %2516 = vmatpush.msra.mxu0 0.0
      %2517 = vmatpush.msra.mxu0 0.0
      %2518 = vmatpush.msra.mxu0 0.0
      %2519 = vmatpush.msra.mxu0 0.0
      %2520 = vmatpush.msra.mxu0 0.0
      %2521 = vmatpush.msra.mxu0 0.0
      %2522 = vmatpush.msra.mxu0 0.0
      %2523 = vmatpush.msra.mxu0 0.0
      %2524 = vmatpush.msra.mxu0 0.0
      %2525 = vmatpush.msra.mxu0 0.0
      %2526 = vmatpush.msra.mxu0 0.0
      %2527 = vmatpush.msra.mxu0 0.0
      %2528 = vmatpush.msra.mxu0 0.0
      %2529 = vmatpush.msra.mxu0 0.0
      %2530 = vmatpush.msra.mxu0 %v2418
      %2531 = vmatmul.f32.gmra.mxu0 %v2493
      %v2532 = vpop.f32.mrf.mxu0
      %v2533 = vadd.f32 %v2470, %v2532
      %2534 = vdwg.mxu0
      %2535 = vmatpush.msra.mxu0 0.0
      %2536 = vmatpush.msra.mxu0 0.0
      %2537 = vmatpush.msra.mxu0 0.0
      %2538 = vmatpush.msra.mxu0 0.0
      %2539 = vmatpush.msra.mxu0 0.0
      %2540 = vmatpush.msra.mxu0 0.0
      %2541 = vmatpush.msra.mxu0 0.0
      %2542 = vmatpush.msra.mxu0 0.0
      %2543 = vmatpush.msra.mxu0 0.0
      %2544 = vmatpush.msra.mxu0 0.0
      %2545 = vmatpush.msra.mxu0 0.0
      %2546 = vmatpush.msra.mxu0 0.0
      %2547 = vmatpush.msra.mxu0 0.0
      %2548 = vmatpush.msra.mxu0 0.0
      %2549 = vmatpush.msra.mxu0 0.0
      %2550 = vmatpush.msra.mxu0 %v2417
      %2551 = vmatmul.f32.gmra.mxu0 %v2493
      %v2552 = vpop.f32.mrf.mxu0
      %v2553 = vadd.f32 %v2490, %v2552
      %2554 = vdwg.mxu0
      %2555 = vrot.lane.b32.xlu0 %v2393, 17
      %v2556 = vpop.permute.xlu0 %2555
      %2557 = vrot.lane.b32.xlu0 %v2394, 17
      %v2558 = vpop.permute.xlu0 %2557
      %2559 = vrot.lane.b32.xlu0 %v2395, 17
      %v2560 = vpop.permute.xlu0 %2559
      %v2561 = vsel %vm581, %v2558, %v2560
      %v2562 = vsel %vm581, %v2556, %v2558
      %v2563 = vsel %vm581, %v2560, %v2556
      %v2565 = vsel %vm448, %v2398, 0
      %2567 = vmatpush.msra.mxu0 0.0
      %2568 = vmatpush.msra.mxu0 0.0
      %2569 = vmatpush.msra.mxu0 0.0
      %2570 = vmatpush.msra.mxu0 0.0
      %2571 = vmatpush.msra.mxu0 0.0
      %2572 = vmatpush.msra.mxu0 0.0
      %2573 = vmatpush.msra.mxu0 0.0
      %2574 = vmatpush.msra.mxu0 0.0
      %2575 = vmatpush.msra.mxu0 0.0
      %2576 = vmatpush.msra.mxu0 0.0
      %2577 = vmatpush.msra.mxu0 0.0
      %2578 = vmatpush.msra.mxu0 0.0
      %2579 = vmatpush.msra.mxu0 0.0
      %2580 = vmatpush.msra.mxu0 0.0
      %2581 = vmatpush.msra.mxu0 0.0
      %2582 = vmatpush.msra.mxu0 %v2563
      %2583 = vmatmul.f32.gmra.mxu0 %v2565
      %v2584 = vpop.f32.mrf.mxu0
      %v2585 = vadd.f32 0.0, %v2584
      %2586 = vdwg.mxu0
      %2587 = vmatpush.msra.mxu0 0.0
      %2588 = vmatpush.msra.mxu0 0.0
      %2589 = vmatpush.msra.mxu0 0.0
      %2590 = vmatpush.msra.mxu0 0.0
      %2591 = vmatpush.msra.mxu0 0.0
      %2592 = vmatpush.msra.mxu0 0.0
      %2593 = vmatpush.msra.mxu0 0.0
      %2594 = vmatpush.msra.mxu0 0.0
      %2595 = vmatpush.msra.mxu0 0.0
      %2596 = vmatpush.msra.mxu0 0.0
      %2597 = vmatpush.msra.mxu0 0.0
      %2598 = vmatpush.msra.mxu0 0.0
      %2599 = vmatpush.msra.mxu0 0.0
      %2600 = vmatpush.msra.mxu0 0.0
      %2601 = vmatpush.msra.mxu0 0.0
      %2602 = vmatpush.msra.mxu0 %v2562
      %2603 = vmatmul.f32.gmra.mxu0 %v2565
      %v2604 = vpop.f32.mrf.mxu0
      %v2605 = vadd.f32 0.0, %v2604
      %2606 = vdwg.mxu0
      %2607 = vmatpush.msra.mxu0 0.0
      %2608 = vmatpush.msra.mxu0 0.0
      %2609 = vmatpush.msra.mxu0 0.0
      %2610 = vmatpush.msra.mxu0 0.0
      %2611 = vmatpush.msra.mxu0 0.0
      %2612 = vmatpush.msra.mxu0 0.0
      %2613 = vmatpush.msra.mxu0 0.0
      %2614 = vmatpush.msra.mxu0 0.0
      %2615 = vmatpush.msra.mxu0 0.0
      %2616 = vmatpush.msra.mxu0 0.0
      %2617 = vmatpush.msra.mxu0 0.0
      %2618 = vmatpush.msra.mxu0 0.0
      %2619 = vmatpush.msra.mxu0 0.0
      %2620 = vmatpush.msra.mxu0 0.0
      %2621 = vmatpush.msra.mxu0 0.0
      %2622 = vmatpush.msra.mxu0 %v2561
      %2623 = vmatmul.f32.gmra.mxu0 %v2565
      %v2624 = vpop.f32.mrf.mxu0
      %v2625 = vadd.f32 0.0, %v2624
      %2626 = vdwg.mxu0
      %v2627 = vadd.f32 %v2513, %v2585
      %v2628 = vadd.f32 %v2533, %v2605
      %v2629 = vadd.f32 %v2553, %v2625
      %2630 = vrot.lane.b32.xlu0 %v2393, 1
      %v2631 = vpop.permute.xlu0 %2630
      %2632 = vrot.lane.b32.xlu0 %v2394, 1
      %v2633 = vpop.permute.xlu0 %2632
      %2634 = vrot.lane.b32.xlu0 %v2395, 1
      %v2635 = vpop.permute.xlu0 %2634
      %v2636 = vsel %vm657, %v2633, %v2635
      %v2637 = vsel %vm657, %v2631, %v2633
      %v2638 = vsel %vm657, %v2635, %v2631
      %v2640 = vsel %vm448, %v2399, 0
      %2642 = vmatpush.msra.mxu0 0.0
      %2643 = vmatpush.msra.mxu0 0.0
      %2644 = vmatpush.msra.mxu0 0.0
      %2645 = vmatpush.msra.mxu0 0.0
      %2646 = vmatpush.msra.mxu0 0.0
      %2647 = vmatpush.msra.mxu0 0.0
      %2648 = vmatpush.msra.mxu0 0.0
      %2649 = vmatpush.msra.mxu0 0.0
      %2650 = vmatpush.msra.mxu0 0.0
      %2651 = vmatpush.msra.mxu0 0.0
      %2652 = vmatpush.msra.mxu0 0.0
      %2653 = vmatpush.msra.mxu0 0.0
      %2654 = vmatpush.msra.mxu0 0.0
      %2655 = vmatpush.msra.mxu0 0.0
      %2656 = vmatpush.msra.mxu0 0.0
      %2657 = vmatpush.msra.mxu0 %v2638
      %2658 = vmatmul.f32.gmra.mxu0 %v2640
      %v2659 = vpop.f32.mrf.mxu0
      %v2660 = vadd.f32 0.0, %v2659
      %2661 = vdwg.mxu0
      %2662 = vmatpush.msra.mxu0 0.0
      %2663 = vmatpush.msra.mxu0 0.0
      %2664 = vmatpush.msra.mxu0 0.0
      %2665 = vmatpush.msra.mxu0 0.0
      %2666 = vmatpush.msra.mxu0 0.0
      %2667 = vmatpush.msra.mxu0 0.0
      %2668 = vmatpush.msra.mxu0 0.0
      %2669 = vmatpush.msra.mxu0 0.0
      %2670 = vmatpush.msra.mxu0 0.0
      %2671 = vmatpush.msra.mxu0 0.0
      %2672 = vmatpush.msra.mxu0 0.0
      %2673 = vmatpush.msra.mxu0 0.0
      %2674 = vmatpush.msra.mxu0 0.0
      %2675 = vmatpush.msra.mxu0 0.0
      %2676 = vmatpush.msra.mxu0 0.0
      %2677 = vmatpush.msra.mxu0 %v2637
      %2678 = vmatmul.f32.gmra.mxu0 %v2640
      %v2679 = vpop.f32.mrf.mxu0
      %v2680 = vadd.f32 0.0, %v2679
      %2681 = vdwg.mxu0
      %2682 = vmatpush.msra.mxu0 0.0
      %2683 = vmatpush.msra.mxu0 0.0
      %2684 = vmatpush.msra.mxu0 0.0
      %2685 = vmatpush.msra.mxu0 0.0
      %2686 = vmatpush.msra.mxu0 0.0
      %2687 = vmatpush.msra.mxu0 0.0
      %2688 = vmatpush.msra.mxu0 0.0
      %2689 = vmatpush.msra.mxu0 0.0
      %2690 = vmatpush.msra.mxu0 0.0
      %2691 = vmatpush.msra.mxu0 0.0
      %2692 = vmatpush.msra.mxu0 0.0
      %2693 = vmatpush.msra.mxu0 0.0
      %2694 = vmatpush.msra.mxu0 0.0
      %2695 = vmatpush.msra.mxu0 0.0
      %2696 = vmatpush.msra.mxu0 0.0
      %2697 = vmatpush.msra.mxu0 %v2636
      %2698 = vmatmul.f32.gmra.mxu0 %v2640
      %v2699 = vpop.f32.mrf.mxu0
      %v2700 = vadd.f32 0.0, %v2699
      %2701 = vdwg.mxu0
      %v2702 = vadd.f32 %v2627, %v2660
      %v2703 = vadd.f32 %v2628, %v2680
      %v2704 = vadd.f32 %v2629, %v2700
      %v2706 = vsel %vm448, %v2400, 0
      %2708 = vmatpush.msra.mxu0 0.0
      %2709 = vmatpush.msra.mxu0 0.0
      %2710 = vmatpush.msra.mxu0 0.0
      %2711 = vmatpush.msra.mxu0 0.0
      %2712 = vmatpush.msra.mxu0 0.0
      %2713 = vmatpush.msra.mxu0 0.0
      %2714 = vmatpush.msra.mxu0 0.0
      %2715 = vmatpush.msra.mxu0 0.0
      %2716 = vmatpush.msra.mxu0 0.0
      %2717 = vmatpush.msra.mxu0 0.0
      %2718 = vmatpush.msra.mxu0 0.0
      %2719 = vmatpush.msra.mxu0 0.0
      %2720 = vmatpush.msra.mxu0 0.0
      %2721 = vmatpush.msra.mxu0 0.0
      %2722 = vmatpush.msra.mxu0 0.0
      %2723 = vmatpush.msra.mxu0 %v2393
      %2724 = vmatmul.f32.gmra.mxu0 %v2706
      %v2725 = vpop.f32.mrf.mxu0
      %v2726 = vadd.f32 0.0, %v2725
      %2727 = vdwg.mxu0
      %2728 = vmatpush.msra.mxu0 0.0
      %2729 = vmatpush.msra.mxu0 0.0
      %2730 = vmatpush.msra.mxu0 0.0
      %2731 = vmatpush.msra.mxu0 0.0
      %2732 = vmatpush.msra.mxu0 0.0
      %2733 = vmatpush.msra.mxu0 0.0
      %2734 = vmatpush.msra.mxu0 0.0
      %2735 = vmatpush.msra.mxu0 0.0
      %2736 = vmatpush.msra.mxu0 0.0
      %2737 = vmatpush.msra.mxu0 0.0
      %2738 = vmatpush.msra.mxu0 0.0
      %2739 = vmatpush.msra.mxu0 0.0
      %2740 = vmatpush.msra.mxu0 0.0
      %2741 = vmatpush.msra.mxu0 0.0
      %2742 = vmatpush.msra.mxu0 0.0
      %2743 = vmatpush.msra.mxu0 %v2394
      %2744 = vmatmul.f32.gmra.mxu0 %v2706
      %v2745 = vpop.f32.mrf.mxu0
      %v2746 = vadd.f32 0.0, %v2745
      %2747 = vdwg.mxu0
      %2748 = vmatpush.msra.mxu0 0.0
      %2749 = vmatpush.msra.mxu0 0.0
      %2750 = vmatpush.msra.mxu0 0.0
      %2751 = vmatpush.msra.mxu0 0.0
      %2752 = vmatpush.msra.mxu0 0.0
      %2753 = vmatpush.msra.mxu0 0.0
      %2754 = vmatpush.msra.mxu0 0.0
      %2755 = vmatpush.msra.mxu0 0.0
      %2756 = vmatpush.msra.mxu0 0.0
      %2757 = vmatpush.msra.mxu0 0.0
      %2758 = vmatpush.msra.mxu0 0.0
      %2759 = vmatpush.msra.mxu0 0.0
      %2760 = vmatpush.msra.mxu0 0.0
      %2761 = vmatpush.msra.mxu0 0.0
      %2762 = vmatpush.msra.mxu0 0.0
      %2763 = vmatpush.msra.mxu0 %v2395
      %2764 = vmatmul.f32.gmra.mxu0 %v2706
      %v2765 = vpop.f32.mrf.mxu0
      %v2766 = vadd.f32 0.0, %v2765
      %2767 = vdwg.mxu0
      %v2768 = vadd.f32 %v2702, %v2726
      %v2769 = vadd.f32 %v2703, %v2746
      %v2770 = vadd.f32 %v2704, %v2766
      %2771 = vrot.lane.b32.xlu0 %v2393, 127
      %v2772 = vpop.permute.xlu0 %2771
      %2773 = vrot.lane.b32.xlu0 %v2394, 127
      %v2774 = vpop.permute.xlu0 %2773
      %2775 = vrot.lane.b32.xlu0 %v2395, 127
      %v2776 = vpop.permute.xlu0 %2775
      %v2777 = vsel %vm799, %v2774, %v2776
      %v2778 = vsel %vm799, %v2772, %v2774
      %v2779 = vsel %vm799, %v2776, %v2772
      %v2781 = vsel %vm448, %v2401, 0
      %2783 = vmatpush.msra.mxu0 0.0
      %2784 = vmatpush.msra.mxu0 0.0
      %2785 = vmatpush.msra.mxu0 0.0
      %2786 = vmatpush.msra.mxu0 0.0
      %2787 = vmatpush.msra.mxu0 0.0
      %2788 = vmatpush.msra.mxu0 0.0
      %2789 = vmatpush.msra.mxu0 0.0
      %2790 = vmatpush.msra.mxu0 0.0
      %2791 = vmatpush.msra.mxu0 0.0
      %2792 = vmatpush.msra.mxu0 0.0
      %2793 = vmatpush.msra.mxu0 0.0
      %2794 = vmatpush.msra.mxu0 0.0
      %2795 = vmatpush.msra.mxu0 0.0
      %2796 = vmatpush.msra.mxu0 0.0
      %2797 = vmatpush.msra.mxu0 0.0
      %2798 = vmatpush.msra.mxu0 %v2778
      %2799 = vmatmul.f32.gmra.mxu0 %v2781
      %v2800 = vpop.f32.mrf.mxu0
      %v2801 = vadd.f32 0.0, %v2800
      %2802 = vdwg.mxu0
      %2803 = vmatpush.msra.mxu0 0.0
      %2804 = vmatpush.msra.mxu0 0.0
      %2805 = vmatpush.msra.mxu0 0.0
      %2806 = vmatpush.msra.mxu0 0.0
      %2807 = vmatpush.msra.mxu0 0.0
      %2808 = vmatpush.msra.mxu0 0.0
      %2809 = vmatpush.msra.mxu0 0.0
      %2810 = vmatpush.msra.mxu0 0.0
      %2811 = vmatpush.msra.mxu0 0.0
      %2812 = vmatpush.msra.mxu0 0.0
      %2813 = vmatpush.msra.mxu0 0.0
      %2814 = vmatpush.msra.mxu0 0.0
      %2815 = vmatpush.msra.mxu0 0.0
      %2816 = vmatpush.msra.mxu0 0.0
      %2817 = vmatpush.msra.mxu0 0.0
      %2818 = vmatpush.msra.mxu0 %v2777
      %2819 = vmatmul.f32.gmra.mxu0 %v2781
      %v2820 = vpop.f32.mrf.mxu0
      %v2821 = vadd.f32 0.0, %v2820
      %2822 = vdwg.mxu0
      %2823 = vmatpush.msra.mxu0 0.0
      %2824 = vmatpush.msra.mxu0 0.0
      %2825 = vmatpush.msra.mxu0 0.0
      %2826 = vmatpush.msra.mxu0 0.0
      %2827 = vmatpush.msra.mxu0 0.0
      %2828 = vmatpush.msra.mxu0 0.0
      %2829 = vmatpush.msra.mxu0 0.0
      %2830 = vmatpush.msra.mxu0 0.0
      %2831 = vmatpush.msra.mxu0 0.0
      %2832 = vmatpush.msra.mxu0 0.0
      %2833 = vmatpush.msra.mxu0 0.0
      %2834 = vmatpush.msra.mxu0 0.0
      %2835 = vmatpush.msra.mxu0 0.0
      %2836 = vmatpush.msra.mxu0 0.0
      %2837 = vmatpush.msra.mxu0 0.0
      %2838 = vmatpush.msra.mxu0 %v2779
      %2839 = vmatmul.f32.gmra.mxu0 %v2781
      %v2840 = vpop.f32.mrf.mxu0
      %v2841 = vadd.f32 0.0, %v2840
      %2842 = vdwg.mxu0
      %v2843 = vadd.f32 %v2768, %v2801
      %v2844 = vadd.f32 %v2769, %v2821
      %v2845 = vadd.f32 %v2770, %v2841
      %2846 = vrot.lane.b32.xlu0 %v2393, 111
      %v2847 = vpop.permute.xlu0 %2846
      %2848 = vrot.lane.b32.xlu0 %v2394, 111
      %v2849 = vpop.permute.xlu0 %2848
      %2850 = vrot.lane.b32.xlu0 %v2395, 111
      %v2851 = vpop.permute.xlu0 %2850
      %v2852 = vsel %vm875, %v2849, %v2851
      %v2853 = vsel %vm875, %v2847, %v2849
      %v2854 = vsel %vm875, %v2851, %v2847
      %v2856 = vsel %vm448, %v2402, 0
      %2858 = vmatpush.msra.mxu0 0.0
      %2859 = vmatpush.msra.mxu0 0.0
      %2860 = vmatpush.msra.mxu0 0.0
      %2861 = vmatpush.msra.mxu0 0.0
      %2862 = vmatpush.msra.mxu0 0.0
      %2863 = vmatpush.msra.mxu0 0.0
      %2864 = vmatpush.msra.mxu0 0.0
      %2865 = vmatpush.msra.mxu0 0.0
      %2866 = vmatpush.msra.mxu0 0.0
      %2867 = vmatpush.msra.mxu0 0.0
      %2868 = vmatpush.msra.mxu0 0.0
      %2869 = vmatpush.msra.mxu0 0.0
      %2870 = vmatpush.msra.mxu0 0.0
      %2871 = vmatpush.msra.mxu0 0.0
      %2872 = vmatpush.msra.mxu0 0.0
      %2873 = vmatpush.msra.mxu0 %v2853
      %2874 = vmatmul.f32.gmra.mxu0 %v2856
      %v2875 = vpop.f32.mrf.mxu0
      %v2876 = vadd.f32 0.0, %v2875
      %2877 = vdwg.mxu0
      %2878 = vmatpush.msra.mxu0 0.0
      %2879 = vmatpush.msra.mxu0 0.0
      %2880 = vmatpush.msra.mxu0 0.0
      %2881 = vmatpush.msra.mxu0 0.0
      %2882 = vmatpush.msra.mxu0 0.0
      %2883 = vmatpush.msra.mxu0 0.0
      %2884 = vmatpush.msra.mxu0 0.0
      %2885 = vmatpush.msra.mxu0 0.0
      %2886 = vmatpush.msra.mxu0 0.0
      %2887 = vmatpush.msra.mxu0 0.0
      %2888 = vmatpush.msra.mxu0 0.0
      %2889 = vmatpush.msra.mxu0 0.0
      %2890 = vmatpush.msra.mxu0 0.0
      %2891 = vmatpush.msra.mxu0 0.0
      %2892 = vmatpush.msra.mxu0 0.0
      %2893 = vmatpush.msra.mxu0 %v2852
      %2894 = vmatmul.f32.gmra.mxu0 %v2856
      %v2895 = vpop.f32.mrf.mxu0
      %v2896 = vadd.f32 0.0, %v2895
      %2897 = vdwg.mxu0
      %2898 = vmatpush.msra.mxu0 0.0
      %2899 = vmatpush.msra.mxu0 0.0
      %2900 = vmatpush.msra.mxu0 0.0
      %2901 = vmatpush.msra.mxu0 0.0
      %2902 = vmatpush.msra.mxu0 0.0
      %2903 = vmatpush.msra.mxu0 0.0
      %2904 = vmatpush.msra.mxu0 0.0
      %2905 = vmatpush.msra.mxu0 0.0
      %2906 = vmatpush.msra.mxu0 0.0
      %2907 = vmatpush.msra.mxu0 0.0
      %2908 = vmatpush.msra.mxu0 0.0
      %2909 = vmatpush.msra.mxu0 0.0
      %2910 = vmatpush.msra.mxu0 0.0
      %2911 = vmatpush.msra.mxu0 0.0
      %2912 = vmatpush.msra.mxu0 0.0
      %2913 = vmatpush.msra.mxu0 %v2854
      %2914 = vmatmul.f32.gmra.mxu0 %v2856
      %v2915 = vpop.f32.mrf.mxu0
      %v2916 = vadd.f32 0.0, %v2915
      %2917 = vdwg.mxu0
      %v2918 = vadd.f32 %v2843, %v2876
      %v2919 = vadd.f32 %v2844, %v2896
      %v2920 = vadd.f32 %v2845, %v2916
      %2921 = vrot.lane.b32.xlu0 %v2393, 110
      %v2922 = vpop.permute.xlu0 %2921
      %2923 = vrot.lane.b32.xlu0 %v2394, 110
      %v2924 = vpop.permute.xlu0 %2923
      %2925 = vrot.lane.b32.xlu0 %v2395, 110
      %v2926 = vpop.permute.xlu0 %2925
      %v2927 = vsel %vm951, %v2924, %v2926
      %v2928 = vsel %vm951, %v2922, %v2924
      %v2929 = vsel %vm951, %v2926, %v2922
      %v2931 = vsel %vm448, %v2403, 0
      %2933 = vmatpush.msra.mxu0 0.0
      %2934 = vmatpush.msra.mxu0 0.0
      %2935 = vmatpush.msra.mxu0 0.0
      %2936 = vmatpush.msra.mxu0 0.0
      %2937 = vmatpush.msra.mxu0 0.0
      %2938 = vmatpush.msra.mxu0 0.0
      %2939 = vmatpush.msra.mxu0 0.0
      %2940 = vmatpush.msra.mxu0 0.0
      %2941 = vmatpush.msra.mxu0 0.0
      %2942 = vmatpush.msra.mxu0 0.0
      %2943 = vmatpush.msra.mxu0 0.0
      %2944 = vmatpush.msra.mxu0 0.0
      %2945 = vmatpush.msra.mxu0 0.0
      %2946 = vmatpush.msra.mxu0 0.0
      %2947 = vmatpush.msra.mxu0 0.0
      %2948 = vmatpush.msra.mxu0 %v2928
      %2949 = vmatmul.f32.gmra.mxu0 %v2931
      %v2950 = vpop.f32.mrf.mxu0
      %v2951 = vadd.f32 0.0, %v2950
      %2952 = vdwg.mxu0
      %2953 = vmatpush.msra.mxu0 0.0
      %2954 = vmatpush.msra.mxu0 0.0
      %2955 = vmatpush.msra.mxu0 0.0
      %2956 = vmatpush.msra.mxu0 0.0
      %2957 = vmatpush.msra.mxu0 0.0
      %2958 = vmatpush.msra.mxu0 0.0
      %2959 = vmatpush.msra.mxu0 0.0
      %2960 = vmatpush.msra.mxu0 0.0
      %2961 = vmatpush.msra.mxu0 0.0
      %2962 = vmatpush.msra.mxu0 0.0
      %2963 = vmatpush.msra.mxu0 0.0
      %2964 = vmatpush.msra.mxu0 0.0
      %2965 = vmatpush.msra.mxu0 0.0
      %2966 = vmatpush.msra.mxu0 0.0
      %2967 = vmatpush.msra.mxu0 0.0
      %2968 = vmatpush.msra.mxu0 %v2927
      %2969 = vmatmul.f32.gmra.mxu0 %v2931
      %v2970 = vpop.f32.mrf.mxu0
      %v2971 = vadd.f32 0.0, %v2970
      %2972 = vdwg.mxu0
      %2973 = vmatpush.msra.mxu0 0.0
      %2974 = vmatpush.msra.mxu0 0.0
      %2975 = vmatpush.msra.mxu0 0.0
      %2976 = vmatpush.msra.mxu0 0.0
      %2977 = vmatpush.msra.mxu0 0.0
      %2978 = vmatpush.msra.mxu0 0.0
      %2979 = vmatpush.msra.mxu0 0.0
      %2980 = vmatpush.msra.mxu0 0.0
      %2981 = vmatpush.msra.mxu0 0.0
      %2982 = vmatpush.msra.mxu0 0.0
      %2983 = vmatpush.msra.mxu0 0.0
      %2984 = vmatpush.msra.mxu0 0.0
      %2985 = vmatpush.msra.mxu0 0.0
      %2986 = vmatpush.msra.mxu0 0.0
      %2987 = vmatpush.msra.mxu0 0.0
      %2988 = vmatpush.msra.mxu0 %v2929
      %2989 = vmatmul.f32.gmra.mxu0 %v2931
      %v2990 = vpop.f32.mrf.mxu0
      %v2991 = vadd.f32 0.0, %v2990
      %2992 = vdwg.mxu0
      %v2993 = vadd.f32 %v2918, %v2951
      %v2994 = vadd.f32 %v2919, %v2971
      %v2995 = vadd.f32 %v2920, %v2991
      %2996 = vrot.lane.b32.xlu0 %v2393, 109
      %v2997 = vpop.permute.xlu0 %2996
      %2998 = vrot.lane.b32.xlu0 %v2394, 109
      %v2999 = vpop.permute.xlu0 %2998
      %3000 = vrot.lane.b32.xlu0 %v2395, 109
      %v3001 = vpop.permute.xlu0 %3000
      %v3002 = vsel %vm1027, %v2999, %v3001
      %v3003 = vsel %vm1027, %v2997, %v2999
      %v3004 = vsel %vm1027, %v3001, %v2997
      %v3006 = vsel %vm448, %v2404, 0
      %3008 = vmatpush.msra.mxu0 0.0
      %3009 = vmatpush.msra.mxu0 0.0
      %3010 = vmatpush.msra.mxu0 0.0
      %3011 = vmatpush.msra.mxu0 0.0
      %3012 = vmatpush.msra.mxu0 0.0
      %3013 = vmatpush.msra.mxu0 0.0
      %3014 = vmatpush.msra.mxu0 0.0
      %3015 = vmatpush.msra.mxu0 0.0
      %3016 = vmatpush.msra.mxu0 0.0
      %3017 = vmatpush.msra.mxu0 0.0
      %3018 = vmatpush.msra.mxu0 0.0
      %3019 = vmatpush.msra.mxu0 0.0
      %3020 = vmatpush.msra.mxu0 0.0
      %3021 = vmatpush.msra.mxu0 0.0
      %3022 = vmatpush.msra.mxu0 0.0
      %3023 = vmatpush.msra.mxu0 %v3003
      %3024 = vmatmul.f32.gmra.mxu0 %v3006
      %v3025 = vpop.f32.mrf.mxu0
      %v3026 = vadd.f32 0.0, %v3025
      %3027 = vdwg.mxu0
      %3028 = vmatpush.msra.mxu0 0.0
      %3029 = vmatpush.msra.mxu0 0.0
      %3030 = vmatpush.msra.mxu0 0.0
      %3031 = vmatpush.msra.mxu0 0.0
      %3032 = vmatpush.msra.mxu0 0.0
      %3033 = vmatpush.msra.mxu0 0.0
      %3034 = vmatpush.msra.mxu0 0.0
      %3035 = vmatpush.msra.mxu0 0.0
      %3036 = vmatpush.msra.mxu0 0.0
      %3037 = vmatpush.msra.mxu0 0.0
      %3038 = vmatpush.msra.mxu0 0.0
      %3039 = vmatpush.msra.mxu0 0.0
      %3040 = vmatpush.msra.mxu0 0.0
      %3041 = vmatpush.msra.mxu0 0.0
      %3042 = vmatpush.msra.mxu0 0.0
      %3043 = vmatpush.msra.mxu0 %v3002
      %3044 = vmatmul.f32.gmra.mxu0 %v3006
      %v3045 = vpop.f32.mrf.mxu0
      %v3046 = vadd.f32 0.0, %v3045
      %3047 = vdwg.mxu0
      %3048 = vmatpush.msra.mxu0 0.0
      %3049 = vmatpush.msra.mxu0 0.0
      %3050 = vmatpush.msra.mxu0 0.0
      %3051 = vmatpush.msra.mxu0 0.0
      %3052 = vmatpush.msra.mxu0 0.0
      %3053 = vmatpush.msra.mxu0 0.0
      %3054 = vmatpush.msra.mxu0 0.0
      %3055 = vmatpush.msra.mxu0 0.0
      %3056 = vmatpush.msra.mxu0 0.0
      %3057 = vmatpush.msra.mxu0 0.0
      %3058 = vmatpush.msra.mxu0 0.0
      %3059 = vmatpush.msra.mxu0 0.0
      %3060 = vmatpush.msra.mxu0 0.0
      %3061 = vmatpush.msra.mxu0 0.0
      %3062 = vmatpush.msra.mxu0 0.0
      %3063 = vmatpush.msra.mxu0 %v3004
      %3064 = vmatmul.f32.gmra.mxu0 %v3006
      %v3065 = vpop.f32.mrf.mxu0
      %v3066 = vadd.f32 0.0, %v3065
      %3067 = vdwg.mxu0
      %v3068 = vadd.f32 %v2993, %v3026
      %v3069 = vadd.f32 %v2994, %v3046
      %v3070 = vadd.f32 %v2995, %v3066
      %v3071 = vadd.f32 %v3068, %v2409
      %v3072 = vadd.f32 %v3069, %v2409
      %v3073 = vadd.f32 %v3070, %v2409
      %v3074 = vmax.f32 %v3071, 0.0
      %v3075 = vmax.f32 %v3072, 0.0
      %v3076 = vmax.f32 %v3073, 0.0
      %v3077 = vmul.f32 %v3074, %v311
      %v3078 = vmul.f32 %v3075, %v312
      %v3079 = vmul.f32 %v3076, %v313
      %v3080 = vadd.f32 %v3077, %v2393
      %v3081 = vadd.f32 %v3078, %v2394
      %v3082 = vadd.f32 %v3079, %v2395
      %3083 = vrot.lane.b32.xlu0 %v3080, 19
      %v3084 = vpop.permute.xlu0 %3083
      %3085 = vrot.lane.b32.xlu0 %v3081, 19
      %v3086 = vpop.permute.xlu0 %3085
      %3087 = vrot.lane.b32.xlu0 %v3082, 19
      %v3088 = vpop.permute.xlu0 %3087
      %v3089 = vsel %vm434, %v3086, %v3088
      %v3090 = vsel %vm434, %v3084, %v3086
      %v3091 = vsel %vm434, %v3088, %v3084
      %3092 = vrot.lane.b32.xlu0 %v3080, 18
      %v3093 = vpop.permute.xlu0 %3092
      %3094 = vrot.lane.b32.xlu0 %v3081, 18
      %v3095 = vpop.permute.xlu0 %3094
      %3096 = vrot.lane.b32.xlu0 %v3082, 18
      %v3097 = vpop.permute.xlu0 %3096
      %v3098 = vsel %vm444, %v3095, %v3097
      %v3099 = vsel %vm444, %v3093, %v3095
      %v3100 = vsel %vm444, %v3097, %v3093
      %3101 = vmatpush.msra.mxu0 0.0
      %3102 = vmatpush.msra.mxu0 0.0
      %3103 = vmatpush.msra.mxu0 0.0
      %3104 = vmatpush.msra.mxu0 0.0
      %3105 = vmatpush.msra.mxu0 0.0
      %3106 = vmatpush.msra.mxu0 0.0
      %3107 = vmatpush.msra.mxu0 0.0
      %3108 = vmatpush.msra.mxu0 0.0
      %3109 = vmatpush.msra.mxu0 0.0
      %3110 = vmatpush.msra.mxu0 0.0
      %3111 = vmatpush.msra.mxu0 0.0
      %3112 = vmatpush.msra.mxu0 0.0
      %3113 = vmatpush.msra.mxu0 0.0
      %3114 = vmatpush.msra.mxu0 0.0
      %3115 = vmatpush.msra.mxu0 0.0
      %3116 = vmatpush.msra.mxu0 %v3100
      %3117 = vmatmul.f32.gmra.mxu0 %v2430
      %v3118 = vpop.f32.mrf.mxu0
      %v3119 = vadd.f32 0.0, %v3118
      %3120 = vdwg.mxu0
      %3121 = vmatpush.msra.mxu0 0.0
      %3122 = vmatpush.msra.mxu0 0.0
      %3123 = vmatpush.msra.mxu0 0.0
      %3124 = vmatpush.msra.mxu0 0.0
      %3125 = vmatpush.msra.mxu0 0.0
      %3126 = vmatpush.msra.mxu0 0.0
      %3127 = vmatpush.msra.mxu0 0.0
      %3128 = vmatpush.msra.mxu0 0.0
      %3129 = vmatpush.msra.mxu0 0.0
      %3130 = vmatpush.msra.mxu0 0.0
      %3131 = vmatpush.msra.mxu0 0.0
      %3132 = vmatpush.msra.mxu0 0.0
      %3133 = vmatpush.msra.mxu0 0.0
      %3134 = vmatpush.msra.mxu0 0.0
      %3135 = vmatpush.msra.mxu0 0.0
      %3136 = vmatpush.msra.mxu0 %v3099
      %3137 = vmatmul.f32.gmra.mxu0 %v2430
      %v3138 = vpop.f32.mrf.mxu0
      %v3139 = vadd.f32 0.0, %v3138
      %3140 = vdwg.mxu0
      %3141 = vmatpush.msra.mxu0 0.0
      %3142 = vmatpush.msra.mxu0 0.0
      %3143 = vmatpush.msra.mxu0 0.0
      %3144 = vmatpush.msra.mxu0 0.0
      %3145 = vmatpush.msra.mxu0 0.0
      %3146 = vmatpush.msra.mxu0 0.0
      %3147 = vmatpush.msra.mxu0 0.0
      %3148 = vmatpush.msra.mxu0 0.0
      %3149 = vmatpush.msra.mxu0 0.0
      %3150 = vmatpush.msra.mxu0 0.0
      %3151 = vmatpush.msra.mxu0 0.0
      %3152 = vmatpush.msra.mxu0 0.0
      %3153 = vmatpush.msra.mxu0 0.0
      %3154 = vmatpush.msra.mxu0 0.0
      %3155 = vmatpush.msra.mxu0 0.0
      %3156 = vmatpush.msra.mxu0 %v3098
      %3157 = vmatmul.f32.gmra.mxu0 %v2430
      %v3158 = vpop.f32.mrf.mxu0
      %v3159 = vadd.f32 0.0, %v3158
      %3160 = vdwg.mxu0
      %3161 = vmatpush.msra.mxu0 0.0
      %3162 = vmatpush.msra.mxu0 0.0
      %3163 = vmatpush.msra.mxu0 0.0
      %3164 = vmatpush.msra.mxu0 0.0
      %3165 = vmatpush.msra.mxu0 0.0
      %3166 = vmatpush.msra.mxu0 0.0
      %3167 = vmatpush.msra.mxu0 0.0
      %3168 = vmatpush.msra.mxu0 0.0
      %3169 = vmatpush.msra.mxu0 0.0
      %3170 = vmatpush.msra.mxu0 0.0
      %3171 = vmatpush.msra.mxu0 0.0
      %3172 = vmatpush.msra.mxu0 0.0
      %3173 = vmatpush.msra.mxu0 0.0
      %3174 = vmatpush.msra.mxu0 0.0
      %3175 = vmatpush.msra.mxu0 0.0
      %3176 = vmatpush.msra.mxu0 %v3091
      %3177 = vmatmul.f32.gmra.mxu0 %v2493
      %v3178 = vpop.f32.mrf.mxu0
      %v3179 = vadd.f32 %v3119, %v3178
      %3180 = vdwg.mxu0
      %3181 = vmatpush.msra.mxu0 0.0
      %3182 = vmatpush.msra.mxu0 0.0
      %3183 = vmatpush.msra.mxu0 0.0
      %3184 = vmatpush.msra.mxu0 0.0
      %3185 = vmatpush.msra.mxu0 0.0
      %3186 = vmatpush.msra.mxu0 0.0
      %3187 = vmatpush.msra.mxu0 0.0
      %3188 = vmatpush.msra.mxu0 0.0
      %3189 = vmatpush.msra.mxu0 0.0
      %3190 = vmatpush.msra.mxu0 0.0
      %3191 = vmatpush.msra.mxu0 0.0
      %3192 = vmatpush.msra.mxu0 0.0
      %3193 = vmatpush.msra.mxu0 0.0
      %3194 = vmatpush.msra.mxu0 0.0
      %3195 = vmatpush.msra.mxu0 0.0
      %3196 = vmatpush.msra.mxu0 %v3090
      %3197 = vmatmul.f32.gmra.mxu0 %v2493
      %v3198 = vpop.f32.mrf.mxu0
      %v3199 = vadd.f32 %v3139, %v3198
      %3200 = vdwg.mxu0
      %3201 = vmatpush.msra.mxu0 0.0
      %3202 = vmatpush.msra.mxu0 0.0
      %3203 = vmatpush.msra.mxu0 0.0
      %3204 = vmatpush.msra.mxu0 0.0
      %3205 = vmatpush.msra.mxu0 0.0
      %3206 = vmatpush.msra.mxu0 0.0
      %3207 = vmatpush.msra.mxu0 0.0
      %3208 = vmatpush.msra.mxu0 0.0
      %3209 = vmatpush.msra.mxu0 0.0
      %3210 = vmatpush.msra.mxu0 0.0
      %3211 = vmatpush.msra.mxu0 0.0
      %3212 = vmatpush.msra.mxu0 0.0
      %3213 = vmatpush.msra.mxu0 0.0
      %3214 = vmatpush.msra.mxu0 0.0
      %3215 = vmatpush.msra.mxu0 0.0
      %3216 = vmatpush.msra.mxu0 %v3089
      %3217 = vmatmul.f32.gmra.mxu0 %v2493
      %v3218 = vpop.f32.mrf.mxu0
      %v3219 = vadd.f32 %v3159, %v3218
      %3220 = vdwg.mxu0
      %3221 = vrot.lane.b32.xlu0 %v3080, 17
      %v3222 = vpop.permute.xlu0 %3221
      %3223 = vrot.lane.b32.xlu0 %v3081, 17
      %v3224 = vpop.permute.xlu0 %3223
      %3225 = vrot.lane.b32.xlu0 %v3082, 17
      %v3226 = vpop.permute.xlu0 %3225
      %v3227 = vsel %vm581, %v3224, %v3226
      %v3228 = vsel %vm581, %v3222, %v3224
      %v3229 = vsel %vm581, %v3226, %v3222
      %3230 = vmatpush.msra.mxu0 0.0
      %3231 = vmatpush.msra.mxu0 0.0
      %3232 = vmatpush.msra.mxu0 0.0
      %3233 = vmatpush.msra.mxu0 0.0
      %3234 = vmatpush.msra.mxu0 0.0
      %3235 = vmatpush.msra.mxu0 0.0
      %3236 = vmatpush.msra.mxu0 0.0
      %3237 = vmatpush.msra.mxu0 0.0
      %3238 = vmatpush.msra.mxu0 0.0
      %3239 = vmatpush.msra.mxu0 0.0
      %3240 = vmatpush.msra.mxu0 0.0
      %3241 = vmatpush.msra.mxu0 0.0
      %3242 = vmatpush.msra.mxu0 0.0
      %3243 = vmatpush.msra.mxu0 0.0
      %3244 = vmatpush.msra.mxu0 0.0
      %3245 = vmatpush.msra.mxu0 %v3229
      %3246 = vmatmul.f32.gmra.mxu0 %v2565
      %v3247 = vpop.f32.mrf.mxu0
      %v3248 = vadd.f32 0.0, %v3247
      %3249 = vdwg.mxu0
      %3250 = vmatpush.msra.mxu0 0.0
      %3251 = vmatpush.msra.mxu0 0.0
      %3252 = vmatpush.msra.mxu0 0.0
      %3253 = vmatpush.msra.mxu0 0.0
      %3254 = vmatpush.msra.mxu0 0.0
      %3255 = vmatpush.msra.mxu0 0.0
      %3256 = vmatpush.msra.mxu0 0.0
      %3257 = vmatpush.msra.mxu0 0.0
      %3258 = vmatpush.msra.mxu0 0.0
      %3259 = vmatpush.msra.mxu0 0.0
      %3260 = vmatpush.msra.mxu0 0.0
      %3261 = vmatpush.msra.mxu0 0.0
      %3262 = vmatpush.msra.mxu0 0.0
      %3263 = vmatpush.msra.mxu0 0.0
      %3264 = vmatpush.msra.mxu0 0.0
      %3265 = vmatpush.msra.mxu0 %v3228
      %3266 = vmatmul.f32.gmra.mxu0 %v2565
      %v3267 = vpop.f32.mrf.mxu0
      %v3268 = vadd.f32 0.0, %v3267
      %3269 = vdwg.mxu0
      %3270 = vmatpush.msra.mxu0 0.0
      %3271 = vmatpush.msra.mxu0 0.0
      %3272 = vmatpush.msra.mxu0 0.0
      %3273 = vmatpush.msra.mxu0 0.0
      %3274 = vmatpush.msra.mxu0 0.0
      %3275 = vmatpush.msra.mxu0 0.0
      %3276 = vmatpush.msra.mxu0 0.0
      %3277 = vmatpush.msra.mxu0 0.0
      %3278 = vmatpush.msra.mxu0 0.0
      %3279 = vmatpush.msra.mxu0 0.0
      %3280 = vmatpush.msra.mxu0 0.0
      %3281 = vmatpush.msra.mxu0 0.0
      %3282 = vmatpush.msra.mxu0 0.0
      %3283 = vmatpush.msra.mxu0 0.0
      %3284 = vmatpush.msra.mxu0 0.0
      %3285 = vmatpush.msra.mxu0 %v3227
      %3286 = vmatmul.f32.gmra.mxu0 %v2565
      %v3287 = vpop.f32.mrf.mxu0
      %v3288 = vadd.f32 0.0, %v3287
      %3289 = vdwg.mxu0
      %v3290 = vadd.f32 %v3179, %v3248
      %v3291 = vadd.f32 %v3199, %v3268
      %v3292 = vadd.f32 %v3219, %v3288
      %3293 = vrot.lane.b32.xlu0 %v3080, 1
      %v3294 = vpop.permute.xlu0 %3293
      %3295 = vrot.lane.b32.xlu0 %v3081, 1
      %v3296 = vpop.permute.xlu0 %3295
      %3297 = vrot.lane.b32.xlu0 %v3082, 1
      %v3298 = vpop.permute.xlu0 %3297
      %v3299 = vsel %vm657, %v3296, %v3298
      %v3300 = vsel %vm657, %v3294, %v3296
      %v3301 = vsel %vm657, %v3298, %v3294
      %3302 = vmatpush.msra.mxu0 0.0
      %3303 = vmatpush.msra.mxu0 0.0
      %3304 = vmatpush.msra.mxu0 0.0
      %3305 = vmatpush.msra.mxu0 0.0
      %3306 = vmatpush.msra.mxu0 0.0
      %3307 = vmatpush.msra.mxu0 0.0
      %3308 = vmatpush.msra.mxu0 0.0
      %3309 = vmatpush.msra.mxu0 0.0
      %3310 = vmatpush.msra.mxu0 0.0
      %3311 = vmatpush.msra.mxu0 0.0
      %3312 = vmatpush.msra.mxu0 0.0
      %3313 = vmatpush.msra.mxu0 0.0
      %3314 = vmatpush.msra.mxu0 0.0
      %3315 = vmatpush.msra.mxu0 0.0
      %3316 = vmatpush.msra.mxu0 0.0
      %3317 = vmatpush.msra.mxu0 %v3301
      %3318 = vmatmul.f32.gmra.mxu0 %v2640
      %v3319 = vpop.f32.mrf.mxu0
      %v3320 = vadd.f32 0.0, %v3319
      %3321 = vdwg.mxu0
      %3322 = vmatpush.msra.mxu0 0.0
      %3323 = vmatpush.msra.mxu0 0.0
      %3324 = vmatpush.msra.mxu0 0.0
      %3325 = vmatpush.msra.mxu0 0.0
      %3326 = vmatpush.msra.mxu0 0.0
      %3327 = vmatpush.msra.mxu0 0.0
      %3328 = vmatpush.msra.mxu0 0.0
      %3329 = vmatpush.msra.mxu0 0.0
      %3330 = vmatpush.msra.mxu0 0.0
      %3331 = vmatpush.msra.mxu0 0.0
      %3332 = vmatpush.msra.mxu0 0.0
      %3333 = vmatpush.msra.mxu0 0.0
      %3334 = vmatpush.msra.mxu0 0.0
      %3335 = vmatpush.msra.mxu0 0.0
      %3336 = vmatpush.msra.mxu0 0.0
      %3337 = vmatpush.msra.mxu0 %v3300
      %3338 = vmatmul.f32.gmra.mxu0 %v2640
      %v3339 = vpop.f32.mrf.mxu0
      %v3340 = vadd.f32 0.0, %v3339
      %3341 = vdwg.mxu0
      %3342 = vmatpush.msra.mxu0 0.0
      %3343 = vmatpush.msra.mxu0 0.0
      %3344 = vmatpush.msra.mxu0 0.0
      %3345 = vmatpush.msra.mxu0 0.0
      %3346 = vmatpush.msra.mxu0 0.0
      %3347 = vmatpush.msra.mxu0 0.0
      %3348 = vmatpush.msra.mxu0 0.0
      %3349 = vmatpush.msra.mxu0 0.0
      %3350 = vmatpush.msra.mxu0 0.0
      %3351 = vmatpush.msra.mxu0 0.0
      %3352 = vmatpush.msra.mxu0 0.0
      %3353 = vmatpush.msra.mxu0 0.0
      %3354 = vmatpush.msra.mxu0 0.0
      %3355 = vmatpush.msra.mxu0 0.0
      %3356 = vmatpush.msra.mxu0 0.0
      %3357 = vmatpush.msra.mxu0 %v3299
      %3358 = vmatmul.f32.gmra.mxu0 %v2640
      %v3359 = vpop.f32.mrf.mxu0
      %v3360 = vadd.f32 0.0, %v3359
      %3361 = vdwg.mxu0
      %v3362 = vadd.f32 %v3290, %v3320
      %v3363 = vadd.f32 %v3291, %v3340
      %v3364 = vadd.f32 %v3292, %v3360
      %3365 = vmatpush.msra.mxu0 0.0
      %3366 = vmatpush.msra.mxu0 0.0
      %3367 = vmatpush.msra.mxu0 0.0
      %3368 = vmatpush.msra.mxu0 0.0
      %3369 = vmatpush.msra.mxu0 0.0
      %3370 = vmatpush.msra.mxu0 0.0
      %3371 = vmatpush.msra.mxu0 0.0
      %3372 = vmatpush.msra.mxu0 0.0
      %3373 = vmatpush.msra.mxu0 0.0
      %3374 = vmatpush.msra.mxu0 0.0
      %3375 = vmatpush.msra.mxu0 0.0
      %3376 = vmatpush.msra.mxu0 0.0
      %3377 = vmatpush.msra.mxu0 0.0
      %3378 = vmatpush.msra.mxu0 0.0
      %3379 = vmatpush.msra.mxu0 0.0
      %3380 = vmatpush.msra.mxu0 %v3080
      %3381 = vmatmul.f32.gmra.mxu0 %v2706
      %v3382 = vpop.f32.mrf.mxu0
      %v3383 = vadd.f32 0.0, %v3382
      %3384 = vdwg.mxu0
      %3385 = vmatpush.msra.mxu0 0.0
      %3386 = vmatpush.msra.mxu0 0.0
      %3387 = vmatpush.msra.mxu0 0.0
      %3388 = vmatpush.msra.mxu0 0.0
      %3389 = vmatpush.msra.mxu0 0.0
      %3390 = vmatpush.msra.mxu0 0.0
      %3391 = vmatpush.msra.mxu0 0.0
      %3392 = vmatpush.msra.mxu0 0.0
      %3393 = vmatpush.msra.mxu0 0.0
      %3394 = vmatpush.msra.mxu0 0.0
      %3395 = vmatpush.msra.mxu0 0.0
      %3396 = vmatpush.msra.mxu0 0.0
      %3397 = vmatpush.msra.mxu0 0.0
      %3398 = vmatpush.msra.mxu0 0.0
      %3399 = vmatpush.msra.mxu0 0.0
      %3400 = vmatpush.msra.mxu0 %v3081
      %3401 = vmatmul.f32.gmra.mxu0 %v2706
      %v3402 = vpop.f32.mrf.mxu0
      %v3403 = vadd.f32 0.0, %v3402
      %3404 = vdwg.mxu0
      %3405 = vmatpush.msra.mxu0 0.0
      %3406 = vmatpush.msra.mxu0 0.0
      %3407 = vmatpush.msra.mxu0 0.0
      %3408 = vmatpush.msra.mxu0 0.0
      %3409 = vmatpush.msra.mxu0 0.0
      %3410 = vmatpush.msra.mxu0 0.0
      %3411 = vmatpush.msra.mxu0 0.0
      %3412 = vmatpush.msra.mxu0 0.0
      %3413 = vmatpush.msra.mxu0 0.0
      %3414 = vmatpush.msra.mxu0 0.0
      %3415 = vmatpush.msra.mxu0 0.0
      %3416 = vmatpush.msra.mxu0 0.0
      %3417 = vmatpush.msra.mxu0 0.0
      %3418 = vmatpush.msra.mxu0 0.0
      %3419 = vmatpush.msra.mxu0 0.0
      %3420 = vmatpush.msra.mxu0 %v3082
      %3421 = vmatmul.f32.gmra.mxu0 %v2706
      %v3422 = vpop.f32.mrf.mxu0
      %v3423 = vadd.f32 0.0, %v3422
      %3424 = vdwg.mxu0
      %v3425 = vadd.f32 %v3362, %v3383
      %v3426 = vadd.f32 %v3363, %v3403
      %v3427 = vadd.f32 %v3364, %v3423
      %3428 = vrot.lane.b32.xlu0 %v3080, 127
      %v3429 = vpop.permute.xlu0 %3428
      %3430 = vrot.lane.b32.xlu0 %v3081, 127
      %v3431 = vpop.permute.xlu0 %3430
      %3432 = vrot.lane.b32.xlu0 %v3082, 127
      %v3433 = vpop.permute.xlu0 %3432
      %v3434 = vsel %vm799, %v3431, %v3433
      %v3435 = vsel %vm799, %v3429, %v3431
      %v3436 = vsel %vm799, %v3433, %v3429
      %3437 = vmatpush.msra.mxu0 0.0
      %3438 = vmatpush.msra.mxu0 0.0
      %3439 = vmatpush.msra.mxu0 0.0
      %3440 = vmatpush.msra.mxu0 0.0
      %3441 = vmatpush.msra.mxu0 0.0
      %3442 = vmatpush.msra.mxu0 0.0
      %3443 = vmatpush.msra.mxu0 0.0
      %3444 = vmatpush.msra.mxu0 0.0
      %3445 = vmatpush.msra.mxu0 0.0
      %3446 = vmatpush.msra.mxu0 0.0
      %3447 = vmatpush.msra.mxu0 0.0
      %3448 = vmatpush.msra.mxu0 0.0
      %3449 = vmatpush.msra.mxu0 0.0
      %3450 = vmatpush.msra.mxu0 0.0
      %3451 = vmatpush.msra.mxu0 0.0
      %3452 = vmatpush.msra.mxu0 %v3435
      %3453 = vmatmul.f32.gmra.mxu0 %v2781
      %v3454 = vpop.f32.mrf.mxu0
      %v3455 = vadd.f32 0.0, %v3454
      %3456 = vdwg.mxu0
      %3457 = vmatpush.msra.mxu0 0.0
      %3458 = vmatpush.msra.mxu0 0.0
      %3459 = vmatpush.msra.mxu0 0.0
      %3460 = vmatpush.msra.mxu0 0.0
      %3461 = vmatpush.msra.mxu0 0.0
      %3462 = vmatpush.msra.mxu0 0.0
      %3463 = vmatpush.msra.mxu0 0.0
      %3464 = vmatpush.msra.mxu0 0.0
      %3465 = vmatpush.msra.mxu0 0.0
      %3466 = vmatpush.msra.mxu0 0.0
      %3467 = vmatpush.msra.mxu0 0.0
      %3468 = vmatpush.msra.mxu0 0.0
      %3469 = vmatpush.msra.mxu0 0.0
      %3470 = vmatpush.msra.mxu0 0.0
      %3471 = vmatpush.msra.mxu0 0.0
      %3472 = vmatpush.msra.mxu0 %v3434
      %3473 = vmatmul.f32.gmra.mxu0 %v2781
      %v3474 = vpop.f32.mrf.mxu0
      %v3475 = vadd.f32 0.0, %v3474
      %3476 = vdwg.mxu0
      %3477 = vmatpush.msra.mxu0 0.0
      %3478 = vmatpush.msra.mxu0 0.0
      %3479 = vmatpush.msra.mxu0 0.0
      %3480 = vmatpush.msra.mxu0 0.0
      %3481 = vmatpush.msra.mxu0 0.0
      %3482 = vmatpush.msra.mxu0 0.0
      %3483 = vmatpush.msra.mxu0 0.0
      %3484 = vmatpush.msra.mxu0 0.0
      %3485 = vmatpush.msra.mxu0 0.0
      %3486 = vmatpush.msra.mxu0 0.0
      %3487 = vmatpush.msra.mxu0 0.0
      %3488 = vmatpush.msra.mxu0 0.0
      %3489 = vmatpush.msra.mxu0 0.0
      %3490 = vmatpush.msra.mxu0 0.0
      %3491 = vmatpush.msra.mxu0 0.0
      %3492 = vmatpush.msra.mxu0 %v3436
      %3493 = vmatmul.f32.gmra.mxu0 %v2781
      %v3494 = vpop.f32.mrf.mxu0
      %v3495 = vadd.f32 0.0, %v3494
      %3496 = vdwg.mxu0
      %v3497 = vadd.f32 %v3425, %v3455
      %v3498 = vadd.f32 %v3426, %v3475
      %v3499 = vadd.f32 %v3427, %v3495
      %3500 = vrot.lane.b32.xlu0 %v3080, 111
      %v3501 = vpop.permute.xlu0 %3500
      %3502 = vrot.lane.b32.xlu0 %v3081, 111
      %v3503 = vpop.permute.xlu0 %3502
      %3504 = vrot.lane.b32.xlu0 %v3082, 111
      %v3505 = vpop.permute.xlu0 %3504
      %v3506 = vsel %vm875, %v3503, %v3505
      %v3507 = vsel %vm875, %v3501, %v3503
      %v3508 = vsel %vm875, %v3505, %v3501
      %3509 = vmatpush.msra.mxu0 0.0
      %3510 = vmatpush.msra.mxu0 0.0
      %3511 = vmatpush.msra.mxu0 0.0
      %3512 = vmatpush.msra.mxu0 0.0
      %3513 = vmatpush.msra.mxu0 0.0
      %3514 = vmatpush.msra.mxu0 0.0
      %3515 = vmatpush.msra.mxu0 0.0
      %3516 = vmatpush.msra.mxu0 0.0
      %3517 = vmatpush.msra.mxu0 0.0
      %3518 = vmatpush.msra.mxu0 0.0
      %3519 = vmatpush.msra.mxu0 0.0
      %3520 = vmatpush.msra.mxu0 0.0
      %3521 = vmatpush.msra.mxu0 0.0
      %3522 = vmatpush.msra.mxu0 0.0
      %3523 = vmatpush.msra.mxu0 0.0
      %3524 = vmatpush.msra.mxu0 %v3507
      %3525 = vmatmul.f32.gmra.mxu0 %v2856
      %v3526 = vpop.f32.mrf.mxu0
      %v3527 = vadd.f32 0.0, %v3526
      %3528 = vdwg.mxu0
      %3529 = vmatpush.msra.mxu0 0.0
      %3530 = vmatpush.msra.mxu0 0.0
      %3531 = vmatpush.msra.mxu0 0.0
      %3532 = vmatpush.msra.mxu0 0.0
      %3533 = vmatpush.msra.mxu0 0.0
      %3534 = vmatpush.msra.mxu0 0.0
      %3535 = vmatpush.msra.mxu0 0.0
      %3536 = vmatpush.msra.mxu0 0.0
      %3537 = vmatpush.msra.mxu0 0.0
      %3538 = vmatpush.msra.mxu0 0.0
      %3539 = vmatpush.msra.mxu0 0.0
      %3540 = vmatpush.msra.mxu0 0.0
      %3541 = vmatpush.msra.mxu0 0.0
      %3542 = vmatpush.msra.mxu0 0.0
      %3543 = vmatpush.msra.mxu0 0.0
      %3544 = vmatpush.msra.mxu0 %v3506
      %3545 = vmatmul.f32.gmra.mxu0 %v2856
      %v3546 = vpop.f32.mrf.mxu0
      %v3547 = vadd.f32 0.0, %v3546
      %3548 = vdwg.mxu0
      %3549 = vmatpush.msra.mxu0 0.0
      %3550 = vmatpush.msra.mxu0 0.0
      %3551 = vmatpush.msra.mxu0 0.0
      %3552 = vmatpush.msra.mxu0 0.0
      %3553 = vmatpush.msra.mxu0 0.0
      %3554 = vmatpush.msra.mxu0 0.0
      %3555 = vmatpush.msra.mxu0 0.0
      %3556 = vmatpush.msra.mxu0 0.0
      %3557 = vmatpush.msra.mxu0 0.0
      %3558 = vmatpush.msra.mxu0 0.0
      %3559 = vmatpush.msra.mxu0 0.0
      %3560 = vmatpush.msra.mxu0 0.0
      %3561 = vmatpush.msra.mxu0 0.0
      %3562 = vmatpush.msra.mxu0 0.0
      %3563 = vmatpush.msra.mxu0 0.0
      %3564 = vmatpush.msra.mxu0 %v3508
      %3565 = vmatmul.f32.gmra.mxu0 %v2856
      %v3566 = vpop.f32.mrf.mxu0
      %v3567 = vadd.f32 0.0, %v3566
      %3568 = vdwg.mxu0
      %v3569 = vadd.f32 %v3497, %v3527
      %v3570 = vadd.f32 %v3498, %v3547
      %v3571 = vadd.f32 %v3499, %v3567
      %3572 = vrot.lane.b32.xlu0 %v3080, 110
      %v3573 = vpop.permute.xlu0 %3572
      %3574 = vrot.lane.b32.xlu0 %v3081, 110
      %v3575 = vpop.permute.xlu0 %3574
      %3576 = vrot.lane.b32.xlu0 %v3082, 110
      %v3577 = vpop.permute.xlu0 %3576
      %v3578 = vsel %vm951, %v3575, %v3577
      %v3579 = vsel %vm951, %v3573, %v3575
      %v3580 = vsel %vm951, %v3577, %v3573
      %3581 = vmatpush.msra.mxu0 0.0
      %3582 = vmatpush.msra.mxu0 0.0
      %3583 = vmatpush.msra.mxu0 0.0
      %3584 = vmatpush.msra.mxu0 0.0
      %3585 = vmatpush.msra.mxu0 0.0
      %3586 = vmatpush.msra.mxu0 0.0
      %3587 = vmatpush.msra.mxu0 0.0
      %3588 = vmatpush.msra.mxu0 0.0
      %3589 = vmatpush.msra.mxu0 0.0
      %3590 = vmatpush.msra.mxu0 0.0
      %3591 = vmatpush.msra.mxu0 0.0
      %3592 = vmatpush.msra.mxu0 0.0
      %3593 = vmatpush.msra.mxu0 0.0
      %3594 = vmatpush.msra.mxu0 0.0
      %3595 = vmatpush.msra.mxu0 0.0
      %3596 = vmatpush.msra.mxu0 %v3579
      %3597 = vmatmul.f32.gmra.mxu0 %v2931
      %v3598 = vpop.f32.mrf.mxu0
      %v3599 = vadd.f32 0.0, %v3598
      %3600 = vdwg.mxu0
      %3601 = vmatpush.msra.mxu0 0.0
      %3602 = vmatpush.msra.mxu0 0.0
      %3603 = vmatpush.msra.mxu0 0.0
      %3604 = vmatpush.msra.mxu0 0.0
      %3605 = vmatpush.msra.mxu0 0.0
      %3606 = vmatpush.msra.mxu0 0.0
      %3607 = vmatpush.msra.mxu0 0.0
      %3608 = vmatpush.msra.mxu0 0.0
      %3609 = vmatpush.msra.mxu0 0.0
      %3610 = vmatpush.msra.mxu0 0.0
      %3611 = vmatpush.msra.mxu0 0.0
      %3612 = vmatpush.msra.mxu0 0.0
      %3613 = vmatpush.msra.mxu0 0.0
      %3614 = vmatpush.msra.mxu0 0.0
      %3615 = vmatpush.msra.mxu0 0.0
      %3616 = vmatpush.msra.mxu0 %v3578
      %3617 = vmatmul.f32.gmra.mxu0 %v2931
      %v3618 = vpop.f32.mrf.mxu0
      %v3619 = vadd.f32 0.0, %v3618
      %3620 = vdwg.mxu0
      %3621 = vmatpush.msra.mxu0 0.0
      %3622 = vmatpush.msra.mxu0 0.0
      %3623 = vmatpush.msra.mxu0 0.0
      %3624 = vmatpush.msra.mxu0 0.0
      %3625 = vmatpush.msra.mxu0 0.0
      %3626 = vmatpush.msra.mxu0 0.0
      %3627 = vmatpush.msra.mxu0 0.0
      %3628 = vmatpush.msra.mxu0 0.0
      %3629 = vmatpush.msra.mxu0 0.0
      %3630 = vmatpush.msra.mxu0 0.0
      %3631 = vmatpush.msra.mxu0 0.0
      %3632 = vmatpush.msra.mxu0 0.0
      %3633 = vmatpush.msra.mxu0 0.0
      %3634 = vmatpush.msra.mxu0 0.0
      %3635 = vmatpush.msra.mxu0 0.0
      %3636 = vmatpush.msra.mxu0 %v3580
      %3637 = vmatmul.f32.gmra.mxu0 %v2931
      %v3638 = vpop.f32.mrf.mxu0
      %v3639 = vadd.f32 0.0, %v3638
      %3640 = vdwg.mxu0
      %v3641 = vadd.f32 %v3569, %v3599
      %v3642 = vadd.f32 %v3570, %v3619
      %v3643 = vadd.f32 %v3571, %v3639
      %3644 = vrot.lane.b32.xlu0 %v3080, 109
      %v3645 = vpop.permute.xlu0 %3644
      %3646 = vrot.lane.b32.xlu0 %v3081, 109
      %v3647 = vpop.permute.xlu0 %3646
      %3648 = vrot.lane.b32.xlu0 %v3082, 109
      %v3649 = vpop.permute.xlu0 %3648
      %v3650 = vsel %vm1027, %v3647, %v3649
      %v3651 = vsel %vm1027, %v3645, %v3647
      %v3652 = vsel %vm1027, %v3649, %v3645
      %3653 = vmatpush.msra.mxu0 0.0
      %3654 = vmatpush.msra.mxu0 0.0
      %3655 = vmatpush.msra.mxu0 0.0
      %3656 = vmatpush.msra.mxu0 0.0
      %3657 = vmatpush.msra.mxu0 0.0
      %3658 = vmatpush.msra.mxu0 0.0
      %3659 = vmatpush.msra.mxu0 0.0
      %3660 = vmatpush.msra.mxu0 0.0
      %3661 = vmatpush.msra.mxu0 0.0
      %3662 = vmatpush.msra.mxu0 0.0
      %3663 = vmatpush.msra.mxu0 0.0
      %3664 = vmatpush.msra.mxu0 0.0
      %3665 = vmatpush.msra.mxu0 0.0
      %3666 = vmatpush.msra.mxu0 0.0
      %3667 = vmatpush.msra.mxu0 0.0
      %3668 = vmatpush.msra.mxu0 %v3651
      %3669 = vmatmul.f32.gmra.mxu0 %v3006
      %v3670 = vpop.f32.mrf.mxu0
      %v3671 = vadd.f32 0.0, %v3670
      %3672 = vdwg.mxu0
      %3673 = vmatpush.msra.mxu0 0.0
      %3674 = vmatpush.msra.mxu0 0.0
      %3675 = vmatpush.msra.mxu0 0.0
      %3676 = vmatpush.msra.mxu0 0.0
      %3677 = vmatpush.msra.mxu0 0.0
      %3678 = vmatpush.msra.mxu0 0.0
      %3679 = vmatpush.msra.mxu0 0.0
      %3680 = vmatpush.msra.mxu0 0.0
      %3681 = vmatpush.msra.mxu0 0.0
      %3682 = vmatpush.msra.mxu0 0.0
      %3683 = vmatpush.msra.mxu0 0.0
      %3684 = vmatpush.msra.mxu0 0.0
      %3685 = vmatpush.msra.mxu0 0.0
      %3686 = vmatpush.msra.mxu0 0.0
      %3687 = vmatpush.msra.mxu0 0.0
      %3688 = vmatpush.msra.mxu0 %v3650
      %3689 = vmatmul.f32.gmra.mxu0 %v3006
      %v3690 = vpop.f32.mrf.mxu0
      %v3691 = vadd.f32 0.0, %v3690
      %3692 = vdwg.mxu0
      %3693 = vmatpush.msra.mxu0 0.0
      %3694 = vmatpush.msra.mxu0 0.0
      %3695 = vmatpush.msra.mxu0 0.0
      %3696 = vmatpush.msra.mxu0 0.0
      %3697 = vmatpush.msra.mxu0 0.0
      %3698 = vmatpush.msra.mxu0 0.0
      %3699 = vmatpush.msra.mxu0 0.0
      %3700 = vmatpush.msra.mxu0 0.0
      %3701 = vmatpush.msra.mxu0 0.0
      %3702 = vmatpush.msra.mxu0 0.0
      %3703 = vmatpush.msra.mxu0 0.0
      %3704 = vmatpush.msra.mxu0 0.0
      %3705 = vmatpush.msra.mxu0 0.0
      %3706 = vmatpush.msra.mxu0 0.0
      %3707 = vmatpush.msra.mxu0 0.0
      %3708 = vmatpush.msra.mxu0 %v3652
      %3709 = vmatmul.f32.gmra.mxu0 %v3006
      %v3710 = vpop.f32.mrf.mxu0
      %v3711 = vadd.f32 0.0, %v3710
      %3712 = vdwg.mxu0
      %v3713 = vadd.f32 %v3641, %v3671
      %v3714 = vadd.f32 %v3642, %v3691
      %v3715 = vadd.f32 %v3643, %v3711
      %v3716 = vadd.f32 %v3713, %v2409
      %v3717 = vadd.f32 %v3714, %v2409
      %v3718 = vadd.f32 %v3715, %v2409
      %v3719 = vmax.f32 %v3716, 0.0
      %v3720 = vmax.f32 %v3717, 0.0
      %v3721 = vmax.f32 %v3718, 0.0
      %v3722 = vmul.f32 %v3719, %v311
      %v3723 = vmul.f32 %v3720, %v312
      %v3724 = vmul.f32 %v3721, %v313
      %v3725 = vadd.f32 %v3722, %v2393
      %v3726 = vadd.f32 %v3723, %v2394
      %v3727 = vadd.f32 %v3724, %v2395
      %3728 = vrot.lane.b32.xlu0 %v3725, 19
      %v3729 = vpop.permute.xlu0 %3728
      %3730 = vrot.lane.b32.xlu0 %v3726, 19
      %v3731 = vpop.permute.xlu0 %3730
      %3732 = vrot.lane.b32.xlu0 %v3727, 19
      %v3733 = vpop.permute.xlu0 %3732
      %v3734 = vsel %vm434, %v3731, %v3733
      %v3735 = vsel %vm434, %v3729, %v3731
      %v3736 = vsel %vm434, %v3733, %v3729
      %3737 = vrot.lane.b32.xlu0 %v3725, 18
      %v3738 = vpop.permute.xlu0 %3737
      %3739 = vrot.lane.b32.xlu0 %v3726, 18
      %v3740 = vpop.permute.xlu0 %3739
      %3741 = vrot.lane.b32.xlu0 %v3727, 18
      %v3742 = vpop.permute.xlu0 %3741
      %v3743 = vsel %vm444, %v3740, %v3742
      %v3744 = vsel %vm444, %v3738, %v3740
      %v3745 = vsel %vm444, %v3742, %v3738
      %3746 = vmatpush.msra.mxu0 0.0
      %3747 = vmatpush.msra.mxu0 0.0
      %3748 = vmatpush.msra.mxu0 0.0
      %3749 = vmatpush.msra.mxu0 0.0
      %3750 = vmatpush.msra.mxu0 0.0
      %3751 = vmatpush.msra.mxu0 0.0
      %3752 = vmatpush.msra.mxu0 0.0
      %3753 = vmatpush.msra.mxu0 0.0
      %3754 = vmatpush.msra.mxu0 0.0
      %3755 = vmatpush.msra.mxu0 0.0
      %3756 = vmatpush.msra.mxu0 0.0
      %3757 = vmatpush.msra.mxu0 0.0
      %3758 = vmatpush.msra.mxu0 0.0
      %3759 = vmatpush.msra.mxu0 0.0
      %3760 = vmatpush.msra.mxu0 0.0
      %3761 = vmatpush.msra.mxu0 %v3745
      %3762 = vmatmul.f32.gmra.mxu0 %v2430
      %v3763 = vpop.f32.mrf.mxu0
      %v3764 = vadd.f32 0.0, %v3763
      %3765 = vdwg.mxu0
      %3766 = vmatpush.msra.mxu0 0.0
      %3767 = vmatpush.msra.mxu0 0.0
      %3768 = vmatpush.msra.mxu0 0.0
      %3769 = vmatpush.msra.mxu0 0.0
      %3770 = vmatpush.msra.mxu0 0.0
      %3771 = vmatpush.msra.mxu0 0.0
      %3772 = vmatpush.msra.mxu0 0.0
      %3773 = vmatpush.msra.mxu0 0.0
      %3774 = vmatpush.msra.mxu0 0.0
      %3775 = vmatpush.msra.mxu0 0.0
      %3776 = vmatpush.msra.mxu0 0.0
      %3777 = vmatpush.msra.mxu0 0.0
      %3778 = vmatpush.msra.mxu0 0.0
      %3779 = vmatpush.msra.mxu0 0.0
      %3780 = vmatpush.msra.mxu0 0.0
      %3781 = vmatpush.msra.mxu0 %v3744
      %3782 = vmatmul.f32.gmra.mxu0 %v2430
      %v3783 = vpop.f32.mrf.mxu0
      %v3784 = vadd.f32 0.0, %v3783
      %3785 = vdwg.mxu0
      %3786 = vmatpush.msra.mxu0 0.0
      %3787 = vmatpush.msra.mxu0 0.0
      %3788 = vmatpush.msra.mxu0 0.0
      %3789 = vmatpush.msra.mxu0 0.0
      %3790 = vmatpush.msra.mxu0 0.0
      %3791 = vmatpush.msra.mxu0 0.0
      %3792 = vmatpush.msra.mxu0 0.0
      %3793 = vmatpush.msra.mxu0 0.0
      %3794 = vmatpush.msra.mxu0 0.0
      %3795 = vmatpush.msra.mxu0 0.0
      %3796 = vmatpush.msra.mxu0 0.0
      %3797 = vmatpush.msra.mxu0 0.0
      %3798 = vmatpush.msra.mxu0 0.0
      %3799 = vmatpush.msra.mxu0 0.0
      %3800 = vmatpush.msra.mxu0 0.0
      %3801 = vmatpush.msra.mxu0 %v3743
      %3802 = vmatmul.f32.gmra.mxu0 %v2430
      %v3803 = vpop.f32.mrf.mxu0
      %v3804 = vadd.f32 0.0, %v3803
      %3805 = vdwg.mxu0
      %3806 = vmatpush.msra.mxu0 0.0
      %3807 = vmatpush.msra.mxu0 0.0
      %3808 = vmatpush.msra.mxu0 0.0
      %3809 = vmatpush.msra.mxu0 0.0
      %3810 = vmatpush.msra.mxu0 0.0
      %3811 = vmatpush.msra.mxu0 0.0
      %3812 = vmatpush.msra.mxu0 0.0
      %3813 = vmatpush.msra.mxu0 0.0
      %3814 = vmatpush.msra.mxu0 0.0
      %3815 = vmatpush.msra.mxu0 0.0
      %3816 = vmatpush.msra.mxu0 0.0
      %3817 = vmatpush.msra.mxu0 0.0
      %3818 = vmatpush.msra.mxu0 0.0
      %3819 = vmatpush.msra.mxu0 0.0
      %3820 = vmatpush.msra.mxu0 0.0
      %3821 = vmatpush.msra.mxu0 %v3736
      %3822 = vmatmul.f32.gmra.mxu0 %v2493
      %v3823 = vpop.f32.mrf.mxu0
      %v3824 = vadd.f32 %v3764, %v3823
      %3825 = vdwg.mxu0
      %3826 = vmatpush.msra.mxu0 0.0
      %3827 = vmatpush.msra.mxu0 0.0
      %3828 = vmatpush.msra.mxu0 0.0
      %3829 = vmatpush.msra.mxu0 0.0
      %3830 = vmatpush.msra.mxu0 0.0
      %3831 = vmatpush.msra.mxu0 0.0
      %3832 = vmatpush.msra.mxu0 0.0
      %3833 = vmatpush.msra.mxu0 0.0
      %3834 = vmatpush.msra.mxu0 0.0
      %3835 = vmatpush.msra.mxu0 0.0
      %3836 = vmatpush.msra.mxu0 0.0
      %3837 = vmatpush.msra.mxu0 0.0
      %3838 = vmatpush.msra.mxu0 0.0
      %3839 = vmatpush.msra.mxu0 0.0
      %3840 = vmatpush.msra.mxu0 0.0
      %3841 = vmatpush.msra.mxu0 %v3735
      %3842 = vmatmul.f32.gmra.mxu0 %v2493
      %v3843 = vpop.f32.mrf.mxu0
      %v3844 = vadd.f32 %v3784, %v3843
      %3845 = vdwg.mxu0
      %3846 = vmatpush.msra.mxu0 0.0
      %3847 = vmatpush.msra.mxu0 0.0
      %3848 = vmatpush.msra.mxu0 0.0
      %3849 = vmatpush.msra.mxu0 0.0
      %3850 = vmatpush.msra.mxu0 0.0
      %3851 = vmatpush.msra.mxu0 0.0
      %3852 = vmatpush.msra.mxu0 0.0
      %3853 = vmatpush.msra.mxu0 0.0
      %3854 = vmatpush.msra.mxu0 0.0
      %3855 = vmatpush.msra.mxu0 0.0
      %3856 = vmatpush.msra.mxu0 0.0
      %3857 = vmatpush.msra.mxu0 0.0
      %3858 = vmatpush.msra.mxu0 0.0
      %3859 = vmatpush.msra.mxu0 0.0
      %3860 = vmatpush.msra.mxu0 0.0
      %3861 = vmatpush.msra.mxu0 %v3734
      %3862 = vmatmul.f32.gmra.mxu0 %v2493
      %v3863 = vpop.f32.mrf.mxu0
      %v3864 = vadd.f32 %v3804, %v3863
      %3865 = vdwg.mxu0
      %3866 = vrot.lane.b32.xlu0 %v3725, 17
      %v3867 = vpop.permute.xlu0 %3866
      %3868 = vrot.lane.b32.xlu0 %v3726, 17
      %v3869 = vpop.permute.xlu0 %3868
      %3870 = vrot.lane.b32.xlu0 %v3727, 17
      %v3871 = vpop.permute.xlu0 %3870
      %v3872 = vsel %vm581, %v3869, %v3871
      %v3873 = vsel %vm581, %v3867, %v3869
      %v3874 = vsel %vm581, %v3871, %v3867
      %3875 = vmatpush.msra.mxu0 0.0
      %3876 = vmatpush.msra.mxu0 0.0
      %3877 = vmatpush.msra.mxu0 0.0
      %3878 = vmatpush.msra.mxu0 0.0
      %3879 = vmatpush.msra.mxu0 0.0
      %3880 = vmatpush.msra.mxu0 0.0
      %3881 = vmatpush.msra.mxu0 0.0
      %3882 = vmatpush.msra.mxu0 0.0
      %3883 = vmatpush.msra.mxu0 0.0
      %3884 = vmatpush.msra.mxu0 0.0
      %3885 = vmatpush.msra.mxu0 0.0
      %3886 = vmatpush.msra.mxu0 0.0
      %3887 = vmatpush.msra.mxu0 0.0
      %3888 = vmatpush.msra.mxu0 0.0
      %3889 = vmatpush.msra.mxu0 0.0
      %3890 = vmatpush.msra.mxu0 %v3874
      %3891 = vmatmul.f32.gmra.mxu0 %v2565
      %v3892 = vpop.f32.mrf.mxu0
      %v3893 = vadd.f32 0.0, %v3892
      %3894 = vdwg.mxu0
      %3895 = vmatpush.msra.mxu0 0.0
      %3896 = vmatpush.msra.mxu0 0.0
      %3897 = vmatpush.msra.mxu0 0.0
      %3898 = vmatpush.msra.mxu0 0.0
      %3899 = vmatpush.msra.mxu0 0.0
      %3900 = vmatpush.msra.mxu0 0.0
      %3901 = vmatpush.msra.mxu0 0.0
      %3902 = vmatpush.msra.mxu0 0.0
      %3903 = vmatpush.msra.mxu0 0.0
      %3904 = vmatpush.msra.mxu0 0.0
      %3905 = vmatpush.msra.mxu0 0.0
      %3906 = vmatpush.msra.mxu0 0.0
      %3907 = vmatpush.msra.mxu0 0.0
      %3908 = vmatpush.msra.mxu0 0.0
      %3909 = vmatpush.msra.mxu0 0.0
      %3910 = vmatpush.msra.mxu0 %v3873
      %3911 = vmatmul.f32.gmra.mxu0 %v2565
      %v3912 = vpop.f32.mrf.mxu0
      %v3913 = vadd.f32 0.0, %v3912
      %3914 = vdwg.mxu0
      %3915 = vmatpush.msra.mxu0 0.0
      %3916 = vmatpush.msra.mxu0 0.0
      %3917 = vmatpush.msra.mxu0 0.0
      %3918 = vmatpush.msra.mxu0 0.0
      %3919 = vmatpush.msra.mxu0 0.0
      %3920 = vmatpush.msra.mxu0 0.0
      %3921 = vmatpush.msra.mxu0 0.0
      %3922 = vmatpush.msra.mxu0 0.0
      %3923 = vmatpush.msra.mxu0 0.0
      %3924 = vmatpush.msra.mxu0 0.0
      %3925 = vmatpush.msra.mxu0 0.0
      %3926 = vmatpush.msra.mxu0 0.0
      %3927 = vmatpush.msra.mxu0 0.0
      %3928 = vmatpush.msra.mxu0 0.0
      %3929 = vmatpush.msra.mxu0 0.0
      %3930 = vmatpush.msra.mxu0 %v3872
      %3931 = vmatmul.f32.gmra.mxu0 %v2565
      %v3932 = vpop.f32.mrf.mxu0
      %v3933 = vadd.f32 0.0, %v3932
      %3934 = vdwg.mxu0
      %v3935 = vadd.f32 %v3824, %v3893
      %v3936 = vadd.f32 %v3844, %v3913
      %v3937 = vadd.f32 %v3864, %v3933
      %3938 = vrot.lane.b32.xlu0 %v3725, 1
      %v3939 = vpop.permute.xlu0 %3938
      %3940 = vrot.lane.b32.xlu0 %v3726, 1
      %v3941 = vpop.permute.xlu0 %3940
      %3942 = vrot.lane.b32.xlu0 %v3727, 1
      %v3943 = vpop.permute.xlu0 %3942
      %v3944 = vsel %vm657, %v3941, %v3943
      %v3945 = vsel %vm657, %v3939, %v3941
      %v3946 = vsel %vm657, %v3943, %v3939
      %3947 = vmatpush.msra.mxu0 0.0
      %3948 = vmatpush.msra.mxu0 0.0
      %3949 = vmatpush.msra.mxu0 0.0
      %3950 = vmatpush.msra.mxu0 0.0
      %3951 = vmatpush.msra.mxu0 0.0
      %3952 = vmatpush.msra.mxu0 0.0
      %3953 = vmatpush.msra.mxu0 0.0
      %3954 = vmatpush.msra.mxu0 0.0
      %3955 = vmatpush.msra.mxu0 0.0
      %3956 = vmatpush.msra.mxu0 0.0
      %3957 = vmatpush.msra.mxu0 0.0
      %3958 = vmatpush.msra.mxu0 0.0
      %3959 = vmatpush.msra.mxu0 0.0
      %3960 = vmatpush.msra.mxu0 0.0
      %3961 = vmatpush.msra.mxu0 0.0
      %3962 = vmatpush.msra.mxu0 %v3946
      %3963 = vmatmul.f32.gmra.mxu0 %v2640
      %v3964 = vpop.f32.mrf.mxu0
      %v3965 = vadd.f32 0.0, %v3964
      %3966 = vdwg.mxu0
      %3967 = vmatpush.msra.mxu0 0.0
      %3968 = vmatpush.msra.mxu0 0.0
      %3969 = vmatpush.msra.mxu0 0.0
      %3970 = vmatpush.msra.mxu0 0.0
      %3971 = vmatpush.msra.mxu0 0.0
      %3972 = vmatpush.msra.mxu0 0.0
      %3973 = vmatpush.msra.mxu0 0.0
      %3974 = vmatpush.msra.mxu0 0.0
      %3975 = vmatpush.msra.mxu0 0.0
      %3976 = vmatpush.msra.mxu0 0.0
      %3977 = vmatpush.msra.mxu0 0.0
      %3978 = vmatpush.msra.mxu0 0.0
      %3979 = vmatpush.msra.mxu0 0.0
      %3980 = vmatpush.msra.mxu0 0.0
      %3981 = vmatpush.msra.mxu0 0.0
      %3982 = vmatpush.msra.mxu0 %v3945
      %3983 = vmatmul.f32.gmra.mxu0 %v2640
      %v3984 = vpop.f32.mrf.mxu0
      %v3985 = vadd.f32 0.0, %v3984
      %3986 = vdwg.mxu0
      %3987 = vmatpush.msra.mxu0 0.0
      %3988 = vmatpush.msra.mxu0 0.0
      %3989 = vmatpush.msra.mxu0 0.0
      %3990 = vmatpush.msra.mxu0 0.0
      %3991 = vmatpush.msra.mxu0 0.0
      %3992 = vmatpush.msra.mxu0 0.0
      %3993 = vmatpush.msra.mxu0 0.0
      %3994 = vmatpush.msra.mxu0 0.0
      %3995 = vmatpush.msra.mxu0 0.0
      %3996 = vmatpush.msra.mxu0 0.0
      %3997 = vmatpush.msra.mxu0 0.0
      %3998 = vmatpush.msra.mxu0 0.0
      %3999 = vmatpush.msra.mxu0 0.0
      %4000 = vmatpush.msra.mxu0 0.0
      %4001 = vmatpush.msra.mxu0 0.0
      %4002 = vmatpush.msra.mxu0 %v3944
      %4003 = vmatmul.f32.gmra.mxu0 %v2640
      %v4004 = vpop.f32.mrf.mxu0
      %v4005 = vadd.f32 0.0, %v4004
      %4006 = vdwg.mxu0
      %v4007 = vadd.f32 %v3935, %v3965
      %v4008 = vadd.f32 %v3936, %v3985
      %v4009 = vadd.f32 %v3937, %v4005
      %4010 = vmatpush.msra.mxu0 0.0
      %4011 = vmatpush.msra.mxu0 0.0
      %4012 = vmatpush.msra.mxu0 0.0
      %4013 = vmatpush.msra.mxu0 0.0
      %4014 = vmatpush.msra.mxu0 0.0
      %4015 = vmatpush.msra.mxu0 0.0
      %4016 = vmatpush.msra.mxu0 0.0
      %4017 = vmatpush.msra.mxu0 0.0
      %4018 = vmatpush.msra.mxu0 0.0
      %4019 = vmatpush.msra.mxu0 0.0
      %4020 = vmatpush.msra.mxu0 0.0
      %4021 = vmatpush.msra.mxu0 0.0
      %4022 = vmatpush.msra.mxu0 0.0
      %4023 = vmatpush.msra.mxu0 0.0
      %4024 = vmatpush.msra.mxu0 0.0
      %4025 = vmatpush.msra.mxu0 %v3725
      %4026 = vmatmul.f32.gmra.mxu0 %v2706
      %v4027 = vpop.f32.mrf.mxu0
      %v4028 = vadd.f32 0.0, %v4027
      %4029 = vdwg.mxu0
      %4030 = vmatpush.msra.mxu0 0.0
      %4031 = vmatpush.msra.mxu0 0.0
      %4032 = vmatpush.msra.mxu0 0.0
      %4033 = vmatpush.msra.mxu0 0.0
      %4034 = vmatpush.msra.mxu0 0.0
      %4035 = vmatpush.msra.mxu0 0.0
      %4036 = vmatpush.msra.mxu0 0.0
      %4037 = vmatpush.msra.mxu0 0.0
      %4038 = vmatpush.msra.mxu0 0.0
      %4039 = vmatpush.msra.mxu0 0.0
      %4040 = vmatpush.msra.mxu0 0.0
      %4041 = vmatpush.msra.mxu0 0.0
      %4042 = vmatpush.msra.mxu0 0.0
      %4043 = vmatpush.msra.mxu0 0.0
      %4044 = vmatpush.msra.mxu0 0.0
      %4045 = vmatpush.msra.mxu0 %v3726
      %4046 = vmatmul.f32.gmra.mxu0 %v2706
      %v4047 = vpop.f32.mrf.mxu0
      %v4048 = vadd.f32 0.0, %v4047
      %4049 = vdwg.mxu0
      %4050 = vmatpush.msra.mxu0 0.0
      %4051 = vmatpush.msra.mxu0 0.0
      %4052 = vmatpush.msra.mxu0 0.0
      %4053 = vmatpush.msra.mxu0 0.0
      %4054 = vmatpush.msra.mxu0 0.0
      %4055 = vmatpush.msra.mxu0 0.0
      %4056 = vmatpush.msra.mxu0 0.0
      %4057 = vmatpush.msra.mxu0 0.0
      %4058 = vmatpush.msra.mxu0 0.0
      %4059 = vmatpush.msra.mxu0 0.0
      %4060 = vmatpush.msra.mxu0 0.0
      %4061 = vmatpush.msra.mxu0 0.0
      %4062 = vmatpush.msra.mxu0 0.0
      %4063 = vmatpush.msra.mxu0 0.0
      %4064 = vmatpush.msra.mxu0 0.0
      %4065 = vmatpush.msra.mxu0 %v3727
      %4066 = vmatmul.f32.gmra.mxu0 %v2706
      %v4067 = vpop.f32.mrf.mxu0
      %v4068 = vadd.f32 0.0, %v4067
      %4069 = vdwg.mxu0
      %v4070 = vadd.f32 %v4007, %v4028
      %v4071 = vadd.f32 %v4008, %v4048
      %v4072 = vadd.f32 %v4009, %v4068
      %4073 = vrot.lane.b32.xlu0 %v3725, 127
      %v4074 = vpop.permute.xlu0 %4073
      %4075 = vrot.lane.b32.xlu0 %v3726, 127
      %v4076 = vpop.permute.xlu0 %4075
      %4077 = vrot.lane.b32.xlu0 %v3727, 127
      %v4078 = vpop.permute.xlu0 %4077
      %v4079 = vsel %vm799, %v4076, %v4078
      %v4080 = vsel %vm799, %v4074, %v4076
      %v4081 = vsel %vm799, %v4078, %v4074
      %4082 = vmatpush.msra.mxu0 0.0
      %4083 = vmatpush.msra.mxu0 0.0
      %4084 = vmatpush.msra.mxu0 0.0
      %4085 = vmatpush.msra.mxu0 0.0
      %4086 = vmatpush.msra.mxu0 0.0
      %4087 = vmatpush.msra.mxu0 0.0
      %4088 = vmatpush.msra.mxu0 0.0
      %4089 = vmatpush.msra.mxu0 0.0
      %4090 = vmatpush.msra.mxu0 0.0
      %4091 = vmatpush.msra.mxu0 0.0
      %4092 = vmatpush.msra.mxu0 0.0
      %4093 = vmatpush.msra.mxu0 0.0
      %4094 = vmatpush.msra.mxu0 0.0
      %4095 = vmatpush.msra.mxu0 0.0
      %4096 = vmatpush.msra.mxu0 0.0
      %4097 = vmatpush.msra.mxu0 %v4080
      %4098 = vmatmul.f32.gmra.mxu0 %v2781
      %v4099 = vpop.f32.mrf.mxu0
      %v4100 = vadd.f32 0.0, %v4099
      %4101 = vdwg.mxu0
      %4102 = vmatpush.msra.mxu0 0.0
      %4103 = vmatpush.msra.mxu0 0.0
      %4104 = vmatpush.msra.mxu0 0.0
      %4105 = vmatpush.msra.mxu0 0.0
      %4106 = vmatpush.msra.mxu0 0.0
      %4107 = vmatpush.msra.mxu0 0.0
      %4108 = vmatpush.msra.mxu0 0.0
      %4109 = vmatpush.msra.mxu0 0.0
      %4110 = vmatpush.msra.mxu0 0.0
      %4111 = vmatpush.msra.mxu0 0.0
      %4112 = vmatpush.msra.mxu0 0.0
      %4113 = vmatpush.msra.mxu0 0.0
      %4114 = vmatpush.msra.mxu0 0.0
      %4115 = vmatpush.msra.mxu0 0.0
      %4116 = vmatpush.msra.mxu0 0.0
      %4117 = vmatpush.msra.mxu0 %v4079
      %4118 = vmatmul.f32.gmra.mxu0 %v2781
      %v4119 = vpop.f32.mrf.mxu0
      %v4120 = vadd.f32 0.0, %v4119
      %4121 = vdwg.mxu0
      %4122 = vmatpush.msra.mxu0 0.0
      %4123 = vmatpush.msra.mxu0 0.0
      %4124 = vmatpush.msra.mxu0 0.0
      %4125 = vmatpush.msra.mxu0 0.0
      %4126 = vmatpush.msra.mxu0 0.0
      %4127 = vmatpush.msra.mxu0 0.0
      %4128 = vmatpush.msra.mxu0 0.0
      %4129 = vmatpush.msra.mxu0 0.0
      %4130 = vmatpush.msra.mxu0 0.0
      %4131 = vmatpush.msra.mxu0 0.0
      %4132 = vmatpush.msra.mxu0 0.0
      %4133 = vmatpush.msra.mxu0 0.0
      %4134 = vmatpush.msra.mxu0 0.0
      %4135 = vmatpush.msra.mxu0 0.0
      %4136 = vmatpush.msra.mxu0 0.0
      %4137 = vmatpush.msra.mxu0 %v4081
      %4138 = vmatmul.f32.gmra.mxu0 %v2781
      %v4139 = vpop.f32.mrf.mxu0
      %v4140 = vadd.f32 0.0, %v4139
      %4141 = vdwg.mxu0
      %v4142 = vadd.f32 %v4070, %v4100
      %v4143 = vadd.f32 %v4071, %v4120
      %v4144 = vadd.f32 %v4072, %v4140
      %4145 = vrot.lane.b32.xlu0 %v3725, 111
      %v4146 = vpop.permute.xlu0 %4145
      %4147 = vrot.lane.b32.xlu0 %v3726, 111
      %v4148 = vpop.permute.xlu0 %4147
      %4149 = vrot.lane.b32.xlu0 %v3727, 111
      %v4150 = vpop.permute.xlu0 %4149
      %v4151 = vsel %vm875, %v4148, %v4150
      %v4152 = vsel %vm875, %v4146, %v4148
      %v4153 = vsel %vm875, %v4150, %v4146
      %4154 = vmatpush.msra.mxu0 0.0
      %4155 = vmatpush.msra.mxu0 0.0
      %4156 = vmatpush.msra.mxu0 0.0
      %4157 = vmatpush.msra.mxu0 0.0
      %4158 = vmatpush.msra.mxu0 0.0
      %4159 = vmatpush.msra.mxu0 0.0
      %4160 = vmatpush.msra.mxu0 0.0
      %4161 = vmatpush.msra.mxu0 0.0
      %4162 = vmatpush.msra.mxu0 0.0
      %4163 = vmatpush.msra.mxu0 0.0
      %4164 = vmatpush.msra.mxu0 0.0
      %4165 = vmatpush.msra.mxu0 0.0
      %4166 = vmatpush.msra.mxu0 0.0
      %4167 = vmatpush.msra.mxu0 0.0
      %4168 = vmatpush.msra.mxu0 0.0
      %4169 = vmatpush.msra.mxu0 %v4152
      %4170 = vmatmul.f32.gmra.mxu0 %v2856
      %v4171 = vpop.f32.mrf.mxu0
      %v4172 = vadd.f32 0.0, %v4171
      %4173 = vdwg.mxu0
      %4174 = vmatpush.msra.mxu0 0.0
      %4175 = vmatpush.msra.mxu0 0.0
      %4176 = vmatpush.msra.mxu0 0.0
      %4177 = vmatpush.msra.mxu0 0.0
      %4178 = vmatpush.msra.mxu0 0.0
      %4179 = vmatpush.msra.mxu0 0.0
      %4180 = vmatpush.msra.mxu0 0.0
      %4181 = vmatpush.msra.mxu0 0.0
      %4182 = vmatpush.msra.mxu0 0.0
      %4183 = vmatpush.msra.mxu0 0.0
      %4184 = vmatpush.msra.mxu0 0.0
      %4185 = vmatpush.msra.mxu0 0.0
      %4186 = vmatpush.msra.mxu0 0.0
      %4187 = vmatpush.msra.mxu0 0.0
      %4188 = vmatpush.msra.mxu0 0.0
      %4189 = vmatpush.msra.mxu0 %v4151
      %4190 = vmatmul.f32.gmra.mxu0 %v2856
      %v4191 = vpop.f32.mrf.mxu0
      %v4192 = vadd.f32 0.0, %v4191
      %4193 = vdwg.mxu0
      %4194 = vmatpush.msra.mxu0 0.0
      %4195 = vmatpush.msra.mxu0 0.0
      %4196 = vmatpush.msra.mxu0 0.0
      %4197 = vmatpush.msra.mxu0 0.0
      %4198 = vmatpush.msra.mxu0 0.0
      %4199 = vmatpush.msra.mxu0 0.0
      %4200 = vmatpush.msra.mxu0 0.0
      %4201 = vmatpush.msra.mxu0 0.0
      %4202 = vmatpush.msra.mxu0 0.0
      %4203 = vmatpush.msra.mxu0 0.0
      %4204 = vmatpush.msra.mxu0 0.0
      %4205 = vmatpush.msra.mxu0 0.0
      %4206 = vmatpush.msra.mxu0 0.0
      %4207 = vmatpush.msra.mxu0 0.0
      %4208 = vmatpush.msra.mxu0 0.0
      %4209 = vmatpush.msra.mxu0 %v4153
      %4210 = vmatmul.f32.gmra.mxu0 %v2856
      %v4211 = vpop.f32.mrf.mxu0
      %v4212 = vadd.f32 0.0, %v4211
      %4213 = vdwg.mxu0
      %v4214 = vadd.f32 %v4142, %v4172
      %v4215 = vadd.f32 %v4143, %v4192
      %v4216 = vadd.f32 %v4144, %v4212
      %4217 = vrot.lane.b32.xlu0 %v3725, 110
      %v4218 = vpop.permute.xlu0 %4217
      %4219 = vrot.lane.b32.xlu0 %v3726, 110
      %v4220 = vpop.permute.xlu0 %4219
      %4221 = vrot.lane.b32.xlu0 %v3727, 110
      %v4222 = vpop.permute.xlu0 %4221
      %v4223 = vsel %vm951, %v4220, %v4222
      %v4224 = vsel %vm951, %v4218, %v4220
      %v4225 = vsel %vm951, %v4222, %v4218
      %4226 = vmatpush.msra.mxu0 0.0
      %4227 = vmatpush.msra.mxu0 0.0
      %4228 = vmatpush.msra.mxu0 0.0
      %4229 = vmatpush.msra.mxu0 0.0
      %4230 = vmatpush.msra.mxu0 0.0
      %4231 = vmatpush.msra.mxu0 0.0
      %4232 = vmatpush.msra.mxu0 0.0
      %4233 = vmatpush.msra.mxu0 0.0
      %4234 = vmatpush.msra.mxu0 0.0
      %4235 = vmatpush.msra.mxu0 0.0
      %4236 = vmatpush.msra.mxu0 0.0
      %4237 = vmatpush.msra.mxu0 0.0
      %4238 = vmatpush.msra.mxu0 0.0
      %4239 = vmatpush.msra.mxu0 0.0
      %4240 = vmatpush.msra.mxu0 0.0
      %4241 = vmatpush.msra.mxu0 %v4224
      %4242 = vmatmul.f32.gmra.mxu0 %v2931
      %v4243 = vpop.f32.mrf.mxu0
      %v4244 = vadd.f32 0.0, %v4243
      %4245 = vdwg.mxu0
      %4246 = vmatpush.msra.mxu0 0.0
      %4247 = vmatpush.msra.mxu0 0.0
      %4248 = vmatpush.msra.mxu0 0.0
      %4249 = vmatpush.msra.mxu0 0.0
      %4250 = vmatpush.msra.mxu0 0.0
      %4251 = vmatpush.msra.mxu0 0.0
      %4252 = vmatpush.msra.mxu0 0.0
      %4253 = vmatpush.msra.mxu0 0.0
      %4254 = vmatpush.msra.mxu0 0.0
      %4255 = vmatpush.msra.mxu0 0.0
      %4256 = vmatpush.msra.mxu0 0.0
      %4257 = vmatpush.msra.mxu0 0.0
      %4258 = vmatpush.msra.mxu0 0.0
      %4259 = vmatpush.msra.mxu0 0.0
      %4260 = vmatpush.msra.mxu0 0.0
      %4261 = vmatpush.msra.mxu0 %v4223
      %4262 = vmatmul.f32.gmra.mxu0 %v2931
      %v4263 = vpop.f32.mrf.mxu0
      %v4264 = vadd.f32 0.0, %v4263
      %4265 = vdwg.mxu0
      %4266 = vmatpush.msra.mxu0 0.0
      %4267 = vmatpush.msra.mxu0 0.0
      %4268 = vmatpush.msra.mxu0 0.0
      %4269 = vmatpush.msra.mxu0 0.0
      %4270 = vmatpush.msra.mxu0 0.0
      %4271 = vmatpush.msra.mxu0 0.0
      %4272 = vmatpush.msra.mxu0 0.0
      %4273 = vmatpush.msra.mxu0 0.0
      %4274 = vmatpush.msra.mxu0 0.0
      %4275 = vmatpush.msra.mxu0 0.0
      %4276 = vmatpush.msra.mxu0 0.0
      %4277 = vmatpush.msra.mxu0 0.0
      %4278 = vmatpush.msra.mxu0 0.0
      %4279 = vmatpush.msra.mxu0 0.0
      %4280 = vmatpush.msra.mxu0 0.0
      %4281 = vmatpush.msra.mxu0 %v4225
      %4282 = vmatmul.f32.gmra.mxu0 %v2931
      %v4283 = vpop.f32.mrf.mxu0
      %v4284 = vadd.f32 0.0, %v4283
      %4285 = vdwg.mxu0
      %v4286 = vadd.f32 %v4214, %v4244
      %v4287 = vadd.f32 %v4215, %v4264
      %v4288 = vadd.f32 %v4216, %v4284
      %4289 = vrot.lane.b32.xlu0 %v3725, 109
      %v4290 = vpop.permute.xlu0 %4289
      %4291 = vrot.lane.b32.xlu0 %v3726, 109
      %v4292 = vpop.permute.xlu0 %4291
      %4293 = vrot.lane.b32.xlu0 %v3727, 109
      %v4294 = vpop.permute.xlu0 %4293
      %v4295 = vsel %vm1027, %v4292, %v4294
      %v4296 = vsel %vm1027, %v4290, %v4292
      %v4297 = vsel %vm1027, %v4294, %v4290
      %4298 = vmatpush.msra.mxu0 0.0
      %4299 = vmatpush.msra.mxu0 0.0
      %4300 = vmatpush.msra.mxu0 0.0
      %4301 = vmatpush.msra.mxu0 0.0
      %4302 = vmatpush.msra.mxu0 0.0
      %4303 = vmatpush.msra.mxu0 0.0
      %4304 = vmatpush.msra.mxu0 0.0
      %4305 = vmatpush.msra.mxu0 0.0
      %4306 = vmatpush.msra.mxu0 0.0
      %4307 = vmatpush.msra.mxu0 0.0
      %4308 = vmatpush.msra.mxu0 0.0
      %4309 = vmatpush.msra.mxu0 0.0
      %4310 = vmatpush.msra.mxu0 0.0
      %4311 = vmatpush.msra.mxu0 0.0
      %4312 = vmatpush.msra.mxu0 0.0
      %4313 = vmatpush.msra.mxu0 %v4296
      %4314 = vmatmul.f32.gmra.mxu0 %v3006
      %v4315 = vpop.f32.mrf.mxu0
      %v4316 = vadd.f32 0.0, %v4315
      %4317 = vdwg.mxu0
      %4318 = vmatpush.msra.mxu0 0.0
      %4319 = vmatpush.msra.mxu0 0.0
      %4320 = vmatpush.msra.mxu0 0.0
      %4321 = vmatpush.msra.mxu0 0.0
      %4322 = vmatpush.msra.mxu0 0.0
      %4323 = vmatpush.msra.mxu0 0.0
      %4324 = vmatpush.msra.mxu0 0.0
      %4325 = vmatpush.msra.mxu0 0.0
      %4326 = vmatpush.msra.mxu0 0.0
      %4327 = vmatpush.msra.mxu0 0.0
      %4328 = vmatpush.msra.mxu0 0.0
      %4329 = vmatpush.msra.mxu0 0.0
      %4330 = vmatpush.msra.mxu0 0.0
      %4331 = vmatpush.msra.mxu0 0.0
      %4332 = vmatpush.msra.mxu0 0.0
      %4333 = vmatpush.msra.mxu0 %v4295
      %4334 = vmatmul.f32.gmra.mxu0 %v3006
      %v4335 = vpop.f32.mrf.mxu0
      %v4336 = vadd.f32 0.0, %v4335
      %4337 = vdwg.mxu0
      %4338 = vmatpush.msra.mxu0 0.0
      %4339 = vmatpush.msra.mxu0 0.0
      %4340 = vmatpush.msra.mxu0 0.0
      %4341 = vmatpush.msra.mxu0 0.0
      %4342 = vmatpush.msra.mxu0 0.0
      %4343 = vmatpush.msra.mxu0 0.0
      %4344 = vmatpush.msra.mxu0 0.0
      %4345 = vmatpush.msra.mxu0 0.0
      %4346 = vmatpush.msra.mxu0 0.0
      %4347 = vmatpush.msra.mxu0 0.0
      %4348 = vmatpush.msra.mxu0 0.0
      %4349 = vmatpush.msra.mxu0 0.0
      %4350 = vmatpush.msra.mxu0 0.0
      %4351 = vmatpush.msra.mxu0 0.0
      %4352 = vmatpush.msra.mxu0 0.0
      %4353 = vmatpush.msra.mxu0 %v4297
      %4354 = vmatmul.f32.gmra.mxu0 %v3006
      %v4355 = vpop.f32.mrf.mxu0
      %v4356 = vadd.f32 0.0, %v4355
      %4357 = vdwg.mxu0
      %v4358 = vadd.f32 %v4286, %v4316
      %v4359 = vadd.f32 %v4287, %v4336
      %v4360 = vadd.f32 %v4288, %v4356
      %v4361 = vadd.f32 %v4358, %v2409
      %v4362 = vadd.f32 %v4359, %v2409
      %v4363 = vadd.f32 %v4360, %v2409
      %v4364 = vmax.f32 %v4361, 0.0
      %v4365 = vmax.f32 %v4362, 0.0
      %v4366 = vmax.f32 %v4363, 0.0
      %v4367 = vmul.f32 %v4364, %v311
      %v4368 = vmul.f32 %v4365, %v312
      %v4369 = vmul.f32 %v4366, %v313
      %v4370 = vadd.f32 %v4367, %v408
      %v4371 = vadd.f32 %v4368, %v409
      %v4372 = vadd.f32 %v4369, %v410
      %4373 = vst [vmem:[%s307] sm:$0xff] %v4370
      %4374 = vst [vmem:[%s307 + $0x8] sm:$0xff] %v4371
      %4375 = vst [vmem:[%s307 + $0x10] sm:$0xff] %v4372
      %s4376 = smul.u32 3, %s19
      %p4377 = scmp.lt.s32.totalorder %s4376, 5
      %s4378 = scalar_select %p4377, %s4376, 5
      %s4379 = smul.addr %s4378, 8
      %s4380 = scalar_lea.vmem %s8, %s4379
      // Predicated region
      $region53: #{recurrent_residual_block.1} parent=51 // pred_check
        %p4381 = pneg %p210
      $region54: #{recurrent_residual_block.1} parent=51 // pred_check_branch
        %4383 = sbr.rel (%p4381) target = $region56
      $region55: #{recurrent_residual_block.1} parent=51 // pred_region
        %s4384 = smul.u32 3, %s19
      $region56: #{recurrent_residual_block.1} parent=51 // pred_fallthru
        _
    $region52: #{recurrent_residual_block.1} parent=5 // pred_fallthru
      _
    %p4385 = scmp.le.s32.totalorder 2, %s14
    // Predicated region
    $region57: #{recurrent_residual_block.1} parent=5 // pred_check
      %p4386 = pneg %p4385
    $region58: #{recurrent_residual_block.1} parent=5 // pred_check_branch
      %4388 = sbr.rel (%p4386) target = $region60
    $region59: #{recurrent_residual_block.1} parent=5 // pred_region
      %s4389 = ssub.s32 %s14, 2
      // Predicated region
      $region61: #{recurrent_residual_block.1} parent=59 // pred_check
        %p4390 = pneg %p216
      $region62: #{recurrent_residual_block.1} parent=59 // pred_check_branch
        %4392 = sbr.rel (%p4390) target = $region64
      $region63: #{recurrent_residual_block.1} parent=59 // pred_region
        %s4393 = smul.u32 3, %s20
        %p4394 = scmp.lt.s32.totalorder %s4393, 5
        %s4395 = scalar_select %p4394, %s4393, 5
        %s4396 = smul.addr %s4395, 8
        %s4397 = scalar_lea.vmem %s8, %s4396
      $region64: #{recurrent_residual_block.1} parent=59 // pred_fallthru
        _
    $region60: #{recurrent_residual_block.1} parent=5 // pred_fallthru
      _
  $region6: #{recurrent_residual_block.1} parent=0 // loop_footer
    %s18 = sadd.s32 1, %s14
  $region7: #{recurrent_residual_block.1} parent=0 // loop_footer_branch
    %13 = sbr.rel target = $region3
  $region8: #{recurrent_residual_block.1} parent=0 // loop_exit
    _

</llo_original>
